<compile_context>
chip_gen: v7x
topology: tpu7x:2x2x1
jax: 0.10.0
libtpu: 0.0.40
codegen_flags: <defaults>
</compile_context>

<pallas_src>
import functools

import jax
import jax.numpy as jnp
from jax import lax
from jax.experimental import pallas as pl
from jax.experimental.pallas import tpu as pltpu


def _lstm_whole_kernel(x_ref, wih_ref, whh_ref, b_ref, wlin_ref, blin_ref,
                       out_ref, *, hidden_size):
    """Full LSTM recurrence + Linear head for the whole (padded) batch.

    Refs (all VMEM):
      x_ref    : (T, B, 1)   f32   time-major input
      wih_ref  : (1, 4H)     f32   (== weight_ih_l0.T, input_size == 1)
      whh_ref  : (H, 4H)     f32   (== weight_hh_l0.T)
      b_ref    : (1, 4H)     f32   (== bias_ih_l0 + bias_hh_l0)
      wlin_ref : (1, H)      f32   (== linear.weight)
      blin_ref : (1, 1)      f32   (== linear.bias)
      out_ref  : (T, B)      f32   lane-dense output (trailing 1 added outside)
    """
    H = hidden_size
    T, B, _ = x_ref.shape

    # ---- hoisted, loop-invariant loads ---------------------------------------
    wih = wih_ref[...]                                     # (1, 4H)
    whh = whh_ref[...]                                     # (H, 4H)
    bias = b_ref[...]                                      # (1, 4H)
    wlin = wlin_ref[...]                                   # (1, H)

    # ---- input projection hoisted out of the serial chain --------------------
    # input_size == 1  =>  x_t @ W_ih^T is a K=1 outer product; do it once for
    # all T steps on the MXU (off the critical path).
    xg = (jnp.dot(x_ref[...].reshape(T * B, 1), wih,
                  preferred_element_type=jnp.float32,
                  precision=lax.Precision.HIGHEST)
          .reshape(T, B, 4 * H) + bias)                    # (T, B, 4H)

    # ---- single-tanh activation masks (gate order i, f, g, o) ----------------
    # sigmoid(x) = 0.5 + 0.5 * tanh(x / 2): scale sigmoid lanes by 0.5 before
    # ONE tanh over the full tile, then affine-correct the sigmoid lanes.
    lane = lax.broadcasted_iota(jnp.int32, (B, 4 * H), 1)
    is_tanh_lane = (lane >= 2 * H) & (lane < 3 * H)        # the 'g' gate block
    scale = jnp.where(is_tanh_lane, 1.0, 0.5)              # (B, 4H)
    shift = jnp.where(is_tanh_lane, 0.0, 0.5)              # (B, 4H)

    h = jnp.zeros((B, H), jnp.float32)
    c = jnp.zeros((B, H), jnp.float32)
    hs = []
    # T is small & static -> full unroll gives the scheduler the whole chain.
    for t in range(T):
        gates = xg[t] + jnp.dot(h, whh,
                                preferred_element_type=jnp.float32,
                                precision=lax.Precision.HIGHEST)
        acts = scale * jnp.tanh(gates * scale) + shift     # one EUP pass
        i_g = acts[:, 0 * H:1 * H]
        f_g = acts[:, 1 * H:2 * H]
        g_g = acts[:, 2 * H:3 * H]
        o_g = acts[:, 3 * H:4 * H]
        c = f_g * c + i_g * g_g
        h = o_g * jnp.tanh(c)
        hs.append(h)

    # ---- lane-dense Linear head (VPU mul + lane reduce, no N=1 MXU matmul) ---
    hs_all = jnp.stack(hs, axis=0)                         # (T, B, H)
    y = jnp.sum(hs_all * wlin.reshape(1, 1, H), axis=-1)   # (T, B)
    out_ref[...] = (y + blin_ref[...]).astype(out_ref.dtype)


def lstm_whole_forward(x_bti, params):
    """x_bti: (B, T, 1) float32 (PyTorch batch-first). Returns (B, T, 1)."""
    wih_t, whh_t, bias, wlin_row, blin = params
    H = whh_t.shape[0]
    B, T, I = x_bti.shape
    assert I == 1, "LSTMWhole has input_size == 1"

    # Pad batch up to the sublane count (8); the entire padded batch is one
    # block so single-TC chips pay zero grid overhead.
    B_pad = max(8, ((B + 7) // 8) * 8)
    x_tbi = jnp.transpose(x_bti, (1, 0, 2))                # (T, B, 1)
    if B_pad != B:
        x_tbi = jnp.pad(x_tbi, ((0, 0), (0, B_pad - B), (0, 0)))

    kernel = functools.partial(_lstm_whole_kernel, hidden_size=H)
    vmem = pltpu.MemorySpace.VMEM

    out_tb = pl.pallas_call(
        kernel,
        out_shape=jax.ShapeDtypeStruct((T, B_pad), jnp.float32),
        in_specs=[pl.BlockSpec(memory_space=vmem)] * 6,
        out_specs=pl.BlockSpec(memory_space=vmem),
    )(x_tbi, wih_t, whh_t, bias, wlin_row, blin)

    # (T, B_pad) -> (B, T, 1); drop padded rows.
    return jnp.transpose(out_tb, (1, 0))[:B, :, None]


def init_params(key, hidden_size=32, input_size=1):
    """Deterministic init matching PyTorch shapes (uniform +-1/sqrt(H))."""
    H, I = hidden_size, input_size
    k = 1.0 / jnp.sqrt(jnp.float32(H))
    ks = jax.random.split(key, 6)
    weight_ih = jax.random.uniform(ks[0], (4 * H, I), jnp.float32, -k, k)
    weight_hh = jax.random.uniform(ks[1], (4 * H, H), jnp.float32, -k, k)
    bias_ih = jax.random.uniform(ks[2], (4 * H,), jnp.float32, -k, k)
    bias_hh = jax.random.uniform(ks[3], (4 * H,), jnp.float32, -k, k)
    lin_w = jax.random.uniform(ks[4], (1, H), jnp.float32, -k, k)
    lin_b = jax.random.uniform(ks[5], (1,), jnp.float32, -k, k)

    # pre-transpose / combine for the kernel
    wih_t = weight_ih.T                                    # (I, 4H)
    whh_t = weight_hh.T                                    # (H, 4H)
    bias = (bias_ih + bias_hh).reshape(1, 4 * H)           # (1, 4H)
    wlin_row = lin_w                                       # (1, H)
    blin = lin_b.reshape(1, 1)                             # (1, 1)
    return (wih_t, whh_t, bias, wlin_row, blin)


def _reference(x_bti, params):
    """Pure-JAX reference (lax.scan) mirroring torch.nn.LSTM + Linear."""
    wih_t, whh_t, bias, wlin_row, blin = params
    H = whh_t.shape[0]
    B, T, I = x_bti.shape

    def cell(carry, x_t):
        h, c = carry
        gates = (jnp.dot(x_t, wih_t, precision=lax.Precision.HIGHEST)
                 + jnp.dot(h, whh_t, precision=lax.Precision.HIGHEST) + bias)
        i = jax.nn.sigmoid(gates[:, 0 * H:1 * H])
        f = jax.nn.sigmoid(gates[:, 1 * H:2 * H])
        g = jnp.tanh(gates[:, 2 * H:3 * H])
        o = jax.nn.sigmoid(gates[:, 3 * H:4 * H])
        c = f * c + i * g
        h = o * jnp.tanh(c)
        return (h, c), h

    h0 = jnp.zeros((B, H), jnp.float32)
    c0 = jnp.zeros((B, H), jnp.float32)
    _, hs = lax.scan(cell, (h0, c0), jnp.transpose(x_bti, (1, 0, 2)))  # (T,B,H)
    y = hs @ wlin_row.T + blin                                         # (T,B,1)
    return jnp.transpose(y, (1, 0, 2))


if __name__ == "__main__":
    B, T, I, H = 2, 8, 1, 32
    key = jax.random.PRNGKey(0)
    kx, kp = jax.random.split(key)
    x = jax.random.normal(kx, (B, T, I), jnp.float32)
    params = init_params(kp, hidden_size=H, input_size=I)

    out = lstm_whole_forward(x, params)
    out = jax.block_until_ready(out)

    ref = _reference(x, params)
    assert out.shape == (B, T, 1)
    assert jnp.allclose(out, ref, atol=1e-4, rtol=1e-4)

    print("KERNEL_OK")
</pallas_src>

<mosaic_0001>
module attributes {stable_mosaic.version = 11 : i64} {
  func.func @_lstm_whole_kernel(%arg0: memref<8x8x1xf32, #tpu.memory_space<vmem>>, %arg1: memref<1x128xf32, #tpu.memory_space<vmem>>, %arg2: memref<32x128xf32, #tpu.memory_space<vmem>>, %arg3: memref<1x128xf32, #tpu.memory_space<vmem>>, %arg4: memref<1x32xf32, #tpu.memory_space<vmem>>, %arg5: memref<1x1xf32, #tpu.memory_space<vmem>>, %arg6: memref<8x8xf32, #tpu.memory_space<vmem>>) attributes {dimension_semantics = [], scalar_prefetch = 0 : i64, scratch_operands = 0 : i64, tpu.core_type = #tpu.core_type<tc>} {
    %c0 = arith.constant 0 : index
    %c0_0 = arith.constant 0 : index
    %0 = vector.load %arg1[%c0, %c0_0] : memref<1x128xf32, #tpu.memory_space<vmem>>, vector<1x128xf32>
    %c0_1 = arith.constant 0 : index
    %c0_2 = arith.constant 0 : index
    %1 = vector.load %arg2[%c0_1, %c0_2] : memref<32x128xf32, #tpu.memory_space<vmem>>, vector<32x128xf32>
    %c0_3 = arith.constant 0 : index
    %c0_4 = arith.constant 0 : index
    %2 = vector.load %arg3[%c0_3, %c0_4] : memref<1x128xf32, #tpu.memory_space<vmem>>, vector<1x128xf32>
    %c0_5 = arith.constant 0 : index
    %c0_6 = arith.constant 0 : index
    %3 = vector.load %arg4[%c0_5, %c0_6] : memref<1x32xf32, #tpu.memory_space<vmem>>, vector<1x32xf32>
    %c0_7 = arith.constant 0 : index
    %c0_8 = arith.constant 0 : index
    %c0_9 = arith.constant 0 : index
    %4 = vector.load %arg0[%c0_7, %c0_8, %c0_9] : memref<8x8x1xf32, #tpu.memory_space<vmem>>, vector<8x8x1xf32>
    %5 = vector.shape_cast %4 : vector<8x8x1xf32> to vector<64x1xf32>
    %cst = arith.constant dense<0.000000e+00> : vector<64x128xf32>
    %6 = tpu.matmul %5, %0, %cst {dimension_numbers = #tpu.dot_dimension_numbers<[1], [0], [0], [1], [0, 0, 1, 1], [], []>, precision = #tpu.contract_precision<fp32>} : vector<64x1xf32>, vector<1x128xf32>, vector<64x128xf32> -> vector<64x128xf32>
    %7 = vector.shape_cast %6 : vector<64x128xf32> to vector<8x8x128xf32>
    %8 = vector.shape_cast %2 : vector<1x128xf32> to vector<1x1x128xf32>
    %9 = vector.broadcast %8 : vector<1x1x128xf32> to vector<8x8x128xf32>
    %10 = arith.addf %7, %9 : vector<8x8x128xf32>
    %11 = tpu.iota {dimensions = array<i32: 1>} : vector<8x128xi32>
    %c64_i32 = arith.constant 64 : i32
    %12 = vector.broadcast %c64_i32 : i32 to vector<8x128xi32>
    %13 = arith.cmpi sge, %11, %12 : vector<8x128xi32>
    %c96_i32 = arith.constant 96 : i32
    %14 = vector.broadcast %c96_i32 : i32 to vector<8x128xi32>
    %15 = arith.cmpi slt, %11, %14 : vector<8x128xi32>
    %16 = arith.andi %13, %15 : vector<8x128xi1>
    %cst_10 = arith.constant 1.000000e+00 : f32
    %cst_11 = arith.constant 5.000000e-01 : f32
    %17 = vector.broadcast %cst_10 : f32 to vector<8x128xf32>
    %18 = vector.broadcast %cst_11 : f32 to vector<8x128xf32>
    %19 = arith.select %16, %17, %18 : vector<8x128xi1>, vector<8x128xf32>
    %cst_12 = arith.constant 0.000000e+00 : f32
    %cst_13 = arith.constant 5.000000e-01 : f32
    %20 = vector.broadcast %cst_12 : f32 to vector<8x128xf32>
    %21 = vector.broadcast %cst_13 : f32 to vector<8x128xf32>
    %22 = arith.select %16, %20, %21 : vector<8x128xi1>, vector<8x128xf32>
    %cst_14 = arith.constant 0.000000e+00 : f32
    %23 = vector.broadcast %cst_14 : f32 to vector<8x32xf32>
    %cst_15 = arith.constant 0.000000e+00 : f32
    %24 = vector.broadcast %cst_15 : f32 to vector<8x32xf32>
    %25 = vector.extract_strided_slice %10 {offsets = [0, 0, 0], sizes = [1, 8, 128], strides = [1, 1, 1]} : vector<8x8x128xf32> to vector<1x8x128xf32>
    %26 = vector.shape_cast %25 : vector<1x8x128xf32> to vector<8x128xf32>
    %cst_16 = arith.constant dense<0.000000e+00> : vector<8x128xf32>
    %27 = tpu.matmul %23, %1, %cst_16 {dimension_numbers = #tpu.dot_dimension_numbers<[1], [0], [0], [1], [0, 0, 1, 1], [], []>, precision = #tpu.contract_precision<fp32>} : vector<8x32xf32>, vector<32x128xf32>, vector<8x128xf32> -> vector<8x128xf32>
    %28 = arith.addf %26, %27 : vector<8x128xf32>
    %29 = arith.mulf %28, %19 : vector<8x128xf32>
    %30 = math.tanh %29 : vector<8x128xf32>
    %31 = arith.mulf %19, %30 : vector<8x128xf32>
    %32 = arith.addf %31, %22 : vector<8x128xf32>
    %33 = vector.extract_strided_slice %32 {offsets = [0, 0], sizes = [8, 32], strides = [1, 1]} : vector<8x128xf32> to vector<8x32xf32>
    %34 = vector.extract_strided_slice %32 {offsets = [0, 32], sizes = [8, 32], strides = [1, 1]} : vector<8x128xf32> to vector<8x32xf32>
    %35 = vector.extract_strided_slice %32 {offsets = [0, 64], sizes = [8, 32], strides = [1, 1]} : vector<8x128xf32> to vector<8x32xf32>
    %36 = vector.extract_strided_slice %32 {offsets = [0, 96], sizes = [8, 32], strides = [1, 1]} : vector<8x128xf32> to vector<8x32xf32>
    %37 = arith.mulf %34, %24 : vector<8x32xf32>
    %38 = arith.mulf %33, %35 : vector<8x32xf32>
    %39 = arith.addf %37, %38 : vector<8x32xf32>
    %40 = math.tanh %39 : vector<8x32xf32>
    %41 = arith.mulf %36, %40 : vector<8x32xf32>
    %42 = vector.extract_strided_slice %10 {offsets = [1, 0, 0], sizes = [1, 8, 128], strides = [1, 1, 1]} : vector<8x8x128xf32> to vector<1x8x128xf32>
    %43 = vector.shape_cast %42 : vector<1x8x128xf32> to vector<8x128xf32>
    %cst_17 = arith.constant dense<0.000000e+00> : vector<8x128xf32>
    %44 = tpu.matmul %41, %1, %cst_17 {dimension_numbers = #tpu.dot_dimension_numbers<[1], [0], [0], [1], [0, 0, 1, 1], [], []>, precision = #tpu.contract_precision<fp32>} : vector<8x32xf32>, vector<32x128xf32>, vector<8x128xf32> -> vector<8x128xf32>
    %45 = arith.addf %43, %44 : vector<8x128xf32>
    %46 = arith.mulf %45, %19 : vector<8x128xf32>
    %47 = math.tanh %46 : vector<8x128xf32>
    %48 = arith.mulf %19, %47 : vector<8x128xf32>
    %49 = arith.addf %48, %22 : vector<8x128xf32>
    %50 = vector.extract_strided_slice %49 {offsets = [0, 0], sizes = [8, 32], strides = [1, 1]} : vector<8x128xf32> to vector<8x32xf32>
    %51 = vector.extract_strided_slice %49 {offsets = [0, 32], sizes = [8, 32], strides = [1, 1]} : vector<8x128xf32> to vector<8x32xf32>
    %52 = vector.extract_strided_slice %49 {offsets = [0, 64], sizes = [8, 32], strides = [1, 1]} : vector<8x128xf32> to vector<8x32xf32>
    %53 = vector.extract_strided_slice %49 {offsets = [0, 96], sizes = [8, 32], strides = [1, 1]} : vector<8x128xf32> to vector<8x32xf32>
    %54 = arith.mulf %51, %39 : vector<8x32xf32>
    %55 = arith.mulf %50, %52 : vector<8x32xf32>
    %56 = arith.addf %54, %55 : vector<8x32xf32>
    %57 = math.tanh %56 : vector<8x32xf32>
    %58 = arith.mulf %53, %57 : vector<8x32xf32>
    %59 = vector.extract_strided_slice %10 {offsets = [2, 0, 0], sizes = [1, 8, 128], strides = [1, 1, 1]} : vector<8x8x128xf32> to vector<1x8x128xf32>
    %60 = vector.shape_cast %59 : vector<1x8x128xf32> to vector<8x128xf32>
    %cst_18 = arith.constant dense<0.000000e+00> : vector<8x128xf32>
    %61 = tpu.matmul %58, %1, %cst_18 {dimension_numbers = #tpu.dot_dimension_numbers<[1], [0], [0], [1], [0, 0, 1, 1], [], []>, precision = #tpu.contract_precision<fp32>} : vector<8x32xf32>, vector<32x128xf32>, vector<8x128xf32> -> vector<8x128xf32>
    %62 = arith.addf %60, %61 : vector<8x128xf32>
    %63 = arith.mulf %62, %19 : vector<8x128xf32>
    %64 = math.tanh %63 : vector<8x128xf32>
    %65 = arith.mulf %19, %64 : vector<8x128xf32>
    %66 = arith.addf %65, %22 : vector<8x128xf32>
    %67 = vector.extract_strided_slice %66 {offsets = [0, 0], sizes = [8, 32], strides = [1, 1]} : vector<8x128xf32> to vector<8x32xf32>
    %68 = vector.extract_strided_slice %66 {offsets = [0, 32], sizes = [8, 32], strides = [1, 1]} : vector<8x128xf32> to vector<8x32xf32>
    %69 = vector.extract_strided_slice %66 {offsets = [0, 64], sizes = [8, 32], strides = [1, 1]} : vector<8x128xf32> to vector<8x32xf32>
    %70 = vector.extract_strided_slice %66 {offsets = [0, 96], sizes = [8, 32], strides = [1, 1]} : vector<8x128xf32> to vector<8x32xf32>
    %71 = arith.mulf %68, %56 : vector<8x32xf32>
    %72 = arith.mulf %67, %69 : vector<8x32xf32>
    %73 = arith.addf %71, %72 : vector<8x32xf32>
    %74 = math.tanh %73 : vector<8x32xf32>
    %75 = arith.mulf %70, %74 : vector<8x32xf32>
    %76 = vector.extract_strided_slice %10 {offsets = [3, 0, 0], sizes = [1, 8, 128], strides = [1, 1, 1]} : vector<8x8x128xf32> to vector<1x8x128xf32>
    %77 = vector.shape_cast %76 : vector<1x8x128xf32> to vector<8x128xf32>
    %cst_19 = arith.constant dense<0.000000e+00> : vector<8x128xf32>
    %78 = tpu.matmul %75, %1, %cst_19 {dimension_numbers = #tpu.dot_dimension_numbers<[1], [0], [0], [1], [0, 0, 1, 1], [], []>, precision = #tpu.contract_precision<fp32>} : vector<8x32xf32>, vector<32x128xf32>, vector<8x128xf32> -> vector<8x128xf32>
    %79 = arith.addf %77, %78 : vector<8x128xf32>
    %80 = arith.mulf %79, %19 : vector<8x128xf32>
    %81 = math.tanh %80 : vector<8x128xf32>
    %82 = arith.mulf %19, %81 : vector<8x128xf32>
    %83 = arith.addf %82, %22 : vector<8x128xf32>
    %84 = vector.extract_strided_slice %83 {offsets = [0, 0], sizes = [8, 32], strides = [1, 1]} : vector<8x128xf32> to vector<8x32xf32>
    %85 = vector.extract_strided_slice %83 {offsets = [0, 32], sizes = [8, 32], strides = [1, 1]} : vector<8x128xf32> to vector<8x32xf32>
    %86 = vector.extract_strided_slice %83 {offsets = [0, 64], sizes = [8, 32], strides = [1, 1]} : vector<8x128xf32> to vector<8x32xf32>
    %87 = vector.extract_strided_slice %83 {offsets = [0, 96], sizes = [8, 32], strides = [1, 1]} : vector<8x128xf32> to vector<8x32xf32>
    %88 = arith.mulf %85, %73 : vector<8x32xf32>
    %89 = arith.mulf %84, %86 : vector<8x32xf32>
    %90 = arith.addf %88, %89 : vector<8x32xf32>
    %91 = math.tanh %90 : vector<8x32xf32>
    %92 = arith.mulf %87, %91 : vector<8x32xf32>
    %93 = vector.extract_strided_slice %10 {offsets = [4, 0, 0], sizes = [1, 8, 128], strides = [1, 1, 1]} : vector<8x8x128xf32> to vector<1x8x128xf32>
    %94 = vector.shape_cast %93 : vector<1x8x128xf32> to vector<8x128xf32>
    %cst_20 = arith.constant dense<0.000000e+00> : vector<8x128xf32>
    %95 = tpu.matmul %92, %1, %cst_20 {dimension_numbers = #tpu.dot_dimension_numbers<[1], [0], [0], [1], [0, 0, 1, 1], [], []>, precision = #tpu.contract_precision<fp32>} : vector<8x32xf32>, vector<32x128xf32>, vector<8x128xf32> -> vector<8x128xf32>
    %96 = arith.addf %94, %95 : vector<8x128xf32>
    %97 = arith.mulf %96, %19 : vector<8x128xf32>
    %98 = math.tanh %97 : vector<8x128xf32>
    %99 = arith.mulf %19, %98 : vector<8x128xf32>
    %100 = arith.addf %99, %22 : vector<8x128xf32>
    %101 = vector.extract_strided_slice %100 {offsets = [0, 0], sizes = [8, 32], strides = [1, 1]} : vector<8x128xf32> to vector<8x32xf32>
    %102 = vector.extract_strided_slice %100 {offsets = [0, 32], sizes = [8, 32], strides = [1, 1]} : vector<8x128xf32> to vector<8x32xf32>
    %103 = vector.extract_strided_slice %100 {offsets = [0, 64], sizes = [8, 32], strides = [1, 1]} : vector<8x128xf32> to vector<8x32xf32>
    %104 = vector.extract_strided_slice %100 {offsets = [0, 96], sizes = [8, 32], strides = [1, 1]} : vector<8x128xf32> to vector<8x32xf32>
    %105 = arith.mulf %102, %90 : vector<8x32xf32>
    %106 = arith.mulf %101, %103 : vector<8x32xf32>
    %107 = arith.addf %105, %106 : vector<8x32xf32>
    %108 = math.tanh %107 : vector<8x32xf32>
    %109 = arith.mulf %104, %108 : vector<8x32xf32>
    %110 = vector.extract_strided_slice %10 {offsets = [5, 0, 0], sizes = [1, 8, 128], strides = [1, 1, 1]} : vector<8x8x128xf32> to vector<1x8x128xf32>
    %111 = vector.shape_cast %110 : vector<1x8x128xf32> to vector<8x128xf32>
    %cst_21 = arith.constant dense<0.000000e+00> : vector<8x128xf32>
    %112 = tpu.matmul %109, %1, %cst_21 {dimension_numbers = #tpu.dot_dimension_numbers<[1], [0], [0], [1], [0, 0, 1, 1], [], []>, precision = #tpu.contract_precision<fp32>} : vector<8x32xf32>, vector<32x128xf32>, vector<8x128xf32> -> vector<8x128xf32>
    %113 = arith.addf %111, %112 : vector<8x128xf32>
    %114 = arith.mulf %113, %19 : vector<8x128xf32>
    %115 = math.tanh %114 : vector<8x128xf32>
    %116 = arith.mulf %19, %115 : vector<8x128xf32>
    %117 = arith.addf %116, %22 : vector<8x128xf32>
    %118 = vector.extract_strided_slice %117 {offsets = [0, 0], sizes = [8, 32], strides = [1, 1]} : vector<8x128xf32> to vector<8x32xf32>
    %119 = vector.extract_strided_slice %117 {offsets = [0, 32], sizes = [8, 32], strides = [1, 1]} : vector<8x128xf32> to vector<8x32xf32>
    %120 = vector.extract_strided_slice %117 {offsets = [0, 64], sizes = [8, 32], strides = [1, 1]} : vector<8x128xf32> to vector<8x32xf32>
    %121 = vector.extract_strided_slice %117 {offsets = [0, 96], sizes = [8, 32], strides = [1, 1]} : vector<8x128xf32> to vector<8x32xf32>
    %122 = arith.mulf %119, %107 : vector<8x32xf32>
    %123 = arith.mulf %118, %120 : vector<8x32xf32>
    %124 = arith.addf %122, %123 : vector<8x32xf32>
    %125 = math.tanh %124 : vector<8x32xf32>
    %126 = arith.mulf %121, %125 : vector<8x32xf32>
    %127 = vector.extract_strided_slice %10 {offsets = [6, 0, 0], sizes = [1, 8, 128], strides = [1, 1, 1]} : vector<8x8x128xf32> to vector<1x8x128xf32>
    %128 = vector.shape_cast %127 : vector<1x8x128xf32> to vector<8x128xf32>
    %cst_22 = arith.constant dense<0.000000e+00> : vector<8x128xf32>
    %129 = tpu.matmul %126, %1, %cst_22 {dimension_numbers = #tpu.dot_dimension_numbers<[1], [0], [0], [1], [0, 0, 1, 1], [], []>, precision = #tpu.contract_precision<fp32>} : vector<8x32xf32>, vector<32x128xf32>, vector<8x128xf32> -> vector<8x128xf32>
    %130 = arith.addf %128, %129 : vector<8x128xf32>
    %131 = arith.mulf %130, %19 : vector<8x128xf32>
    %132 = math.tanh %131 : vector<8x128xf32>
    %133 = arith.mulf %19, %132 : vector<8x128xf32>
    %134 = arith.addf %133, %22 : vector<8x128xf32>
    %135 = vector.extract_strided_slice %134 {offsets = [0, 0], sizes = [8, 32], strides = [1, 1]} : vector<8x128xf32> to vector<8x32xf32>
    %136 = vector.extract_strided_slice %134 {offsets = [0, 32], sizes = [8, 32], strides = [1, 1]} : vector<8x128xf32> to vector<8x32xf32>
    %137 = vector.extract_strided_slice %134 {offsets = [0, 64], sizes = [8, 32], strides = [1, 1]} : vector<8x128xf32> to vector<8x32xf32>
    %138 = vector.extract_strided_slice %134 {offsets = [0, 96], sizes = [8, 32], strides = [1, 1]} : vector<8x128xf32> to vector<8x32xf32>
    %139 = arith.mulf %136, %124 : vector<8x32xf32>
    %140 = arith.mulf %135, %137 : vector<8x32xf32>
    %141 = arith.addf %139, %140 : vector<8x32xf32>
    %142 = math.tanh %141 : vector<8x32xf32>
    %143 = arith.mulf %138, %142 : vector<8x32xf32>
    %144 = vector.extract_strided_slice %10 {offsets = [7, 0, 0], sizes = [1, 8, 128], strides = [1, 1, 1]} : vector<8x8x128xf32> to vector<1x8x128xf32>
    %145 = vector.shape_cast %144 : vector<1x8x128xf32> to vector<8x128xf32>
    %cst_23 = arith.constant dense<0.000000e+00> : vector<8x128xf32>
    %146 = tpu.matmul %143, %1, %cst_23 {dimension_numbers = #tpu.dot_dimension_numbers<[1], [0], [0], [1], [0, 0, 1, 1], [], []>, precision = #tpu.contract_precision<fp32>} : vector<8x32xf32>, vector<32x128xf32>, vector<8x128xf32> -> vector<8x128xf32>
    %147 = arith.addf %145, %146 : vector<8x128xf32>
    %148 = arith.mulf %147, %19 : vector<8x128xf32>
    %149 = math.tanh %148 : vector<8x128xf32>
    %150 = arith.mulf %19, %149 : vector<8x128xf32>
    %151 = arith.addf %150, %22 : vector<8x128xf32>
    %152 = vector.extract_strided_slice %151 {offsets = [0, 0], sizes = [8, 32], strides = [1, 1]} : vector<8x128xf32> to vector<8x32xf32>
    %153 = vector.extract_strided_slice %151 {offsets = [0, 32], sizes = [8, 32], strides = [1, 1]} : vector<8x128xf32> to vector<8x32xf32>
    %154 = vector.extract_strided_slice %151 {offsets = [0, 64], sizes = [8, 32], strides = [1, 1]} : vector<8x128xf32> to vector<8x32xf32>
    %155 = vector.extract_strided_slice %151 {offsets = [0, 96], sizes = [8, 32], strides = [1, 1]} : vector<8x128xf32> to vector<8x32xf32>
    %156 = arith.mulf %153, %141 : vector<8x32xf32>
    %157 = arith.mulf %152, %154 : vector<8x32xf32>
    %158 = arith.addf %156, %157 : vector<8x32xf32>
    %159 = math.tanh %158 : vector<8x32xf32>
    %160 = arith.mulf %155, %159 : vector<8x32xf32>
    %161 = vector.shape_cast %41 : vector<8x32xf32> to vector<1x8x32xf32>
    %162 = vector.shape_cast %58 : vector<8x32xf32> to vector<1x8x32xf32>
    %163 = vector.shape_cast %75 : vector<8x32xf32> to vector<1x8x32xf32>
    %164 = vector.shape_cast %92 : vector<8x32xf32> to vector<1x8x32xf32>
    %165 = vector.shape_cast %109 : vector<8x32xf32> to vector<1x8x32xf32>
    %166 = vector.shape_cast %126 : vector<8x32xf32> to vector<1x8x32xf32>
    %167 = vector.shape_cast %143 : vector<8x32xf32> to vector<1x8x32xf32>
    %168 = vector.shape_cast %160 : vector<8x32xf32> to vector<1x8x32xf32>
    %169 = tpu.concatenate %161, %162, %163, %164, %165, %166, %167, %168 in 0 : vector<1x8x32xf32>, vector<1x8x32xf32>, vector<1x8x32xf32>, vector<1x8x32xf32>, vector<1x8x32xf32>, vector<1x8x32xf32>, vector<1x8x32xf32>, vector<1x8x32xf32> -> vector<8x8x32xf32>
    %170 = vector.shape_cast %3 : vector<1x32xf32> to vector<1x1x32xf32>
    %171 = vector.broadcast %170 : vector<1x1x32xf32> to vector<8x8x32xf32>
    %172 = arith.mulf %169, %171 : vector<8x8x32xf32>
    %cst_24 = arith.constant dense<0.000000e+00> : vector<8x8xf32>
    %173 = vector.multi_reduction <add>, %172, %cst_24 [2] : vector<8x8x32xf32> to vector<8x8xf32>
    %c0_25 = arith.constant 0 : index
    %c0_26 = arith.constant 0 : index
    %174 = vector.load %arg5[%c0_25, %c0_26] : memref<1x1xf32, #tpu.memory_space<vmem>>, vector<1x1xf32>
    %175 = vector.broadcast %174 : vector<1x1xf32> to vector<8x8xf32>
    %176 = arith.addf %173, %175 : vector<8x8xf32>
    %c0_27 = arith.constant 0 : index
    %c0_28 = arith.constant 0 : index
    %177 = vector.load %arg6[%c0_27, %c0_28] : memref<8x8xf32, #tpu.memory_space<vmem>>, vector<8x8xf32>
    tpu.vector_store %arg6[%c0_27, %c0_28], %176 {strides = array<i32>} : memref<8x8xf32, #tpu.memory_space<vmem>>, vector<8x8xf32>,
    return
  }
}

</mosaic_0001>

<llo_original>
// kernel: tpu_custom_call.1
$region0: #{tpu_custom_call.1}
  #allocation0 [shape = 'u32[]', space=smem, size = 0x4, offset = 0x4, fixed_abs, tag = 'smem constant byte address 0x4 - core index']
  #allocation1 [shape = 'u32[144,128]{1,0:T(1,128)}', space=vmem, size = 0x12000, scoped, tag = 'internal scratch']
  #allocation2 [shape = 'f32[1,1]{1,0:T(1,128)S(1)}', space=vmem, size = 0x200, scoped, tag = 'scoped memory for tpu_custom_call.1']
  %s0 = inlined_call_operand.vmem [shape: f32[8,8,1], index: 0, kind: input, shape index: {}]
  %s1 = inlined_call_operand.vmem [shape: f32[1,128], index: 1, kind: input, shape index: {}]
  %s2 = inlined_call_operand.vmem [shape: f32[32,128], index: 2, kind: input, shape index: {}]
  %s3 = inlined_call_operand.vmem [shape: f32[1,128], index: 3, kind: input, shape index: {}]
  %s4 = inlined_call_operand.vmem [shape: f32[1,32], index: 4, kind: input, shape index: {}]
  %s5 = inlined_call_operand.<no memory space> [shape: f32[1,1], index: 5, kind: input, shape index: {}]
  %s6 = inlined_call_operand.hbm [shape: f32[8,8], index: 6, kind: output, shape index: {}]
  %s7 = sld [smem:[#allocation0]]
  $region34: #{tpu_custom_call.1} parent=0
    _
  %s9 = ssub.s32 1, %s7
  %s10 = scalar_select 0, %s9, %s7
  %v11 = vstv %s5
  %12 = vst [vmem:[#allocation2] sm:$0x1] %v11
  $region1: #{tpu_custom_call.1} parent=0
    #allocation3 [shape = 'u8[4096]{0}', space=vmem, size = 0x1000, scoped, tag = 'output window, operand 0, single buffered']
    #allocation4 [shape = 's32[1]{0}', space=sflag, size = 0x4, scoped, tag = 'scoped memory for tpu_custom_call.1']
    %13 = vsyncpa [#allocation4], 0
    // Predicated region
    $region2: #{tpu_custom_call.1} parent=1 // pred_check
      _
    $region3: #{tpu_custom_call.1} parent=1 // pred_check_branch
      %15 = sbr.rel (0) target = $region5
    $region4: #{tpu_custom_call.1} parent=1 // pred_region
      _
    $region5: #{tpu_custom_call.1} parent=1 // pred_fallthru
      _
    // Predicated region
    $region6: #{tpu_custom_call.1} parent=1 // pred_check
      _
    $region7: #{tpu_custom_call.1} parent=1 // pred_check_branch
      %17 = sbr.rel (0) target = $region9
    $region8: #{tpu_custom_call.1} parent=1 // pred_region
      _
    $region9: #{tpu_custom_call.1} parent=1 // pred_fallthru
      _
    // Predicated region
    $region10: #{tpu_custom_call.1} parent=1 // pred_check
      _
    $region11: #{tpu_custom_call.1} parent=1 // pred_check_branch
      %19 = sbr.rel (0) target = $region13
    $region12: #{tpu_custom_call.1} parent=1 // pred_region
      _
    $region13: #{tpu_custom_call.1} parent=1 // pred_fallthru
      _
    // Predicated region
    $region14: #{tpu_custom_call.1} parent=1 // pred_check
      _
    $region15: #{tpu_custom_call.1} parent=1 // pred_check_branch
      %21 = sbr.rel (0) target = $region17
    $region16: #{tpu_custom_call.1} parent=1 // pred_region
      _
    $region17: #{tpu_custom_call.1} parent=1 // pred_fallthru
      _
    // Predicated region
    $region18: #{tpu_custom_call.1} parent=1 // pred_check
      _
    $region19: #{tpu_custom_call.1} parent=1 // pred_check_branch
      %23 = sbr.rel (0) target = $region21
    $region20: #{tpu_custom_call.1} parent=1 // pred_region
      _
    $region21: #{tpu_custom_call.1} parent=1 // pred_fallthru
      _
    // Predicated region
    $region22: #{tpu_custom_call.1} parent=1 // pred_check
      _
    $region23: #{tpu_custom_call.1} parent=1 // pred_check_branch
      %25 = sbr.rel (0) target = $region25
    $region24: #{tpu_custom_call.1} parent=1 // pred_region
      _
    $region25: #{tpu_custom_call.1} parent=1 // pred_fallthru
      _
    %v26 = vld [vmem:[%s1] sm:$0x1]
    %v27 = vld [vmem:[%s2] sm:$0xff]
    %v28 = vld [vmem:[%s2 + $0x8] sm:$0xff]
    %v29 = vld [vmem:[%s2 + $0x10] sm:$0xff]
    %v30 = vld [vmem:[%s2 + $0x18] sm:$0xff]
    %v31 = vld [vmem:[%s3] sm:$0x1]
    %v32 = vld [vmem:[%s4] sm:$0x1]
    %v33 = vld [vmem:[%s0] sm:$0xff]
    %v34 = vld [vmem:[%s0 + $0x8] sm:$0xff]
    %v35 = vld [vmem:[%s0 + $0x10] sm:$0xff]
    %v36 = vld [vmem:[%s0 + $0x18] sm:$0xff]
    %v37 = vld [vmem:[%s0 + $0x20] sm:$0xff]
    %v38 = vld [vmem:[%s0 + $0x28] sm:$0xff]
    %v39 = vld [vmem:[%s0 + $0x30] sm:$0xff]
    %v40 = vld [vmem:[%s0 + $0x38] sm:$0xff]
    %vm41 = vcmask 7168
    %v43 = vsel %vm41, %v33, 0
    %v46 = vsel %vm41, %v34, 0
    %v49 = vsel %vm41, %v35, 0
    %v52 = vsel %vm41, %v36, 0
    %v55 = vsel %vm41, %v37, 0
    %v58 = vsel %vm41, %v38, 0
    %v61 = vsel %vm41, %v39, 0
    %v64 = vsel %vm41, %v40, 0
    %vm66 = vcmask 1040384
    %v68 = vsel %vm66, %v26, 0
    %70 = vmatprep.subr.mxu0 0.0
    %v71 = vand.u32 %v68, 4294901760
    %72 = vmatpush1.msra.mxu0 %v71
    %73 = vmatprep.subr.mxu0 0.0
    %74 = vmatpush1.msra.mxu0 0.0
    %75 = vmatprep.subr.mxu0 0.0
    %76 = vmatpush1.msra.mxu0 0.0
    %77 = vmatprep.subr.mxu0 0.0
    %78 = vmatpush1.msra.mxu0 0.0
    %79 = vmatprep.subr.mxu0 0.0
    %80 = vmatpush1.msra.mxu0 0.0
    %81 = vmatprep.subr.mxu0 0.0
    %82 = vmatpush1.msra.mxu0 0.0
    %83 = vmatprep.subr.mxu0 0.0
    %84 = vmatpush1.msra.mxu0 0.0
    %85 = vmatprep.subr.mxu0 0.0
    %86 = vmatpush1.msra.mxu0 0.0
    %87 = vmatprep.subr.mxu0 0.0
    %88 = vmatpush1.msra.mxu0 0.0
    %89 = vmatprep.subr.mxu0 0.0
    %90 = vmatpush1.msra.mxu0 0.0
    %91 = vmatprep.subr.mxu0 0.0
    %92 = vmatpush1.msra.mxu0 0.0
    %93 = vmatprep.subr.mxu0 0.0
    %94 = vmatpush1.msra.mxu0 0.0
    %95 = vmatprep.subr.mxu0 0.0
    %96 = vmatpush1.msra.mxu0 0.0
    %97 = vmatprep.subr.mxu0 0.0
    %98 = vmatpush1.msra.mxu0 0.0
    %99 = vmatprep.subr.mxu0 0.0
    %100 = vmatpush1.msra.mxu0 0.0
    %101 = vmatprep.subr.mxu0 0.0
    %102 = vmatpush1.msra.mxu0 0.0
    %103 = vmatprep.subr.mxu0 0.0
    %104 = vmatpush1.msra.mxu0 0.0
    %105 = vmatprep.subr.mxu0 0.0
    %106 = vmatpush1.msra.mxu0 0.0
    %107 = vmatprep.subr.mxu0 0.0
    %108 = vmatpush1.msra.mxu0 0.0
    %109 = vmatprep.subr.mxu0 0.0
    %110 = vmatpush1.msra.mxu0 0.0
    %111 = vmatprep.subr.mxu0 0.0
    %112 = vmatpush1.msra.mxu0 0.0
    %113 = vmatprep.subr.mxu0 0.0
    %114 = vmatpush1.msra.mxu0 0.0
    %115 = vmatprep.subr.mxu0 0.0
    %116 = vmatpush1.msra.mxu0 0.0
    %117 = vmatprep.subr.mxu0 0.0
    %118 = vmatpush1.msra.mxu0 0.0
    %119 = vmatprep.subr.mxu0 0.0
    %120 = vmatpush1.msra.mxu0 0.0
    %121 = vmatprep.subr.mxu0 0.0
    %122 = vmatpush1.msra.mxu0 0.0
    %123 = vmatprep.subr.mxu0 0.0
    %124 = vmatpush1.msra.mxu0 0.0
    %125 = vmatprep.subr.mxu0 0.0
    %126 = vmatpush1.msra.mxu0 0.0
    %127 = vmatprep.subr.mxu0 0.0
    %128 = vmatpush1.msra.mxu0 0.0
    %129 = vmatprep.subr.mxu0 0.0
    %130 = vmatpush1.msra.mxu0 0.0
    %131 = vmatprep.subr.mxu0 0.0
    %132 = vmatpush1.msra.mxu0 0.0
    %133 = vmatprep.subr.mxu0 0.0
    %134 = vmatpush1.msra.mxu0 0.0
    %135 = vmatprep.mubr.f32.mxu0 0.0
    %v136 = vand.u32 %v43, 4294901760
    %v137 = vsub.f32 %v43, %v136
    %v138 = vand.u32 %v137, 4294901760
    %v139 = vsub.f32 %v137, %v138
    %v140 = vand.u32 %v139, 4294901760
    %141 = vmatmul.mubr.f32.gmra.mrb[0].mxu0 %v140
    %v142 = vpop.f32.mrb[0].mxu0
    %v143 = vadd.f32 0.0, %v142
    %v144 = vpop.f32.mrb[0].mxu0
    %145 = vmatprep.mubr.f32.mxu0 0.0
    %v146 = vand.u32 %v46, 4294901760
    %v147 = vsub.f32 %v46, %v146
    %v148 = vand.u32 %v147, 4294901760
    %v149 = vsub.f32 %v147, %v148
    %v150 = vand.u32 %v149, 4294901760
    %151 = vmatmul.mubr.f32.gmra.mrb[0].mxu0 %v150
    %v152 = vpop.f32.mrb[0].mxu0
    %v153 = vadd.f32 0.0, %v152
    %v154 = vpop.f32.mrb[0].mxu0
    %155 = vmatprep.mubr.f32.mxu0 0.0
    %v156 = vand.u32 %v49, 4294901760
    %v157 = vsub.f32 %v49, %v156
    %v158 = vand.u32 %v157, 4294901760
    %v159 = vsub.f32 %v157, %v158
    %v160 = vand.u32 %v159, 4294901760
    %161 = vmatmul.mubr.f32.gmra.mrb[0].mxu0 %v160
    %v162 = vpop.f32.mrb[0].mxu0
    %v163 = vadd.f32 0.0, %v162
    %v164 = vpop.f32.mrb[0].mxu0
    %165 = vmatprep.mubr.f32.mxu0 0.0
    %v166 = vand.u32 %v52, 4294901760
    %v167 = vsub.f32 %v52, %v166
    %v168 = vand.u32 %v167, 4294901760
    %v169 = vsub.f32 %v167, %v168
    %v170 = vand.u32 %v169, 4294901760
    %171 = vmatmul.mubr.f32.gmra.mrb[0].mxu0 %v170
    %v172 = vpop.f32.mrb[0].mxu0
    %v173 = vadd.f32 0.0, %v172
    %v174 = vpop.f32.mrb[0].mxu0
    %175 = vmatprep.mubr.f32.mxu0 0.0
    %v176 = vand.u32 %v55, 4294901760
    %v177 = vsub.f32 %v55, %v176
    %v178 = vand.u32 %v177, 4294901760
    %v179 = vsub.f32 %v177, %v178
    %v180 = vand.u32 %v179, 4294901760
    %181 = vmatmul.mubr.f32.gmra.mrb[0].mxu0 %v180
    %v182 = vpop.f32.mrb[0].mxu0
    %v183 = vadd.f32 0.0, %v182
    %v184 = vpop.f32.mrb[0].mxu0
    %185 = vmatprep.mubr.f32.mxu0 0.0
    %v186 = vand.u32 %v58, 4294901760
    %v187 = vsub.f32 %v58, %v186
    %v188 = vand.u32 %v187, 4294901760
    %v189 = vsub.f32 %v187, %v188
    %v190 = vand.u32 %v189, 4294901760
    %191 = vmatmul.mubr.f32.gmra.mrb[0].mxu0 %v190
    %v192 = vpop.f32.mrb[0].mxu0
    %v193 = vadd.f32 0.0, %v192
    %v194 = vpop.f32.mrb[0].mxu0
    %195 = vmatprep.mubr.f32.mxu0 0.0
    %v196 = vand.u32 %v61, 4294901760
    %v197 = vsub.f32 %v61, %v196
    %v198 = vand.u32 %v197, 4294901760
    %v199 = vsub.f32 %v197, %v198
    %v200 = vand.u32 %v199, 4294901760
    %201 = vmatmul.mubr.f32.gmra.mrb[0].mxu0 %v200
    %v202 = vpop.f32.mrb[0].mxu0
    %v203 = vadd.f32 0.0, %v202
    %v204 = vpop.f32.mrb[0].mxu0
    %205 = vmatprep.mubr.f32.mxu0 0.0
    %v206 = vand.u32 %v64, 4294901760
    %v207 = vsub.f32 %v64, %v206
    %v208 = vand.u32 %v207, 4294901760
    %v209 = vsub.f32 %v207, %v208
    %v210 = vand.u32 %v209, 4294901760
    %211 = vmatmul.mubr.f32.gmra.mrb[0].mxu0 %v210
    %v212 = vpop.f32.mrb[0].mxu0
    %v213 = vadd.f32 0.0, %v212
    %v214 = vpop.f32.mrb[0].mxu0
    %215 = vdwg.mxu0
    %216 = vmatprep.subr.mxu0 0.0
    %v217 = vand.u32 %v68, 4294901760
    %v218 = vsub.f32 %v68, %v217
    %v219 = vand.u32 %v218, 4294901760
    %v220 = vsub.f32 %v218, %v219
    %v221 = vand.u32 %v220, 4294901760
    %222 = vmatpush1.msra.mxu0 %v221
    %223 = vmatprep.subr.mxu0 0.0
    %224 = vmatpush1.msra.mxu0 0.0
    %225 = vmatprep.subr.mxu0 0.0
    %226 = vmatpush1.msra.mxu0 0.0
    %227 = vmatprep.subr.mxu0 0.0
    %228 = vmatpush1.msra.mxu0 0.0
    %229 = vmatprep.subr.mxu0 0.0
    %230 = vmatpush1.msra.mxu0 0.0
    %231 = vmatprep.subr.mxu0 0.0
    %232 = vmatpush1.msra.mxu0 0.0
    %233 = vmatprep.subr.mxu0 0.0
    %234 = vmatpush1.msra.mxu0 0.0
    %235 = vmatprep.subr.mxu0 0.0
    %236 = vmatpush1.msra.mxu0 0.0
    %237 = vmatprep.subr.mxu0 0.0
    %238 = vmatpush1.msra.mxu0 0.0
    %239 = vmatprep.subr.mxu0 0.0
    %240 = vmatpush1.msra.mxu0 0.0
    %241 = vmatprep.subr.mxu0 0.0
    %242 = vmatpush1.msra.mxu0 0.0
    %243 = vmatprep.subr.mxu0 0.0
    %244 = vmatpush1.msra.mxu0 0.0
    %245 = vmatprep.subr.mxu0 0.0
    %246 = vmatpush1.msra.mxu0 0.0
    %247 = vmatprep.subr.mxu0 0.0
    %248 = vmatpush1.msra.mxu0 0.0
    %249 = vmatprep.subr.mxu0 0.0
    %250 = vmatpush1.msra.mxu0 0.0
    %251 = vmatprep.subr.mxu0 0.0
    %252 = vmatpush1.msra.mxu0 0.0
    %253 = vmatprep.subr.mxu0 0.0
    %254 = vmatpush1.msra.mxu0 0.0
    %255 = vmatprep.subr.mxu0 0.0
    %256 = vmatpush1.msra.mxu0 0.0
    %257 = vmatprep.subr.mxu0 0.0
    %258 = vmatpush1.msra.mxu0 0.0
    %259 = vmatprep.subr.mxu0 0.0
    %260 = vmatpush1.msra.mxu0 0.0
    %261 = vmatprep.subr.mxu0 0.0
    %262 = vmatpush1.msra.mxu0 0.0
    %263 = vmatprep.subr.mxu0 0.0
    %264 = vmatpush1.msra.mxu0 0.0
    %265 = vmatprep.subr.mxu0 0.0
    %266 = vmatpush1.msra.mxu0 0.0
    %267 = vmatprep.subr.mxu0 0.0
    %268 = vmatpush1.msra.mxu0 0.0
    %269 = vmatprep.subr.mxu0 0.0
    %270 = vmatpush1.msra.mxu0 0.0
    %271 = vmatprep.subr.mxu0 0.0
    %272 = vmatpush1.msra.mxu0 0.0
    %273 = vmatprep.subr.mxu0 0.0
    %274 = vmatpush1.msra.mxu0 0.0
    %275 = vmatprep.subr.mxu0 0.0
    %276 = vmatpush1.msra.mxu0 0.0
    %277 = vmatprep.subr.mxu0 0.0
    %278 = vmatpush1.msra.mxu0 0.0
    %279 = vmatprep.subr.mxu0 0.0
    %280 = vmatpush1.msra.mxu0 0.0
    %281 = vmatprep.subr.mxu0 0.0
    %282 = vmatpush1.msra.mxu0 0.0
    %283 = vmatprep.subr.mxu0 0.0
    %284 = vmatpush1.msra.mxu0 0.0
    %285 = vmatprep.mubr.f32.mxu0 0.0
    %v286 = vand.u32 %v43, 4294901760
    %287 = vmatmul.mubr.f32.gmra.mrb[0].mxu0 %v286
    %v288 = vpop.f32.mrb[0].mxu0
    %v289 = vadd.f32 %v143, %v288
    %v290 = vpop.f32.mrb[0].mxu0
    %291 = vmatprep.mubr.f32.mxu0 0.0
    %v292 = vand.u32 %v46, 4294901760
    %293 = vmatmul.mubr.f32.gmra.mrb[0].mxu0 %v292
    %v294 = vpop.f32.mrb[0].mxu0
    %v295 = vadd.f32 %v153, %v294
    %v296 = vpop.f32.mrb[0].mxu0
    %297 = vmatprep.mubr.f32.mxu0 0.0
    %v298 = vand.u32 %v49, 4294901760
    %299 = vmatmul.mubr.f32.gmra.mrb[0].mxu0 %v298
    %v300 = vpop.f32.mrb[0].mxu0
    %v301 = vadd.f32 %v163, %v300
    %v302 = vpop.f32.mrb[0].mxu0
    %303 = vmatprep.mubr.f32.mxu0 0.0
    %v304 = vand.u32 %v52, 4294901760
    %305 = vmatmul.mubr.f32.gmra.mrb[0].mxu0 %v304
    %v306 = vpop.f32.mrb[0].mxu0
    %v307 = vadd.f32 %v173, %v306
    %v308 = vpop.f32.mrb[0].mxu0
    %309 = vmatprep.mubr.f32.mxu0 0.0
    %v310 = vand.u32 %v55, 4294901760
    %311 = vmatmul.mubr.f32.gmra.mrb[0].mxu0 %v310
    %v312 = vpop.f32.mrb[0].mxu0
    %v313 = vadd.f32 %v183, %v312
    %v314 = vpop.f32.mrb[0].mxu0
    %315 = vmatprep.mubr.f32.mxu0 0.0
    %v316 = vand.u32 %v58, 4294901760
    %317 = vmatmul.mubr.f32.gmra.mrb[0].mxu0 %v316
    %v318 = vpop.f32.mrb[0].mxu0
    %v319 = vadd.f32 %v193, %v318
    %v320 = vpop.f32.mrb[0].mxu0
    %321 = vmatprep.mubr.f32.mxu0 0.0
    %v322 = vand.u32 %v61, 4294901760
    %323 = vmatmul.mubr.f32.gmra.mrb[0].mxu0 %v322
    %v324 = vpop.f32.mrb[0].mxu0
    %v325 = vadd.f32 %v203, %v324
    %v326 = vpop.f32.mrb[0].mxu0
    %327 = vmatprep.mubr.f32.mxu0 0.0
    %v328 = vand.u32 %v64, 4294901760
    %329 = vmatmul.mubr.f32.gmra.mrb[0].mxu0 %v328
    %v330 = vpop.f32.mrb[0].mxu0
    %v331 = vadd.f32 %v213, %v330
    %v332 = vpop.f32.mrb[0].mxu0
    %333 = vdwg.mxu0
    %334 = vmatprep.subr.mxu0 0.0
    %v335 = vand.u32 %v68, 4294901760
    %v336 = vsub.f32 %v68, %v335
    %337 = vmatpush1.msra.mxu0 %v336
    %338 = vmatprep.subr.mxu0 0.0
    %339 = vmatpush1.msra.mxu0 0.0
    %340 = vmatprep.subr.mxu0 0.0
    %341 = vmatpush1.msra.mxu0 0.0
    %342 = vmatprep.subr.mxu0 0.0
    %343 = vmatpush1.msra.mxu0 0.0
    %344 = vmatprep.subr.mxu0 0.0
    %345 = vmatpush1.msra.mxu0 0.0
    %346 = vmatprep.subr.mxu0 0.0
    %347 = vmatpush1.msra.mxu0 0.0
    %348 = vmatprep.subr.mxu0 0.0
    %349 = vmatpush1.msra.mxu0 0.0
    %350 = vmatprep.subr.mxu0 0.0
    %351 = vmatpush1.msra.mxu0 0.0
    %352 = vmatprep.subr.mxu0 0.0
    %353 = vmatpush1.msra.mxu0 0.0
    %354 = vmatprep.subr.mxu0 0.0
    %355 = vmatpush1.msra.mxu0 0.0
    %356 = vmatprep.subr.mxu0 0.0
    %357 = vmatpush1.msra.mxu0 0.0
    %358 = vmatprep.subr.mxu0 0.0
    %359 = vmatpush1.msra.mxu0 0.0
    %360 = vmatprep.subr.mxu0 0.0
    %361 = vmatpush1.msra.mxu0 0.0
    %362 = vmatprep.subr.mxu0 0.0
    %363 = vmatpush1.msra.mxu0 0.0
    %364 = vmatprep.subr.mxu0 0.0
    %365 = vmatpush1.msra.mxu0 0.0
    %366 = vmatprep.subr.mxu0 0.0
    %367 = vmatpush1.msra.mxu0 0.0
    %368 = vmatprep.subr.mxu0 0.0
    %369 = vmatpush1.msra.mxu0 0.0
    %370 = vmatprep.subr.mxu0 0.0
    %371 = vmatpush1.msra.mxu0 0.0
    %372 = vmatprep.subr.mxu0 0.0
    %373 = vmatpush1.msra.mxu0 0.0
    %374 = vmatprep.subr.mxu0 0.0
    %375 = vmatpush1.msra.mxu0 0.0
    %376 = vmatprep.subr.mxu0 0.0
    %377 = vmatpush1.msra.mxu0 0.0
    %378 = vmatprep.subr.mxu0 0.0
    %379 = vmatpush1.msra.mxu0 0.0
    %380 = vmatprep.subr.mxu0 0.0
    %381 = vmatpush1.msra.mxu0 0.0
    %382 = vmatprep.subr.mxu0 0.0
    %383 = vmatpush1.msra.mxu0 0.0
    %384 = vmatprep.subr.mxu0 0.0
    %385 = vmatpush1.msra.mxu0 0.0
    %386 = vmatprep.subr.mxu0 0.0
    %387 = vmatpush1.msra.mxu0 0.0
    %388 = vmatprep.subr.mxu0 0.0
    %389 = vmatpush1.msra.mxu0 0.0
    %390 = vmatprep.subr.mxu0 0.0
    %391 = vmatpush1.msra.mxu0 0.0
    %392 = vmatprep.subr.mxu0 0.0
    %393 = vmatpush1.msra.mxu0 0.0
    %394 = vmatprep.subr.mxu0 0.0
    %395 = vmatpush1.msra.mxu0 0.0
    %396 = vmatprep.subr.mxu0 0.0
    %397 = vmatpush1.msra.mxu0 0.0
    %398 = vmatprep.subr.mxu0 0.0
    %399 = vmatpush1.msra.mxu0 0.0
    %400 = vmatprep.mubr.f32.mxu0 0.0
    %v401 = vand.u32 %v43, 4294901760
    %v402 = vsub.f32 %v43, %v401
    %403 = vmatmul.mubr.f32.gmra.mrb[0].mxu0 %v402
    %v404 = vpop.f32.mrb[0].mxu0
    %v405 = vadd.f32 %v289, %v404
    %v406 = vpop.f32.mrb[0].mxu0
    %407 = vmatprep.mubr.f32.mxu0 0.0
    %v408 = vand.u32 %v46, 4294901760
    %v409 = vsub.f32 %v46, %v408
    %410 = vmatmul.mubr.f32.gmra.mrb[0].mxu0 %v409
    %v411 = vpop.f32.mrb[0].mxu0
    %v412 = vadd.f32 %v295, %v411
    %v413 = vpop.f32.mrb[0].mxu0
    %414 = vmatprep.mubr.f32.mxu0 0.0
    %v415 = vand.u32 %v49, 4294901760
    %v416 = vsub.f32 %v49, %v415
    %417 = vmatmul.mubr.f32.gmra.mrb[0].mxu0 %v416
    %v418 = vpop.f32.mrb[0].mxu0
    %v419 = vadd.f32 %v301, %v418
    %v420 = vpop.f32.mrb[0].mxu0
    %421 = vmatprep.mubr.f32.mxu0 0.0
    %v422 = vand.u32 %v52, 4294901760
    %v423 = vsub.f32 %v52, %v422
    %424 = vmatmul.mubr.f32.gmra.mrb[0].mxu0 %v423
    %v425 = vpop.f32.mrb[0].mxu0
    %v426 = vadd.f32 %v307, %v425
    %v427 = vpop.f32.mrb[0].mxu0
    %428 = vmatprep.mubr.f32.mxu0 0.0
    %v429 = vand.u32 %v55, 4294901760
    %v430 = vsub.f32 %v55, %v429
    %431 = vmatmul.mubr.f32.gmra.mrb[0].mxu0 %v430
    %v432 = vpop.f32.mrb[0].mxu0
    %v433 = vadd.f32 %v313, %v432
    %v434 = vpop.f32.mrb[0].mxu0
    %435 = vmatprep.mubr.f32.mxu0 0.0
    %v436 = vand.u32 %v58, 4294901760
    %v437 = vsub.f32 %v58, %v436
    %438 = vmatmul.mubr.f32.gmra.mrb[0].mxu0 %v437
    %v439 = vpop.f32.mrb[0].mxu0
    %v440 = vadd.f32 %v319, %v439
    %v441 = vpop.f32.mrb[0].mxu0
    %442 = vmatprep.mubr.f32.mxu0 0.0
    %v443 = vand.u32 %v61, 4294901760
    %v444 = vsub.f32 %v61, %v443
    %445 = vmatmul.mubr.f32.gmra.mrb[0].mxu0 %v444
    %v446 = vpop.f32.mrb[0].mxu0
    %v447 = vadd.f32 %v325, %v446
    %v448 = vpop.f32.mrb[0].mxu0
    %449 = vmatprep.mubr.f32.mxu0 0.0
    %v450 = vand.u32 %v64, 4294901760
    %v451 = vsub.f32 %v64, %v450
    %452 = vmatmul.mubr.f32.gmra.mrb[0].mxu0 %v451
    %v453 = vpop.f32.mrb[0].mxu0
    %v454 = vadd.f32 %v331, %v453
    %v455 = vpop.f32.mrb[0].mxu0
    %456 = vdwg.mxu0
    %457 = vmatprep.subr.mxu0 0.0
    %v458 = vand.u32 %v68, 4294901760
    %459 = vmatpush1.msra.mxu0 %v458
    %460 = vmatprep.subr.mxu0 0.0
    %461 = vmatpush1.msra.mxu0 0.0
    %462 = vmatprep.subr.mxu0 0.0
    %463 = vmatpush1.msra.mxu0 0.0
    %464 = vmatprep.subr.mxu0 0.0
    %465 = vmatpush1.msra.mxu0 0.0
    %466 = vmatprep.subr.mxu0 0.0
    %467 = vmatpush1.msra.mxu0 0.0
    %468 = vmatprep.subr.mxu0 0.0
    %469 = vmatpush1.msra.mxu0 0.0
    %470 = vmatprep.subr.mxu0 0.0
    %471 = vmatpush1.msra.mxu0 0.0
    %472 = vmatprep.subr.mxu0 0.0
    %473 = vmatpush1.msra.mxu0 0.0
    %474 = vmatprep.subr.mxu0 0.0
    %475 = vmatpush1.msra.mxu0 0.0
    %476 = vmatprep.subr.mxu0 0.0
    %477 = vmatpush1.msra.mxu0 0.0
    %478 = vmatprep.subr.mxu0 0.0
    %479 = vmatpush1.msra.mxu0 0.0
    %480 = vmatprep.subr.mxu0 0.0
    %481 = vmatpush1.msra.mxu0 0.0
    %482 = vmatprep.subr.mxu0 0.0
    %483 = vmatpush1.msra.mxu0 0.0
    %484 = vmatprep.subr.mxu0 0.0
    %485 = vmatpush1.msra.mxu0 0.0
    %486 = vmatprep.subr.mxu0 0.0
    %487 = vmatpush1.msra.mxu0 0.0
    %488 = vmatprep.subr.mxu0 0.0
    %489 = vmatpush1.msra.mxu0 0.0
    %490 = vmatprep.subr.mxu0 0.0
    %491 = vmatpush1.msra.mxu0 0.0
    %492 = vmatprep.subr.mxu0 0.0
    %493 = vmatpush1.msra.mxu0 0.0
    %494 = vmatprep.subr.mxu0 0.0
    %495 = vmatpush1.msra.mxu0 0.0
    %496 = vmatprep.subr.mxu0 0.0
    %497 = vmatpush1.msra.mxu0 0.0
    %498 = vmatprep.subr.mxu0 0.0
    %499 = vmatpush1.msra.mxu0 0.0
    %500 = vmatprep.subr.mxu0 0.0
    %501 = vmatpush1.msra.mxu0 0.0
    %502 = vmatprep.subr.mxu0 0.0
    %503 = vmatpush1.msra.mxu0 0.0
    %504 = vmatprep.subr.mxu0 0.0
    %505 = vmatpush1.msra.mxu0 0.0
    %506 = vmatprep.subr.mxu0 0.0
    %507 = vmatpush1.msra.mxu0 0.0
    %508 = vmatprep.subr.mxu0 0.0
    %509 = vmatpush1.msra.mxu0 0.0
    %510 = vmatprep.subr.mxu0 0.0
    %511 = vmatpush1.msra.mxu0 0.0
    %512 = vmatprep.subr.mxu0 0.0
    %513 = vmatpush1.msra.mxu0 0.0
    %514 = vmatprep.subr.mxu0 0.0
    %515 = vmatpush1.msra.mxu0 0.0
    %516 = vmatprep.subr.mxu0 0.0
    %517 = vmatpush1.msra.mxu0 0.0
    %518 = vmatprep.subr.mxu0 0.0
    %519 = vmatpush1.msra.mxu0 0.0
    %520 = vmatprep.subr.mxu0 0.0
    %521 = vmatpush1.msra.mxu0 0.0
    %522 = vmatprep.mubr.f32.mxu0 0.0
    %v523 = vand.u32 %v43, 4294901760
    %v524 = vsub.f32 %v43, %v523
    %v525 = vand.u32 %v524, 4294901760
    %526 = vmatmul.mubr.f32.gmra.mrb[0].mxu0 %v525
    %v527 = vpop.f32.mrb[0].mxu0
    %v528 = vadd.f32 %v405, %v527
    %v529 = vpop.f32.mrb[0].mxu0
    %530 = vmatprep.mubr.f32.mxu0 0.0
    %v531 = vand.u32 %v46, 4294901760
    %v532 = vsub.f32 %v46, %v531
    %v533 = vand.u32 %v532, 4294901760
    %534 = vmatmul.mubr.f32.gmra.mrb[0].mxu0 %v533
    %v535 = vpop.f32.mrb[0].mxu0
    %v536 = vadd.f32 %v412, %v535
    %v537 = vpop.f32.mrb[0].mxu0
    %538 = vmatprep.mubr.f32.mxu0 0.0
    %v539 = vand.u32 %v49, 4294901760
    %v540 = vsub.f32 %v49, %v539
    %v541 = vand.u32 %v540, 4294901760
    %542 = vmatmul.mubr.f32.gmra.mrb[0].mxu0 %v541
    %v543 = vpop.f32.mrb[0].mxu0
    %v544 = vadd.f32 %v419, %v543
    %v545 = vpop.f32.mrb[0].mxu0
    %546 = vmatprep.mubr.f32.mxu0 0.0
    %v547 = vand.u32 %v52, 4294901760
    %v548 = vsub.f32 %v52, %v547
    %v549 = vand.u32 %v548, 4294901760
    %550 = vmatmul.mubr.f32.gmra.mrb[0].mxu0 %v549
    %v551 = vpop.f32.mrb[0].mxu0
    %v552 = vadd.f32 %v426, %v551
    %v553 = vpop.f32.mrb[0].mxu0
    %554 = vmatprep.mubr.f32.mxu0 0.0
    %v555 = vand.u32 %v55, 4294901760
    %v556 = vsub.f32 %v55, %v555
    %v557 = vand.u32 %v556, 4294901760
    %558 = vmatmul.mubr.f32.gmra.mrb[0].mxu0 %v557
    %v559 = vpop.f32.mrb[0].mxu0
    %v560 = vadd.f32 %v433, %v559
    %v561 = vpop.f32.mrb[0].mxu0
    %562 = vmatprep.mubr.f32.mxu0 0.0
    %v563 = vand.u32 %v58, 4294901760
    %v564 = vsub.f32 %v58, %v563
    %v565 = vand.u32 %v564, 4294901760
    %566 = vmatmul.mubr.f32.gmra.mrb[0].mxu0 %v565
    %v567 = vpop.f32.mrb[0].mxu0
    %v568 = vadd.f32 %v440, %v567
    %v569 = vpop.f32.mrb[0].mxu0
    %570 = vmatprep.mubr.f32.mxu0 0.0
    %v571 = vand.u32 %v61, 4294901760
    %v572 = vsub.f32 %v61, %v571
    %v573 = vand.u32 %v572, 4294901760
    %574 = vmatmul.mubr.f32.gmra.mrb[0].mxu0 %v573
    %v575 = vpop.f32.mrb[0].mxu0
    %v576 = vadd.f32 %v447, %v575
    %v577 = vpop.f32.mrb[0].mxu0
    %578 = vmatprep.mubr.f32.mxu0 0.0
    %v579 = vand.u32 %v64, 4294901760
    %v580 = vsub.f32 %v64, %v579
    %v581 = vand.u32 %v580, 4294901760
    %582 = vmatmul.mubr.f32.gmra.mrb[0].mxu0 %v581
    %v583 = vpop.f32.mrb[0].mxu0
    %v584 = vadd.f32 %v454, %v583
    %v585 = vpop.f32.mrb[0].mxu0
    %586 = vdwg.mxu0
    %587 = vmatprep.subr.mxu0 0.0
    %v588 = vand.u32 %v68, 4294901760
    %v589 = vsub.f32 %v68, %v588
    %v590 = vand.u32 %v589, 4294901760
    %591 = vmatpush1.msra.mxu0 %v590
    %592 = vmatprep.subr.mxu0 0.0
    %593 = vmatpush1.msra.mxu0 0.0
    %594 = vmatprep.subr.mxu0 0.0
    %595 = vmatpush1.msra.mxu0 0.0
    %596 = vmatprep.subr.mxu0 0.0
    %597 = vmatpush1.msra.mxu0 0.0
    %598 = vmatprep.subr.mxu0 0.0
    %599 = vmatpush1.msra.mxu0 0.0
    %600 = vmatprep.subr.mxu0 0.0
    %601 = vmatpush1.msra.mxu0 0.0
    %602 = vmatprep.subr.mxu0 0.0
    %603 = vmatpush1.msra.mxu0 0.0
    %604 = vmatprep.subr.mxu0 0.0
    %605 = vmatpush1.msra.mxu0 0.0
    %606 = vmatprep.subr.mxu0 0.0
    %607 = vmatpush1.msra.mxu0 0.0
    %608 = vmatprep.subr.mxu0 0.0
    %609 = vmatpush1.msra.mxu0 0.0
    %610 = vmatprep.subr.mxu0 0.0
    %611 = vmatpush1.msra.mxu0 0.0
    %612 = vmatprep.subr.mxu0 0.0
    %613 = vmatpush1.msra.mxu0 0.0
    %614 = vmatprep.subr.mxu0 0.0
    %615 = vmatpush1.msra.mxu0 0.0
    %616 = vmatprep.subr.mxu0 0.0
    %617 = vmatpush1.msra.mxu0 0.0
    %618 = vmatprep.subr.mxu0 0.0
    %619 = vmatpush1.msra.mxu0 0.0
    %620 = vmatprep.subr.mxu0 0.0
    %621 = vmatpush1.msra.mxu0 0.0
    %622 = vmatprep.subr.mxu0 0.0
    %623 = vmatpush1.msra.mxu0 0.0
    %624 = vmatprep.subr.mxu0 0.0
    %625 = vmatpush1.msra.mxu0 0.0
    %626 = vmatprep.subr.mxu0 0.0
    %627 = vmatpush1.msra.mxu0 0.0
    %628 = vmatprep.subr.mxu0 0.0
    %629 = vmatpush1.msra.mxu0 0.0
    %630 = vmatprep.subr.mxu0 0.0
    %631 = vmatpush1.msra.mxu0 0.0
    %632 = vmatprep.subr.mxu0 0.0
    %633 = vmatpush1.msra.mxu0 0.0
    %634 = vmatprep.subr.mxu0 0.0
    %635 = vmatpush1.msra.mxu0 0.0
    %636 = vmatprep.subr.mxu0 0.0
    %637 = vmatpush1.msra.mxu0 0.0
    %638 = vmatprep.subr.mxu0 0.0
    %639 = vmatpush1.msra.mxu0 0.0
    %640 = vmatprep.subr.mxu0 0.0
    %641 = vmatpush1.msra.mxu0 0.0
    %642 = vmatprep.subr.mxu0 0.0
    %643 = vmatpush1.msra.mxu0 0.0
    %644 = vmatprep.subr.mxu0 0.0
    %645 = vmatpush1.msra.mxu0 0.0
    %646 = vmatprep.subr.mxu0 0.0
    %647 = vmatpush1.msra.mxu0 0.0
    %648 = vmatprep.subr.mxu0 0.0
    %649 = vmatpush1.msra.mxu0 0.0
    %650 = vmatprep.subr.mxu0 0.0
    %651 = vmatpush1.msra.mxu0 0.0
    %652 = vmatprep.subr.mxu0 0.0
    %653 = vmatpush1.msra.mxu0 0.0
    %654 = vmatprep.mubr.f32.mxu0 0.0
    %v655 = vand.u32 %v43, 4294901760
    %656 = vmatmul.mubr.f32.gmra.mrb[0].mxu0 %v655
    %v657 = vpop.f32.mrb[0].mxu0
    %v658 = vadd.f32 %v528, %v657
    %v659 = vpop.f32.mrb[0].mxu0
    %660 = vmatprep.mubr.f32.mxu0 0.0
    %v661 = vand.u32 %v46, 4294901760
    %662 = vmatmul.mubr.f32.gmra.mrb[0].mxu0 %v661
    %v663 = vpop.f32.mrb[0].mxu0
    %v664 = vadd.f32 %v536, %v663
    %v665 = vpop.f32.mrb[0].mxu0
    %666 = vmatprep.mubr.f32.mxu0 0.0
    %v667 = vand.u32 %v49, 4294901760
    %668 = vmatmul.mubr.f32.gmra.mrb[0].mxu0 %v667
    %v669 = vpop.f32.mrb[0].mxu0
    %v670 = vadd.f32 %v544, %v669
    %v671 = vpop.f32.mrb[0].mxu0
    %672 = vmatprep.mubr.f32.mxu0 0.0
    %v673 = vand.u32 %v52, 4294901760
    %674 = vmatmul.mubr.f32.gmra.mrb[0].mxu0 %v673
    %v675 = vpop.f32.mrb[0].mxu0
    %v676 = vadd.f32 %v552, %v675
    %v677 = vpop.f32.mrb[0].mxu0
    %678 = vmatprep.mubr.f32.mxu0 0.0
    %v679 = vand.u32 %v55, 4294901760
    %680 = vmatmul.mubr.f32.gmra.mrb[0].mxu0 %v679
    %v681 = vpop.f32.mrb[0].mxu0
    %v682 = vadd.f32 %v560, %v681
    %v683 = vpop.f32.mrb[0].mxu0
    %684 = vmatprep.mubr.f32.mxu0 0.0
    %v685 = vand.u32 %v58, 4294901760
    %686 = vmatmul.mubr.f32.gmra.mrb[0].mxu0 %v685
    %v687 = vpop.f32.mrb[0].mxu0
    %v688 = vadd.f32 %v568, %v687
    %v689 = vpop.f32.mrb[0].mxu0
    %690 = vmatprep.mubr.f32.mxu0 0.0
    %v691 = vand.u32 %v61, 4294901760
    %692 = vmatmul.mubr.f32.gmra.mrb[0].mxu0 %v691
    %v693 = vpop.f32.mrb[0].mxu0
    %v694 = vadd.f32 %v576, %v693
    %v695 = vpop.f32.mrb[0].mxu0
    %696 = vmatprep.mubr.f32.mxu0 0.0
    %v697 = vand.u32 %v64, 4294901760
    %698 = vmatmul.mubr.f32.gmra.mrb[0].mxu0 %v697
    %v699 = vpop.f32.mrb[0].mxu0
    %v700 = vadd.f32 %v584, %v699
    %v701 = vpop.f32.mrb[0].mxu0
    %702 = vdwg.mxu0
    %703 = vmatprep.subr.mxu0 0.0
    %v704 = vand.u32 %v68, 4294901760
    %705 = vmatpush1.msra.mxu0 %v704
    %706 = vmatprep.subr.mxu0 0.0
    %707 = vmatpush1.msra.mxu0 0.0
    %708 = vmatprep.subr.mxu0 0.0
    %709 = vmatpush1.msra.mxu0 0.0
    %710 = vmatprep.subr.mxu0 0.0
    %711 = vmatpush1.msra.mxu0 0.0
    %712 = vmatprep.subr.mxu0 0.0
    %713 = vmatpush1.msra.mxu0 0.0
    %714 = vmatprep.subr.mxu0 0.0
    %715 = vmatpush1.msra.mxu0 0.0
    %716 = vmatprep.subr.mxu0 0.0
    %717 = vmatpush1.msra.mxu0 0.0
    %718 = vmatprep.subr.mxu0 0.0
    %719 = vmatpush1.msra.mxu0 0.0
    %720 = vmatprep.subr.mxu0 0.0
    %721 = vmatpush1.msra.mxu0 0.0
    %722 = vmatprep.subr.mxu0 0.0
    %723 = vmatpush1.msra.mxu0 0.0
    %724 = vmatprep.subr.mxu0 0.0
    %725 = vmatpush1.msra.mxu0 0.0
    %726 = vmatprep.subr.mxu0 0.0
    %727 = vmatpush1.msra.mxu0 0.0
    %728 = vmatprep.subr.mxu0 0.0
    %729 = vmatpush1.msra.mxu0 0.0
    %730 = vmatprep.subr.mxu0 0.0
    %731 = vmatpush1.msra.mxu0 0.0
    %732 = vmatprep.subr.mxu0 0.0
    %733 = vmatpush1.msra.mxu0 0.0
    %734 = vmatprep.subr.mxu0 0.0
    %735 = vmatpush1.msra.mxu0 0.0
    %736 = vmatprep.subr.mxu0 0.0
    %737 = vmatpush1.msra.mxu0 0.0
    %738 = vmatprep.subr.mxu0 0.0
    %739 = vmatpush1.msra.mxu0 0.0
    %740 = vmatprep.subr.mxu0 0.0
    %741 = vmatpush1.msra.mxu0 0.0
    %742 = vmatprep.subr.mxu0 0.0
    %743 = vmatpush1.msra.mxu0 0.0
    %744 = vmatprep.subr.mxu0 0.0
    %745 = vmatpush1.msra.mxu0 0.0
    %746 = vmatprep.subr.mxu0 0.0
    %747 = vmatpush1.msra.mxu0 0.0
    %748 = vmatprep.subr.mxu0 0.0
    %749 = vmatpush1.msra.mxu0 0.0
    %750 = vmatprep.subr.mxu0 0.0
    %751 = vmatpush1.msra.mxu0 0.0
    %752 = vmatprep.subr.mxu0 0.0
    %753 = vmatpush1.msra.mxu0 0.0
    %754 = vmatprep.subr.mxu0 0.0
    %755 = vmatpush1.msra.mxu0 0.0
    %756 = vmatprep.subr.mxu0 0.0
    %757 = vmatpush1.msra.mxu0 0.0
    %758 = vmatprep.subr.mxu0 0.0
    %759 = vmatpush1.msra.mxu0 0.0
    %760 = vmatprep.subr.mxu0 0.0
    %761 = vmatpush1.msra.mxu0 0.0
    %762 = vmatprep.subr.mxu0 0.0
    %763 = vmatpush1.msra.mxu0 0.0
    %764 = vmatprep.subr.mxu0 0.0
    %765 = vmatpush1.msra.mxu0 0.0
    %766 = vmatprep.subr.mxu0 0.0
    %767 = vmatpush1.msra.mxu0 0.0
    %768 = vmatprep.mubr.f32.mxu0 0.0
    %v769 = vand.u32 %v43, 4294901760
    %770 = vmatmul.mubr.f32.gmra.mrb[0].mxu0 %v769
    %v771 = vpop.f32.mrb[0].mxu0
    %v772 = vadd.f32 %v658, %v771
    %v773 = vpop.f32.mrb[0].mxu0
    %774 = vmatprep.mubr.f32.mxu0 0.0
    %v775 = vand.u32 %v46, 4294901760
    %776 = vmatmul.mubr.f32.gmra.mrb[0].mxu0 %v775
    %v777 = vpop.f32.mrb[0].mxu0
    %v778 = vadd.f32 %v664, %v777
    %v779 = vpop.f32.mrb[0].mxu0
    %780 = vmatprep.mubr.f32.mxu0 0.0
    %v781 = vand.u32 %v49, 4294901760
    %782 = vmatmul.mubr.f32.gmra.mrb[0].mxu0 %v781
    %v783 = vpop.f32.mrb[0].mxu0
    %v784 = vadd.f32 %v670, %v783
    %v785 = vpop.f32.mrb[0].mxu0
    %786 = vmatprep.mubr.f32.mxu0 0.0
    %v787 = vand.u32 %v52, 4294901760
    %788 = vmatmul.mubr.f32.gmra.mrb[0].mxu0 %v787
    %v789 = vpop.f32.mrb[0].mxu0
    %v790 = vadd.f32 %v676, %v789
    %v791 = vpop.f32.mrb[0].mxu0
    %792 = vmatprep.mubr.f32.mxu0 0.0
    %v793 = vand.u32 %v55, 4294901760
    %794 = vmatmul.mubr.f32.gmra.mrb[0].mxu0 %v793
    %v795 = vpop.f32.mrb[0].mxu0
    %v796 = vadd.f32 %v682, %v795
    %v797 = vpop.f32.mrb[0].mxu0
    %798 = vmatprep.mubr.f32.mxu0 0.0
    %v799 = vand.u32 %v58, 4294901760
    %800 = vmatmul.mubr.f32.gmra.mrb[0].mxu0 %v799
    %v801 = vpop.f32.mrb[0].mxu0
    %v802 = vadd.f32 %v688, %v801
    %v803 = vpop.f32.mrb[0].mxu0
    %804 = vmatprep.mubr.f32.mxu0 0.0
    %v805 = vand.u32 %v61, 4294901760
    %806 = vmatmul.mubr.f32.gmra.mrb[0].mxu0 %v805
    %v807 = vpop.f32.mrb[0].mxu0
    %v808 = vadd.f32 %v694, %v807
    %v809 = vpop.f32.mrb[0].mxu0
    %810 = vmatprep.mubr.f32.mxu0 0.0
    %v811 = vand.u32 %v64, 4294901760
    %812 = vmatmul.mubr.f32.gmra.mrb[0].mxu0 %v811
    %v813 = vpop.f32.mrb[0].mxu0
    %v814 = vadd.f32 %v700, %v813
    %v815 = vpop.f32.mrb[0].mxu0
    %816 = vdwg.mxu0
    %v818 = vlaneseq
    %v819 = vshrl.u32 %v818, 7
    %v820 = vsub.s32 0, %v819
    %v821 = vrot.slane %v31, %v820
    %v823 = vadd.f32 %v772, %v821
    %v824 = vadd.f32 %v778, %v821
    %v825 = vadd.f32 %v784, %v821
    %v826 = vadd.f32 %v790, %v821
    %v827 = vadd.f32 %v796, %v821
    %v828 = vadd.f32 %v802, %v821
    %v829 = vadd.f32 %v808, %v821
    %v830 = vadd.f32 %v814, %v821
    %v831 = vlaneseq
    %v832 = vand.u32 %v831, 127
    %vm833 = vcmp.ge.s32.totalorder %v832, 64
    %vm834 = vcmp.lt.s32.totalorder %v832, 96
    %vm835 = vmand %vm833, %vm834
    %v836 = vsel %vm835, 1.0, 0.5
    %v837 = vsel %vm835, 0.0, 0.5
    %vm838 = vcmask 261120
    %v840 = vsel %vm838, 0.0, 0
    %842 = vmatprep.subr.mxu0 0.0
    %v843 = vand.u32 %v27, 4294901760
    %844 = vmatpush1.msra.mxu0 %v843
    %845 = vmatprep.subr.mxu0 0.0
    %v846 = vand.u32 %v28, 4294901760
    %847 = vmatpush1.msra.mxu0 %v846
    %848 = vmatprep.subr.mxu0 0.0
    %v849 = vand.u32 %v29, 4294901760
    %850 = vmatpush1.msra.mxu0 %v849
    %851 = vmatprep.subr.mxu0 0.0
    %v852 = vand.u32 %v30, 4294901760
    %853 = vmatpush1.msra.mxu0 %v852
    %854 = vmatprep.subr.mxu0 0.0
    %855 = vmatpush1.msra.mxu0 0.0
    %856 = vmatprep.subr.mxu0 0.0
    %857 = vmatpush1.msra.mxu0 0.0
    %858 = vmatprep.subr.mxu0 0.0
    %859 = vmatpush1.msra.mxu0 0.0
    %860 = vmatprep.subr.mxu0 0.0
    %861 = vmatpush1.msra.mxu0 0.0
    %862 = vmatprep.subr.mxu0 0.0
    %863 = vmatpush1.msra.mxu0 0.0
    %864 = vmatprep.subr.mxu0 0.0
    %865 = vmatpush1.msra.mxu0 0.0
    %866 = vmatprep.subr.mxu0 0.0
    %867 = vmatpush1.msra.mxu0 0.0
    %868 = vmatprep.subr.mxu0 0.0
    %869 = vmatpush1.msra.mxu0 0.0
    %870 = vmatprep.subr.mxu0 0.0
    %871 = vmatpush1.msra.mxu0 0.0
    %872 = vmatprep.subr.mxu0 0.0
    %873 = vmatpush1.msra.mxu0 0.0
    %874 = vmatprep.subr.mxu0 0.0
    %875 = vmatpush1.msra.mxu0 0.0
    %876 = vmatprep.subr.mxu0 0.0
    %877 = vmatpush1.msra.mxu0 0.0
    %878 = vmatprep.subr.mxu0 0.0
    %879 = vmatpush1.msra.mxu0 0.0
    %880 = vmatprep.subr.mxu0 0.0
    %881 = vmatpush1.msra.mxu0 0.0
    %882 = vmatprep.subr.mxu0 0.0
    %883 = vmatpush1.msra.mxu0 0.0
    %884 = vmatprep.subr.mxu0 0.0
    %885 = vmatpush1.msra.mxu0 0.0
    %886 = vmatprep.subr.mxu0 0.0
    %887 = vmatpush1.msra.mxu0 0.0
    %888 = vmatprep.subr.mxu0 0.0
    %889 = vmatpush1.msra.mxu0 0.0
    %890 = vmatprep.subr.mxu0 0.0
    %891 = vmatpush1.msra.mxu0 0.0
    %892 = vmatprep.subr.mxu0 0.0
    %893 = vmatpush1.msra.mxu0 0.0
    %894 = vmatprep.subr.mxu0 0.0
    %895 = vmatpush1.msra.mxu0 0.0
    %896 = vmatprep.subr.mxu0 0.0
    %897 = vmatpush1.msra.mxu0 0.0
    %898 = vmatprep.subr.mxu0 0.0
    %899 = vmatpush1.msra.mxu0 0.0
    %900 = vmatprep.subr.mxu0 0.0
    %901 = vmatpush1.msra.mxu0 0.0
    %902 = vmatprep.subr.mxu0 0.0
    %903 = vmatpush1.msra.mxu0 0.0
    %904 = vmatprep.subr.mxu0 0.0
    %905 = vmatpush1.msra.mxu0 0.0
    %906 = vmatprep.subr.mxu0 0.0
    %907 = vmatpush1.msra.mxu0 0.0
    %908 = vmatprep.subr.mxu0 0.0
    %909 = vmatpush1.msra.mxu0 0.0
    %910 = vmatprep.mubr.f32.mxu0 0.0
    %v911 = vand.u32 %v840, 4294901760
    %v912 = vsub.f32 %v840, %v911
    %v913 = vand.u32 %v912, 4294901760
    %v914 = vsub.f32 %v912, %v913
    %v915 = vand.u32 %v914, 4294901760
    %916 = vmatmul.mubr.f32.gmra.mrb[0].mxu0 %v915
    %v917 = vpop.f32.mrb[0].mxu0
    %v918 = vadd.f32 0.0, %v917
    %v919 = vpop.f32.mrb[0].mxu0
    %920 = vdwg.mxu0
    %921 = vmatprep.subr.mxu0 0.0
    %v922 = vand.u32 %v27, 4294901760
    %v923 = vsub.f32 %v27, %v922
    %v924 = vand.u32 %v923, 4294901760
    %v925 = vsub.f32 %v923, %v924
    %v926 = vand.u32 %v925, 4294901760
    %927 = vmatpush1.msra.mxu0 %v926
    %928 = vmatprep.subr.mxu0 0.0
    %v929 = vand.u32 %v28, 4294901760
    %v930 = vsub.f32 %v28, %v929
    %v931 = vand.u32 %v930, 4294901760
    %v932 = vsub.f32 %v930, %v931
    %v933 = vand.u32 %v932, 4294901760
    %934 = vmatpush1.msra.mxu0 %v933
    %935 = vmatprep.subr.mxu0 0.0
    %v936 = vand.u32 %v29, 4294901760
    %v937 = vsub.f32 %v29, %v936
    %v938 = vand.u32 %v937, 4294901760
    %v939 = vsub.f32 %v937, %v938
    %v940 = vand.u32 %v939, 4294901760
    %941 = vmatpush1.msra.mxu0 %v940
    %942 = vmatprep.subr.mxu0 0.0
    %v943 = vand.u32 %v30, 4294901760
    %v944 = vsub.f32 %v30, %v943
    %v945 = vand.u32 %v944, 4294901760
    %v946 = vsub.f32 %v944, %v945
    %v947 = vand.u32 %v946, 4294901760
    %948 = vmatpush1.msra.mxu0 %v947
    %949 = vmatprep.subr.mxu0 0.0
    %950 = vmatpush1.msra.mxu0 0.0
    %951 = vmatprep.subr.mxu0 0.0
    %952 = vmatpush1.msra.mxu0 0.0
    %953 = vmatprep.subr.mxu0 0.0
    %954 = vmatpush1.msra.mxu0 0.0
    %955 = vmatprep.subr.mxu0 0.0
    %956 = vmatpush1.msra.mxu0 0.0
    %957 = vmatprep.subr.mxu0 0.0
    %958 = vmatpush1.msra.mxu0 0.0
    %959 = vmatprep.subr.mxu0 0.0
    %960 = vmatpush1.msra.mxu0 0.0
    %961 = vmatprep.subr.mxu0 0.0
    %962 = vmatpush1.msra.mxu0 0.0
    %963 = vmatprep.subr.mxu0 0.0
    %964 = vmatpush1.msra.mxu0 0.0
    %965 = vmatprep.subr.mxu0 0.0
    %966 = vmatpush1.msra.mxu0 0.0
    %967 = vmatprep.subr.mxu0 0.0
    %968 = vmatpush1.msra.mxu0 0.0
    %969 = vmatprep.subr.mxu0 0.0
    %970 = vmatpush1.msra.mxu0 0.0
    %971 = vmatprep.subr.mxu0 0.0
    %972 = vmatpush1.msra.mxu0 0.0
    %973 = vmatprep.subr.mxu0 0.0
    %974 = vmatpush1.msra.mxu0 0.0
    %975 = vmatprep.subr.mxu0 0.0
    %976 = vmatpush1.msra.mxu0 0.0
    %977 = vmatprep.subr.mxu0 0.0
    %978 = vmatpush1.msra.mxu0 0.0
    %979 = vmatprep.subr.mxu0 0.0
    %980 = vmatpush1.msra.mxu0 0.0
    %981 = vmatprep.subr.mxu0 0.0
    %982 = vmatpush1.msra.mxu0 0.0
    %983 = vmatprep.subr.mxu0 0.0
    %984 = vmatpush1.msra.mxu0 0.0
    %985 = vmatprep.subr.mxu0 0.0
    %986 = vmatpush1.msra.mxu0 0.0
    %987 = vmatprep.subr.mxu0 0.0
    %988 = vmatpush1.msra.mxu0 0.0
    %989 = vmatprep.subr.mxu0 0.0
    %990 = vmatpush1.msra.mxu0 0.0
    %991 = vmatprep.subr.mxu0 0.0
    %992 = vmatpush1.msra.mxu0 0.0
    %993 = vmatprep.subr.mxu0 0.0
    %994 = vmatpush1.msra.mxu0 0.0
    %995 = vmatprep.subr.mxu0 0.0
    %996 = vmatpush1.msra.mxu0 0.0
    %997 = vmatprep.subr.mxu0 0.0
    %998 = vmatpush1.msra.mxu0 0.0
    %999 = vmatprep.subr.mxu0 0.0
    %1000 = vmatpush1.msra.mxu0 0.0
    %1001 = vmatprep.subr.mxu0 0.0
    %1002 = vmatpush1.msra.mxu0 0.0
    %1003 = vmatprep.subr.mxu0 0.0
    %1004 = vmatpush1.msra.mxu0 0.0
    %1005 = vmatprep.mubr.f32.mxu0 0.0
    %v1006 = vand.u32 %v840, 4294901760
    %1007 = vmatmul.mubr.f32.gmra.mrb[0].mxu0 %v1006
    %v1008 = vpop.f32.mrb[0].mxu0
    %v1009 = vadd.f32 %v918, %v1008
    %v1010 = vpop.f32.mrb[0].mxu0
    %1011 = vdwg.mxu0
    %1012 = vmatprep.subr.mxu0 0.0
    %v1013 = vand.u32 %v27, 4294901760
    %v1014 = vsub.f32 %v27, %v1013
    %1015 = vmatpush1.msra.mxu0 %v1014
    %1016 = vmatprep.subr.mxu0 0.0
    %v1017 = vand.u32 %v28, 4294901760
    %v1018 = vsub.f32 %v28, %v1017
    %1019 = vmatpush1.msra.mxu0 %v1018
    %1020 = vmatprep.subr.mxu0 0.0
    %v1021 = vand.u32 %v29, 4294901760
    %v1022 = vsub.f32 %v29, %v1021
    %1023 = vmatpush1.msra.mxu0 %v1022
    %1024 = vmatprep.subr.mxu0 0.0
    %v1025 = vand.u32 %v30, 4294901760
    %v1026 = vsub.f32 %v30, %v1025
    %1027 = vmatpush1.msra.mxu0 %v1026
    %1028 = vmatprep.subr.mxu0 0.0
    %1029 = vmatpush1.msra.mxu0 0.0
    %1030 = vmatprep.subr.mxu0 0.0
    %1031 = vmatpush1.msra.mxu0 0.0
    %1032 = vmatprep.subr.mxu0 0.0
    %1033 = vmatpush1.msra.mxu0 0.0
    %1034 = vmatprep.subr.mxu0 0.0
    %1035 = vmatpush1.msra.mxu0 0.0
    %1036 = vmatprep.subr.mxu0 0.0
    %1037 = vmatpush1.msra.mxu0 0.0
    %1038 = vmatprep.subr.mxu0 0.0
    %1039 = vmatpush1.msra.mxu0 0.0
    %1040 = vmatprep.subr.mxu0 0.0
    %1041 = vmatpush1.msra.mxu0 0.0
    %1042 = vmatprep.subr.mxu0 0.0
    %1043 = vmatpush1.msra.mxu0 0.0
    %1044 = vmatprep.subr.mxu0 0.0
    %1045 = vmatpush1.msra.mxu0 0.0
    %1046 = vmatprep.subr.mxu0 0.0
    %1047 = vmatpush1.msra.mxu0 0.0
    %1048 = vmatprep.subr.mxu0 0.0
    %1049 = vmatpush1.msra.mxu0 0.0
    %1050 = vmatprep.subr.mxu0 0.0
    %1051 = vmatpush1.msra.mxu0 0.0
    %1052 = vmatprep.subr.mxu0 0.0
    %1053 = vmatpush1.msra.mxu0 0.0
    %1054 = vmatprep.subr.mxu0 0.0
    %1055 = vmatpush1.msra.mxu0 0.0
    %1056 = vmatprep.subr.mxu0 0.0
    %1057 = vmatpush1.msra.mxu0 0.0
    %1058 = vmatprep.subr.mxu0 0.0
    %1059 = vmatpush1.msra.mxu0 0.0
    %1060 = vmatprep.subr.mxu0 0.0
    %1061 = vmatpush1.msra.mxu0 0.0
    %1062 = vmatprep.subr.mxu0 0.0
    %1063 = vmatpush1.msra.mxu0 0.0
    %1064 = vmatprep.subr.mxu0 0.0
    %1065 = vmatpush1.msra.mxu0 0.0
    %1066 = vmatprep.subr.mxu0 0.0
    %1067 = vmatpush1.msra.mxu0 0.0
    %1068 = vmatprep.subr.mxu0 0.0
    %1069 = vmatpush1.msra.mxu0 0.0
    %1070 = vmatprep.subr.mxu0 0.0
    %1071 = vmatpush1.msra.mxu0 0.0
    %1072 = vmatprep.subr.mxu0 0.0
    %1073 = vmatpush1.msra.mxu0 0.0
    %1074 = vmatprep.subr.mxu0 0.0
    %1075 = vmatpush1.msra.mxu0 0.0
    %1076 = vmatprep.subr.mxu0 0.0
    %1077 = vmatpush1.msra.mxu0 0.0
    %1078 = vmatprep.subr.mxu0 0.0
    %1079 = vmatpush1.msra.mxu0 0.0
    %1080 = vmatprep.subr.mxu0 0.0
    %1081 = vmatpush1.msra.mxu0 0.0
    %1082 = vmatprep.subr.mxu0 0.0
    %1083 = vmatpush1.msra.mxu0 0.0
    %1084 = vmatprep.mubr.f32.mxu0 0.0
    %v1085 = vand.u32 %v840, 4294901760
    %v1086 = vsub.f32 %v840, %v1085
    %1087 = vmatmul.mubr.f32.gmra.mrb[0].mxu0 %v1086
    %v1088 = vpop.f32.mrb[0].mxu0
    %v1089 = vadd.f32 %v1009, %v1088
    %v1090 = vpop.f32.mrb[0].mxu0
    %1091 = vdwg.mxu0
    %1092 = vmatprep.subr.mxu0 0.0
    %v1093 = vand.u32 %v27, 4294901760
    %1094 = vmatpush1.msra.mxu0 %v1093
    %1095 = vmatprep.subr.mxu0 0.0
    %v1096 = vand.u32 %v28, 4294901760
    %1097 = vmatpush1.msra.mxu0 %v1096
    %1098 = vmatprep.subr.mxu0 0.0
    %v1099 = vand.u32 %v29, 4294901760
    %1100 = vmatpush1.msra.mxu0 %v1099
    %1101 = vmatprep.subr.mxu0 0.0
    %v1102 = vand.u32 %v30, 4294901760
    %1103 = vmatpush1.msra.mxu0 %v1102
    %1104 = vmatprep.subr.mxu0 0.0
    %1105 = vmatpush1.msra.mxu0 0.0
    %1106 = vmatprep.subr.mxu0 0.0
    %1107 = vmatpush1.msra.mxu0 0.0
    %1108 = vmatprep.subr.mxu0 0.0
    %1109 = vmatpush1.msra.mxu0 0.0
    %1110 = vmatprep.subr.mxu0 0.0
    %1111 = vmatpush1.msra.mxu0 0.0
    %1112 = vmatprep.subr.mxu0 0.0
    %1113 = vmatpush1.msra.mxu0 0.0
    %1114 = vmatprep.subr.mxu0 0.0
    %1115 = vmatpush1.msra.mxu0 0.0
    %1116 = vmatprep.subr.mxu0 0.0
    %1117 = vmatpush1.msra.mxu0 0.0
    %1118 = vmatprep.subr.mxu0 0.0
    %1119 = vmatpush1.msra.mxu0 0.0
    %1120 = vmatprep.subr.mxu0 0.0
    %1121 = vmatpush1.msra.mxu0 0.0
    %1122 = vmatprep.subr.mxu0 0.0
    %1123 = vmatpush1.msra.mxu0 0.0
    %1124 = vmatprep.subr.mxu0 0.0
    %1125 = vmatpush1.msra.mxu0 0.0
    %1126 = vmatprep.subr.mxu0 0.0
    %1127 = vmatpush1.msra.mxu0 0.0
    %1128 = vmatprep.subr.mxu0 0.0
    %1129 = vmatpush1.msra.mxu0 0.0
    %1130 = vmatprep.subr.mxu0 0.0
    %1131 = vmatpush1.msra.mxu0 0.0
    %1132 = vmatprep.subr.mxu0 0.0
    %1133 = vmatpush1.msra.mxu0 0.0
    %1134 = vmatprep.subr.mxu0 0.0
    %1135 = vmatpush1.msra.mxu0 0.0
    %1136 = vmatprep.subr.mxu0 0.0
    %1137 = vmatpush1.msra.mxu0 0.0
    %1138 = vmatprep.subr.mxu0 0.0
    %1139 = vmatpush1.msra.mxu0 0.0
    %1140 = vmatprep.subr.mxu0 0.0
    %1141 = vmatpush1.msra.mxu0 0.0
    %1142 = vmatprep.subr.mxu0 0.0
    %1143 = vmatpush1.msra.mxu0 0.0
    %1144 = vmatprep.subr.mxu0 0.0
    %1145 = vmatpush1.msra.mxu0 0.0
    %1146 = vmatprep.subr.mxu0 0.0
    %1147 = vmatpush1.msra.mxu0 0.0
    %1148 = vmatprep.subr.mxu0 0.0
    %1149 = vmatpush1.msra.mxu0 0.0
    %1150 = vmatprep.subr.mxu0 0.0
    %1151 = vmatpush1.msra.mxu0 0.0
    %1152 = vmatprep.subr.mxu0 0.0
    %1153 = vmatpush1.msra.mxu0 0.0
    %1154 = vmatprep.subr.mxu0 0.0
    %1155 = vmatpush1.msra.mxu0 0.0
    %1156 = vmatprep.subr.mxu0 0.0
    %1157 = vmatpush1.msra.mxu0 0.0
    %1158 = vmatprep.subr.mxu0 0.0
    %1159 = vmatpush1.msra.mxu0 0.0
    %1160 = vmatprep.mubr.f32.mxu0 0.0
    %v1161 = vand.u32 %v840, 4294901760
    %v1162 = vsub.f32 %v840, %v1161
    %v1163 = vand.u32 %v1162, 4294901760
    %1164 = vmatmul.mubr.f32.gmra.mrb[0].mxu0 %v1163
    %v1165 = vpop.f32.mrb[0].mxu0
    %v1166 = vadd.f32 %v1089, %v1165
    %v1167 = vpop.f32.mrb[0].mxu0
    %1168 = vdwg.mxu0
    %1169 = vmatprep.subr.mxu0 0.0
    %v1170 = vand.u32 %v27, 4294901760
    %v1171 = vsub.f32 %v27, %v1170
    %v1172 = vand.u32 %v1171, 4294901760
    %1173 = vmatpush1.msra.mxu0 %v1172
    %1174 = vmatprep.subr.mxu0 0.0
    %v1175 = vand.u32 %v28, 4294901760
    %v1176 = vsub.f32 %v28, %v1175
    %v1177 = vand.u32 %v1176, 4294901760
    %1178 = vmatpush1.msra.mxu0 %v1177
    %1179 = vmatprep.subr.mxu0 0.0
    %v1180 = vand.u32 %v29, 4294901760
    %v1181 = vsub.f32 %v29, %v1180
    %v1182 = vand.u32 %v1181, 4294901760
    %1183 = vmatpush1.msra.mxu0 %v1182
    %1184 = vmatprep.subr.mxu0 0.0
    %v1185 = vand.u32 %v30, 4294901760
    %v1186 = vsub.f32 %v30, %v1185
    %v1187 = vand.u32 %v1186, 4294901760
    %1188 = vmatpush1.msra.mxu0 %v1187
    %1189 = vmatprep.subr.mxu0 0.0
    %1190 = vmatpush1.msra.mxu0 0.0
    %1191 = vmatprep.subr.mxu0 0.0
    %1192 = vmatpush1.msra.mxu0 0.0
    %1193 = vmatprep.subr.mxu0 0.0
    %1194 = vmatpush1.msra.mxu0 0.0
    %1195 = vmatprep.subr.mxu0 0.0
    %1196 = vmatpush1.msra.mxu0 0.0
    %1197 = vmatprep.subr.mxu0 0.0
    %1198 = vmatpush1.msra.mxu0 0.0
    %1199 = vmatprep.subr.mxu0 0.0
    %1200 = vmatpush1.msra.mxu0 0.0
    %1201 = vmatprep.subr.mxu0 0.0
    %1202 = vmatpush1.msra.mxu0 0.0
    %1203 = vmatprep.subr.mxu0 0.0
    %1204 = vmatpush1.msra.mxu0 0.0
    %1205 = vmatprep.subr.mxu0 0.0
    %1206 = vmatpush1.msra.mxu0 0.0
    %1207 = vmatprep.subr.mxu0 0.0
    %1208 = vmatpush1.msra.mxu0 0.0
    %1209 = vmatprep.subr.mxu0 0.0
    %1210 = vmatpush1.msra.mxu0 0.0
    %1211 = vmatprep.subr.mxu0 0.0
    %1212 = vmatpush1.msra.mxu0 0.0
    %1213 = vmatprep.subr.mxu0 0.0
    %1214 = vmatpush1.msra.mxu0 0.0
    %1215 = vmatprep.subr.mxu0 0.0
    %1216 = vmatpush1.msra.mxu0 0.0
    %1217 = vmatprep.subr.mxu0 0.0
    %1218 = vmatpush1.msra.mxu0 0.0
    %1219 = vmatprep.subr.mxu0 0.0
    %1220 = vmatpush1.msra.mxu0 0.0
    %1221 = vmatprep.subr.mxu0 0.0
    %1222 = vmatpush1.msra.mxu0 0.0
    %1223 = vmatprep.subr.mxu0 0.0
    %1224 = vmatpush1.msra.mxu0 0.0
    %1225 = vmatprep.subr.mxu0 0.0
    %1226 = vmatpush1.msra.mxu0 0.0
    %1227 = vmatprep.subr.mxu0 0.0
    %1228 = vmatpush1.msra.mxu0 0.0
    %1229 = vmatprep.subr.mxu0 0.0
    %1230 = vmatpush1.msra.mxu0 0.0
    %1231 = vmatprep.subr.mxu0 0.0
    %1232 = vmatpush1.msra.mxu0 0.0
    %1233 = vmatprep.subr.mxu0 0.0
    %1234 = vmatpush1.msra.mxu0 0.0
    %1235 = vmatprep.subr.mxu0 0.0
    %1236 = vmatpush1.msra.mxu0 0.0
    %1237 = vmatprep.subr.mxu0 0.0
    %1238 = vmatpush1.msra.mxu0 0.0
    %1239 = vmatprep.subr.mxu0 0.0
    %1240 = vmatpush1.msra.mxu0 0.0
    %1241 = vmatprep.subr.mxu0 0.0
    %1242 = vmatpush1.msra.mxu0 0.0
    %1243 = vmatprep.subr.mxu0 0.0
    %1244 = vmatpush1.msra.mxu0 0.0
    %1245 = vmatprep.mubr.f32.mxu0 0.0
    %v1246 = vand.u32 %v840, 4294901760
    %1247 = vmatmul.mubr.f32.gmra.mrb[0].mxu0 %v1246
    %v1248 = vpop.f32.mrb[0].mxu0
    %v1249 = vadd.f32 %v1166, %v1248
    %v1250 = vpop.f32.mrb[0].mxu0
    %1251 = vdwg.mxu0
    %1252 = vmatprep.subr.mxu0 0.0
    %v1253 = vand.u32 %v27, 4294901760
    %1254 = vmatpush1.msra.mxu0 %v1253
    %1255 = vmatprep.subr.mxu0 0.0
    %v1256 = vand.u32 %v28, 4294901760
    %1257 = vmatpush1.msra.mxu0 %v1256
    %1258 = vmatprep.subr.mxu0 0.0
    %v1259 = vand.u32 %v29, 4294901760
    %1260 = vmatpush1.msra.mxu0 %v1259
    %1261 = vmatprep.subr.mxu0 0.0
    %v1262 = vand.u32 %v30, 4294901760
    %1263 = vmatpush1.msra.mxu0 %v1262
    %1264 = vmatprep.subr.mxu0 0.0
    %1265 = vmatpush1.msra.mxu0 0.0
    %1266 = vmatprep.subr.mxu0 0.0
    %1267 = vmatpush1.msra.mxu0 0.0
    %1268 = vmatprep.subr.mxu0 0.0
    %1269 = vmatpush1.msra.mxu0 0.0
    %1270 = vmatprep.subr.mxu0 0.0
    %1271 = vmatpush1.msra.mxu0 0.0
    %1272 = vmatprep.subr.mxu0 0.0
    %1273 = vmatpush1.msra.mxu0 0.0
    %1274 = vmatprep.subr.mxu0 0.0
    %1275 = vmatpush1.msra.mxu0 0.0
    %1276 = vmatprep.subr.mxu0 0.0
    %1277 = vmatpush1.msra.mxu0 0.0
    %1278 = vmatprep.subr.mxu0 0.0
    %1279 = vmatpush1.msra.mxu0 0.0
    %1280 = vmatprep.subr.mxu0 0.0
    %1281 = vmatpush1.msra.mxu0 0.0
    %1282 = vmatprep.subr.mxu0 0.0
    %1283 = vmatpush1.msra.mxu0 0.0
    %1284 = vmatprep.subr.mxu0 0.0
    %1285 = vmatpush1.msra.mxu0 0.0
    %1286 = vmatprep.subr.mxu0 0.0
    %1287 = vmatpush1.msra.mxu0 0.0
    %1288 = vmatprep.subr.mxu0 0.0
    %1289 = vmatpush1.msra.mxu0 0.0
    %1290 = vmatprep.subr.mxu0 0.0
    %1291 = vmatpush1.msra.mxu0 0.0
    %1292 = vmatprep.subr.mxu0 0.0
    %1293 = vmatpush1.msra.mxu0 0.0
    %1294 = vmatprep.subr.mxu0 0.0
    %1295 = vmatpush1.msra.mxu0 0.0
    %1296 = vmatprep.subr.mxu0 0.0
    %1297 = vmatpush1.msra.mxu0 0.0
    %1298 = vmatprep.subr.mxu0 0.0
    %1299 = vmatpush1.msra.mxu0 0.0
    %1300 = vmatprep.subr.mxu0 0.0
    %1301 = vmatpush1.msra.mxu0 0.0
    %1302 = vmatprep.subr.mxu0 0.0
    %1303 = vmatpush1.msra.mxu0 0.0
    %1304 = vmatprep.subr.mxu0 0.0
    %1305 = vmatpush1.msra.mxu0 0.0
    %1306 = vmatprep.subr.mxu0 0.0
    %1307 = vmatpush1.msra.mxu0 0.0
    %1308 = vmatprep.subr.mxu0 0.0
    %1309 = vmatpush1.msra.mxu0 0.0
    %1310 = vmatprep.subr.mxu0 0.0
    %1311 = vmatpush1.msra.mxu0 0.0
    %1312 = vmatprep.subr.mxu0 0.0
    %1313 = vmatpush1.msra.mxu0 0.0
    %1314 = vmatprep.subr.mxu0 0.0
    %1315 = vmatpush1.msra.mxu0 0.0
    %1316 = vmatprep.subr.mxu0 0.0
    %1317 = vmatpush1.msra.mxu0 0.0
    %1318 = vmatprep.subr.mxu0 0.0
    %1319 = vmatpush1.msra.mxu0 0.0
    %1320 = vmatprep.mubr.f32.mxu0 0.0
    %v1321 = vand.u32 %v840, 4294901760
    %1322 = vmatmul.mubr.f32.gmra.mrb[0].mxu0 %v1321
    %v1323 = vpop.f32.mrb[0].mxu0
    %v1324 = vadd.f32 %v1249, %v1323
    %v1325 = vpop.f32.mrb[0].mxu0
    %1326 = vdwg.mxu0
    %v1327 = vadd.f32 %v823, %v1324
    %v1328 = vmul.f32 %v1327, %v836
    %v1329 = vtanh.pop %v1328
    %v1330 = vmul.f32 %v836, %v1329
    %v1331 = vadd.f32 %v1330, %v837
    %v1332 = vmul.f32 %v1331, 0.0
    %1334 = vrot.lane.b32.xlu0 %v1331, 64
    %v1335 = vpop.permute.xlu0 %1334
    %v1337 = vmul.f32 %v1331, %v1335
    %1339 = vrot.lane.b32.xlu0 %v1337, 32
    %v1340 = vpop.permute.xlu0 %1339
    %v1342 = vadd.f32 %v1332, %v1340
    %v1343 = vtanh.pop %v1342
    %1345 = vrot.lane.b32.xlu0 %v1343, 64
    %v1346 = vpop.permute.xlu0 %1345
    %v1348 = vmul.f32 %v1331, %v1346
    %1350 = vrot.lane.b32.xlu0 %v1348, 32
    %v1351 = vpop.permute.xlu0 %1350
    %v1352 = vsel %vm838, %v1351, 0
    %1354 = vmatprep.subr.mxu0 0.0
    %v1355 = vand.u32 %v27, 4294901760
    %1356 = vmatpush1.msra.mxu0 %v1355
    %1357 = vmatprep.subr.mxu0 0.0
    %v1358 = vand.u32 %v28, 4294901760
    %1359 = vmatpush1.msra.mxu0 %v1358
    %1360 = vmatprep.subr.mxu0 0.0
    %v1361 = vand.u32 %v29, 4294901760
    %1362 = vmatpush1.msra.mxu0 %v1361
    %1363 = vmatprep.subr.mxu0 0.0
    %v1364 = vand.u32 %v30, 4294901760
    %1365 = vmatpush1.msra.mxu0 %v1364
    %1366 = vmatprep.subr.mxu0 0.0
    %1367 = vmatpush1.msra.mxu0 0.0
    %1368 = vmatprep.subr.mxu0 0.0
    %1369 = vmatpush1.msra.mxu0 0.0
    %1370 = vmatprep.subr.mxu0 0.0
    %1371 = vmatpush1.msra.mxu0 0.0
    %1372 = vmatprep.subr.mxu0 0.0
    %1373 = vmatpush1.msra.mxu0 0.0
    %1374 = vmatprep.subr.mxu0 0.0
    %1375 = vmatpush1.msra.mxu0 0.0
    %1376 = vmatprep.subr.mxu0 0.0
    %1377 = vmatpush1.msra.mxu0 0.0
    %1378 = vmatprep.subr.mxu0 0.0
    %1379 = vmatpush1.msra.mxu0 0.0
    %1380 = vmatprep.subr.mxu0 0.0
    %1381 = vmatpush1.msra.mxu0 0.0
    %1382 = vmatprep.subr.mxu0 0.0
    %1383 = vmatpush1.msra.mxu0 0.0
    %1384 = vmatprep.subr.mxu0 0.0
    %1385 = vmatpush1.msra.mxu0 0.0
    %1386 = vmatprep.subr.mxu0 0.0
    %1387 = vmatpush1.msra.mxu0 0.0
    %1388 = vmatprep.subr.mxu0 0.0
    %1389 = vmatpush1.msra.mxu0 0.0
    %1390 = vmatprep.subr.mxu0 0.0
    %1391 = vmatpush1.msra.mxu0 0.0
    %1392 = vmatprep.subr.mxu0 0.0
    %1393 = vmatpush1.msra.mxu0 0.0
    %1394 = vmatprep.subr.mxu0 0.0
    %1395 = vmatpush1.msra.mxu0 0.0
    %1396 = vmatprep.subr.mxu0 0.0
    %1397 = vmatpush1.msra.mxu0 0.0
    %1398 = vmatprep.subr.mxu0 0.0
    %1399 = vmatpush1.msra.mxu0 0.0
    %1400 = vmatprep.subr.mxu0 0.0
    %1401 = vmatpush1.msra.mxu0 0.0
    %1402 = vmatprep.subr.mxu0 0.0
    %1403 = vmatpush1.msra.mxu0 0.0
    %1404 = vmatprep.subr.mxu0 0.0
    %1405 = vmatpush1.msra.mxu0 0.0
    %1406 = vmatprep.subr.mxu0 0.0
    %1407 = vmatpush1.msra.mxu0 0.0
    %1408 = vmatprep.subr.mxu0 0.0
    %1409 = vmatpush1.msra.mxu0 0.0
    %1410 = vmatprep.subr.mxu0 0.0
    %1411 = vmatpush1.msra.mxu0 0.0
    %1412 = vmatprep.subr.mxu0 0.0
    %1413 = vmatpush1.msra.mxu0 0.0
    %1414 = vmatprep.subr.mxu0 0.0
    %1415 = vmatpush1.msra.mxu0 0.0
    %1416 = vmatprep.subr.mxu0 0.0
    %1417 = vmatpush1.msra.mxu0 0.0
    %1418 = vmatprep.subr.mxu0 0.0
    %1419 = vmatpush1.msra.mxu0 0.0
    %1420 = vmatprep.subr.mxu0 0.0
    %1421 = vmatpush1.msra.mxu0 0.0
    %1422 = vmatprep.mubr.f32.mxu0 0.0
    %v1423 = vand.u32 %v1352, 4294901760
    %v1424 = vsub.f32 %v1352, %v1423
    %v1425 = vand.u32 %v1424, 4294901760
    %v1426 = vsub.f32 %v1424, %v1425
    %v1427 = vand.u32 %v1426, 4294901760
    %1428 = vmatmul.mubr.f32.gmra.mrb[0].mxu0 %v1427
    %v1429 = vpop.f32.mrb[0].mxu0
    %v1430 = vadd.f32 0.0, %v1429
    %v1431 = vpop.f32.mrb[0].mxu0
    %1432 = vdwg.mxu0
    %1433 = vmatprep.subr.mxu0 0.0
    %v1434 = vand.u32 %v27, 4294901760
    %v1435 = vsub.f32 %v27, %v1434
    %v1436 = vand.u32 %v1435, 4294901760
    %v1437 = vsub.f32 %v1435, %v1436
    %v1438 = vand.u32 %v1437, 4294901760
    %1439 = vmatpush1.msra.mxu0 %v1438
    %1440 = vmatprep.subr.mxu0 0.0
    %v1441 = vand.u32 %v28, 4294901760
    %v1442 = vsub.f32 %v28, %v1441
    %v1443 = vand.u32 %v1442, 4294901760
    %v1444 = vsub.f32 %v1442, %v1443
    %v1445 = vand.u32 %v1444, 4294901760
    %1446 = vmatpush1.msra.mxu0 %v1445
    %1447 = vmatprep.subr.mxu0 0.0
    %v1448 = vand.u32 %v29, 4294901760
    %v1449 = vsub.f32 %v29, %v1448
    %v1450 = vand.u32 %v1449, 4294901760
    %v1451 = vsub.f32 %v1449, %v1450
    %v1452 = vand.u32 %v1451, 4294901760
    %1453 = vmatpush1.msra.mxu0 %v1452
    %1454 = vmatprep.subr.mxu0 0.0
    %v1455 = vand.u32 %v30, 4294901760
    %v1456 = vsub.f32 %v30, %v1455
    %v1457 = vand.u32 %v1456, 4294901760
    %v1458 = vsub.f32 %v1456, %v1457
    %v1459 = vand.u32 %v1458, 4294901760
    %1460 = vmatpush1.msra.mxu0 %v1459
    %1461 = vmatprep.subr.mxu0 0.0
    %1462 = vmatpush1.msra.mxu0 0.0
    %1463 = vmatprep.subr.mxu0 0.0
    %1464 = vmatpush1.msra.mxu0 0.0
    %1465 = vmatprep.subr.mxu0 0.0
    %1466 = vmatpush1.msra.mxu0 0.0
    %1467 = vmatprep.subr.mxu0 0.0
    %1468 = vmatpush1.msra.mxu0 0.0
    %1469 = vmatprep.subr.mxu0 0.0
    %1470 = vmatpush1.msra.mxu0 0.0
    %1471 = vmatprep.subr.mxu0 0.0
    %1472 = vmatpush1.msra.mxu0 0.0
    %1473 = vmatprep.subr.mxu0 0.0
    %1474 = vmatpush1.msra.mxu0 0.0
    %1475 = vmatprep.subr.mxu0 0.0
    %1476 = vmatpush1.msra.mxu0 0.0
    %1477 = vmatprep.subr.mxu0 0.0
    %1478 = vmatpush1.msra.mxu0 0.0
    %1479 = vmatprep.subr.mxu0 0.0
    %1480 = vmatpush1.msra.mxu0 0.0
    %1481 = vmatprep.subr.mxu0 0.0
    %1482 = vmatpush1.msra.mxu0 0.0
    %1483 = vmatprep.subr.mxu0 0.0
    %1484 = vmatpush1.msra.mxu0 0.0
    %1485 = vmatprep.subr.mxu0 0.0
    %1486 = vmatpush1.msra.mxu0 0.0
    %1487 = vmatprep.subr.mxu0 0.0
    %1488 = vmatpush1.msra.mxu0 0.0
    %1489 = vmatprep.subr.mxu0 0.0
    %1490 = vmatpush1.msra.mxu0 0.0
    %1491 = vmatprep.subr.mxu0 0.0
    %1492 = vmatpush1.msra.mxu0 0.0
    %1493 = vmatprep.subr.mxu0 0.0
    %1494 = vmatpush1.msra.mxu0 0.0
    %1495 = vmatprep.subr.mxu0 0.0
    %1496 = vmatpush1.msra.mxu0 0.0
    %1497 = vmatprep.subr.mxu0 0.0
    %1498 = vmatpush1.msra.mxu0 0.0
    %1499 = vmatprep.subr.mxu0 0.0
    %1500 = vmatpush1.msra.mxu0 0.0
    %1501 = vmatprep.subr.mxu0 0.0
    %1502 = vmatpush1.msra.mxu0 0.0
    %1503 = vmatprep.subr.mxu0 0.0
    %1504 = vmatpush1.msra.mxu0 0.0
    %1505 = vmatprep.subr.mxu0 0.0
    %1506 = vmatpush1.msra.mxu0 0.0
    %1507 = vmatprep.subr.mxu0 0.0
    %1508 = vmatpush1.msra.mxu0 0.0
    %1509 = vmatprep.subr.mxu0 0.0
    %1510 = vmatpush1.msra.mxu0 0.0
    %1511 = vmatprep.subr.mxu0 0.0
    %1512 = vmatpush1.msra.mxu0 0.0
    %1513 = vmatprep.subr.mxu0 0.0
    %1514 = vmatpush1.msra.mxu0 0.0
    %1515 = vmatprep.subr.mxu0 0.0
    %1516 = vmatpush1.msra.mxu0 0.0
    %1517 = vmatprep.mubr.f32.mxu0 0.0
    %v1518 = vand.u32 %v1352, 4294901760
    %1519 = vmatmul.mubr.f32.gmra.mrb[0].mxu0 %v1518
    %v1520 = vpop.f32.mrb[0].mxu0
    %v1521 = vadd.f32 %v1430, %v1520
    %v1522 = vpop.f32.mrb[0].mxu0
    %1523 = vdwg.mxu0
    %1524 = vmatprep.subr.mxu0 0.0
    %v1525 = vand.u32 %v27, 4294901760
    %v1526 = vsub.f32 %v27, %v1525
    %1527 = vmatpush1.msra.mxu0 %v1526
    %1528 = vmatprep.subr.mxu0 0.0
    %v1529 = vand.u32 %v28, 4294901760
    %v1530 = vsub.f32 %v28, %v1529
    %1531 = vmatpush1.msra.mxu0 %v1530
    %1532 = vmatprep.subr.mxu0 0.0
    %v1533 = vand.u32 %v29, 4294901760
    %v1534 = vsub.f32 %v29, %v1533
    %1535 = vmatpush1.msra.mxu0 %v1534
    %1536 = vmatprep.subr.mxu0 0.0
    %v1537 = vand.u32 %v30, 4294901760
    %v1538 = vsub.f32 %v30, %v1537
    %1539 = vmatpush1.msra.mxu0 %v1538
    %1540 = vmatprep.subr.mxu0 0.0
    %1541 = vmatpush1.msra.mxu0 0.0
    %1542 = vmatprep.subr.mxu0 0.0
    %1543 = vmatpush1.msra.mxu0 0.0
    %1544 = vmatprep.subr.mxu0 0.0
    %1545 = vmatpush1.msra.mxu0 0.0
    %1546 = vmatprep.subr.mxu0 0.0
    %1547 = vmatpush1.msra.mxu0 0.0
    %1548 = vmatprep.subr.mxu0 0.0
    %1549 = vmatpush1.msra.mxu0 0.0
    %1550 = vmatprep.subr.mxu0 0.0
    %1551 = vmatpush1.msra.mxu0 0.0
    %1552 = vmatprep.subr.mxu0 0.0
    %1553 = vmatpush1.msra.mxu0 0.0
    %1554 = vmatprep.subr.mxu0 0.0
    %1555 = vmatpush1.msra.mxu0 0.0
    %1556 = vmatprep.subr.mxu0 0.0
    %1557 = vmatpush1.msra.mxu0 0.0
    %1558 = vmatprep.subr.mxu0 0.0
    %1559 = vmatpush1.msra.mxu0 0.0
    %1560 = vmatprep.subr.mxu0 0.0
    %1561 = vmatpush1.msra.mxu0 0.0
    %1562 = vmatprep.subr.mxu0 0.0
    %1563 = vmatpush1.msra.mxu0 0.0
    %1564 = vmatprep.subr.mxu0 0.0
    %1565 = vmatpush1.msra.mxu0 0.0
    %1566 = vmatprep.subr.mxu0 0.0
    %1567 = vmatpush1.msra.mxu0 0.0
    %1568 = vmatprep.subr.mxu0 0.0
    %1569 = vmatpush1.msra.mxu0 0.0
    %1570 = vmatprep.subr.mxu0 0.0
    %1571 = vmatpush1.msra.mxu0 0.0
    %1572 = vmatprep.subr.mxu0 0.0
    %1573 = vmatpush1.msra.mxu0 0.0
    %1574 = vmatprep.subr.mxu0 0.0
    %1575 = vmatpush1.msra.mxu0 0.0
    %1576 = vmatprep.subr.mxu0 0.0
    %1577 = vmatpush1.msra.mxu0 0.0
    %1578 = vmatprep.subr.mxu0 0.0
    %1579 = vmatpush1.msra.mxu0 0.0
    %1580 = vmatprep.subr.mxu0 0.0
    %1581 = vmatpush1.msra.mxu0 0.0
    %1582 = vmatprep.subr.mxu0 0.0
    %1583 = vmatpush1.msra.mxu0 0.0
    %1584 = vmatprep.subr.mxu0 0.0
    %1585 = vmatpush1.msra.mxu0 0.0
    %1586 = vmatprep.subr.mxu0 0.0
    %1587 = vmatpush1.msra.mxu0 0.0
    %1588 = vmatprep.subr.mxu0 0.0
    %1589 = vmatpush1.msra.mxu0 0.0
    %1590 = vmatprep.subr.mxu0 0.0
    %1591 = vmatpush1.msra.mxu0 0.0
    %1592 = vmatprep.subr.mxu0 0.0
    %1593 = vmatpush1.msra.mxu0 0.0
    %1594 = vmatprep.subr.mxu0 0.0
    %1595 = vmatpush1.msra.mxu0 0.0
    %1596 = vmatprep.mubr.f32.mxu0 0.0
    %v1597 = vand.u32 %v1352, 4294901760
    %v1598 = vsub.f32 %v1352, %v1597
    %1599 = vmatmul.mubr.f32.gmra.mrb[0].mxu0 %v1598
    %v1600 = vpop.f32.mrb[0].mxu0
    %v1601 = vadd.f32 %v1521, %v1600
    %v1602 = vpop.f32.mrb[0].mxu0
    %1603 = vdwg.mxu0
    %1604 = vmatprep.subr.mxu0 0.0
    %v1605 = vand.u32 %v27, 4294901760
    %1606 = vmatpush1.msra.mxu0 %v1605
    %1607 = vmatprep.subr.mxu0 0.0
    %v1608 = vand.u32 %v28, 4294901760
    %1609 = vmatpush1.msra.mxu0 %v1608
    %1610 = vmatprep.subr.mxu0 0.0
    %v1611 = vand.u32 %v29, 4294901760
    %1612 = vmatpush1.msra.mxu0 %v1611
    %1613 = vmatprep.subr.mxu0 0.0
    %v1614 = vand.u32 %v30, 4294901760
    %1615 = vmatpush1.msra.mxu0 %v1614
    %1616 = vmatprep.subr.mxu0 0.0
    %1617 = vmatpush1.msra.mxu0 0.0
    %1618 = vmatprep.subr.mxu0 0.0
    %1619 = vmatpush1.msra.mxu0 0.0
    %1620 = vmatprep.subr.mxu0 0.0
    %1621 = vmatpush1.msra.mxu0 0.0
    %1622 = vmatprep.subr.mxu0 0.0
    %1623 = vmatpush1.msra.mxu0 0.0
    %1624 = vmatprep.subr.mxu0 0.0
    %1625 = vmatpush1.msra.mxu0 0.0
    %1626 = vmatprep.subr.mxu0 0.0
    %1627 = vmatpush1.msra.mxu0 0.0
    %1628 = vmatprep.subr.mxu0 0.0
    %1629 = vmatpush1.msra.mxu0 0.0
    %1630 = vmatprep.subr.mxu0 0.0
    %1631 = vmatpush1.msra.mxu0 0.0
    %1632 = vmatprep.subr.mxu0 0.0
    %1633 = vmatpush1.msra.mxu0 0.0
    %1634 = vmatprep.subr.mxu0 0.0
    %1635 = vmatpush1.msra.mxu0 0.0
    %1636 = vmatprep.subr.mxu0 0.0
    %1637 = vmatpush1.msra.mxu0 0.0
    %1638 = vmatprep.subr.mxu0 0.0
    %1639 = vmatpush1.msra.mxu0 0.0
    %1640 = vmatprep.subr.mxu0 0.0
    %1641 = vmatpush1.msra.mxu0 0.0
    %1642 = vmatprep.subr.mxu0 0.0
    %1643 = vmatpush1.msra.mxu0 0.0
    %1644 = vmatprep.subr.mxu0 0.0
    %1645 = vmatpush1.msra.mxu0 0.0
    %1646 = vmatprep.subr.mxu0 0.0
    %1647 = vmatpush1.msra.mxu0 0.0
    %1648 = vmatprep.subr.mxu0 0.0
    %1649 = vmatpush1.msra.mxu0 0.0
    %1650 = vmatprep.subr.mxu0 0.0
    %1651 = vmatpush1.msra.mxu0 0.0
    %1652 = vmatprep.subr.mxu0 0.0
    %1653 = vmatpush1.msra.mxu0 0.0
    %1654 = vmatprep.subr.mxu0 0.0
    %1655 = vmatpush1.msra.mxu0 0.0
    %1656 = vmatprep.subr.mxu0 0.0
    %1657 = vmatpush1.msra.mxu0 0.0
    %1658 = vmatprep.subr.mxu0 0.0
    %1659 = vmatpush1.msra.mxu0 0.0
    %1660 = vmatprep.subr.mxu0 0.0
    %1661 = vmatpush1.msra.mxu0 0.0
    %1662 = vmatprep.subr.mxu0 0.0
    %1663 = vmatpush1.msra.mxu0 0.0
    %1664 = vmatprep.subr.mxu0 0.0
    %1665 = vmatpush1.msra.mxu0 0.0
    %1666 = vmatprep.subr.mxu0 0.0
    %1667 = vmatpush1.msra.mxu0 0.0
    %1668 = vmatprep.subr.mxu0 0.0
    %1669 = vmatpush1.msra.mxu0 0.0
    %1670 = vmatprep.subr.mxu0 0.0
    %1671 = vmatpush1.msra.mxu0 0.0
    %1672 = vmatprep.mubr.f32.mxu0 0.0
    %v1673 = vand.u32 %v1352, 4294901760
    %v1674 = vsub.f32 %v1352, %v1673
    %v1675 = vand.u32 %v1674, 4294901760
    %1676 = vmatmul.mubr.f32.gmra.mrb[0].mxu0 %v1675
    %v1677 = vpop.f32.mrb[0].mxu0
    %v1678 = vadd.f32 %v1601, %v1677
    %v1679 = vpop.f32.mrb[0].mxu0
    %1680 = vdwg.mxu0
    %1681 = vmatprep.subr.mxu0 0.0
    %v1682 = vand.u32 %v27, 4294901760
    %v1683 = vsub.f32 %v27, %v1682
    %v1684 = vand.u32 %v1683, 4294901760
    %1685 = vmatpush1.msra.mxu0 %v1684
    %1686 = vmatprep.subr.mxu0 0.0
    %v1687 = vand.u32 %v28, 4294901760
    %v1688 = vsub.f32 %v28, %v1687
    %v1689 = vand.u32 %v1688, 4294901760
    %1690 = vmatpush1.msra.mxu0 %v1689
    %1691 = vmatprep.subr.mxu0 0.0
    %v1692 = vand.u32 %v29, 4294901760
    %v1693 = vsub.f32 %v29, %v1692
    %v1694 = vand.u32 %v1693, 4294901760
    %1695 = vmatpush1.msra.mxu0 %v1694
    %1696 = vmatprep.subr.mxu0 0.0
    %v1697 = vand.u32 %v30, 4294901760
    %v1698 = vsub.f32 %v30, %v1697
    %v1699 = vand.u32 %v1698, 4294901760
    %1700 = vmatpush1.msra.mxu0 %v1699
    %1701 = vmatprep.subr.mxu0 0.0
    %1702 = vmatpush1.msra.mxu0 0.0
    %1703 = vmatprep.subr.mxu0 0.0
    %1704 = vmatpush1.msra.mxu0 0.0
    %1705 = vmatprep.subr.mxu0 0.0
    %1706 = vmatpush1.msra.mxu0 0.0
    %1707 = vmatprep.subr.mxu0 0.0
    %1708 = vmatpush1.msra.mxu0 0.0
    %1709 = vmatprep.subr.mxu0 0.0
    %1710 = vmatpush1.msra.mxu0 0.0
    %1711 = vmatprep.subr.mxu0 0.0
    %1712 = vmatpush1.msra.mxu0 0.0
    %1713 = vmatprep.subr.mxu0 0.0
    %1714 = vmatpush1.msra.mxu0 0.0
    %1715 = vmatprep.subr.mxu0 0.0
    %1716 = vmatpush1.msra.mxu0 0.0
    %1717 = vmatprep.subr.mxu0 0.0
    %1718 = vmatpush1.msra.mxu0 0.0
    %1719 = vmatprep.subr.mxu0 0.0
    %1720 = vmatpush1.msra.mxu0 0.0
    %1721 = vmatprep.subr.mxu0 0.0
    %1722 = vmatpush1.msra.mxu0 0.0
    %1723 = vmatprep.subr.mxu0 0.0
    %1724 = vmatpush1.msra.mxu0 0.0
    %1725 = vmatprep.subr.mxu0 0.0
    %1726 = vmatpush1.msra.mxu0 0.0
    %1727 = vmatprep.subr.mxu0 0.0
    %1728 = vmatpush1.msra.mxu0 0.0
    %1729 = vmatprep.subr.mxu0 0.0
    %1730 = vmatpush1.msra.mxu0 0.0
    %1731 = vmatprep.subr.mxu0 0.0
    %1732 = vmatpush1.msra.mxu0 0.0
    %1733 = vmatprep.subr.mxu0 0.0
    %1734 = vmatpush1.msra.mxu0 0.0
    %1735 = vmatprep.subr.mxu0 0.0
    %1736 = vmatpush1.msra.mxu0 0.0
    %1737 = vmatprep.subr.mxu0 0.0
    %1738 = vmatpush1.msra.mxu0 0.0
    %1739 = vmatprep.subr.mxu0 0.0
    %1740 = vmatpush1.msra.mxu0 0.0
    %1741 = vmatprep.subr.mxu0 0.0
    %1742 = vmatpush1.msra.mxu0 0.0
    %1743 = vmatprep.subr.mxu0 0.0
    %1744 = vmatpush1.msra.mxu0 0.0
    %1745 = vmatprep.subr.mxu0 0.0
    %1746 = vmatpush1.msra.mxu0 0.0
    %1747 = vmatprep.subr.mxu0 0.0
    %1748 = vmatpush1.msra.mxu0 0.0
    %1749 = vmatprep.subr.mxu0 0.0
    %1750 = vmatpush1.msra.mxu0 0.0
    %1751 = vmatprep.subr.mxu0 0.0
    %1752 = vmatpush1.msra.mxu0 0.0
    %1753 = vmatprep.subr.mxu0 0.0
    %1754 = vmatpush1.msra.mxu0 0.0
    %1755 = vmatprep.subr.mxu0 0.0
    %1756 = vmatpush1.msra.mxu0 0.0
    %1757 = vmatprep.mubr.f32.mxu0 0.0
    %v1758 = vand.u32 %v1352, 4294901760
    %1759 = vmatmul.mubr.f32.gmra.mrb[0].mxu0 %v1758
    %v1760 = vpop.f32.mrb[0].mxu0
    %v1761 = vadd.f32 %v1678, %v1760
    %v1762 = vpop.f32.mrb[0].mxu0
    %1763 = vdwg.mxu0
    %1764 = vmatprep.subr.mxu0 0.0
    %v1765 = vand.u32 %v27, 4294901760
    %1766 = vmatpush1.msra.mxu0 %v1765
    %1767 = vmatprep.subr.mxu0 0.0
    %v1768 = vand.u32 %v28, 4294901760
    %1769 = vmatpush1.msra.mxu0 %v1768
    %1770 = vmatprep.subr.mxu0 0.0
    %v1771 = vand.u32 %v29, 4294901760
    %1772 = vmatpush1.msra.mxu0 %v1771
    %1773 = vmatprep.subr.mxu0 0.0
    %v1774 = vand.u32 %v30, 4294901760
    %1775 = vmatpush1.msra.mxu0 %v1774
    %1776 = vmatprep.subr.mxu0 0.0
    %1777 = vmatpush1.msra.mxu0 0.0
    %1778 = vmatprep.subr.mxu0 0.0
    %1779 = vmatpush1.msra.mxu0 0.0
    %1780 = vmatprep.subr.mxu0 0.0
    %1781 = vmatpush1.msra.mxu0 0.0
    %1782 = vmatprep.subr.mxu0 0.0
    %1783 = vmatpush1.msra.mxu0 0.0
    %1784 = vmatprep.subr.mxu0 0.0
    %1785 = vmatpush1.msra.mxu0 0.0
    %1786 = vmatprep.subr.mxu0 0.0
    %1787 = vmatpush1.msra.mxu0 0.0
    %1788 = vmatprep.subr.mxu0 0.0
    %1789 = vmatpush1.msra.mxu0 0.0
    %1790 = vmatprep.subr.mxu0 0.0
    %1791 = vmatpush1.msra.mxu0 0.0
    %1792 = vmatprep.subr.mxu0 0.0
    %1793 = vmatpush1.msra.mxu0 0.0
    %1794 = vmatprep.subr.mxu0 0.0
    %1795 = vmatpush1.msra.mxu0 0.0
    %1796 = vmatprep.subr.mxu0 0.0
    %1797 = vmatpush1.msra.mxu0 0.0
    %1798 = vmatprep.subr.mxu0 0.0
    %1799 = vmatpush1.msra.mxu0 0.0
    %1800 = vmatprep.subr.mxu0 0.0
    %1801 = vmatpush1.msra.mxu0 0.0
    %1802 = vmatprep.subr.mxu0 0.0
    %1803 = vmatpush1.msra.mxu0 0.0
    %1804 = vmatprep.subr.mxu0 0.0
    %1805 = vmatpush1.msra.mxu0 0.0
    %1806 = vmatprep.subr.mxu0 0.0
    %1807 = vmatpush1.msra.mxu0 0.0
    %1808 = vmatprep.subr.mxu0 0.0
    %1809 = vmatpush1.msra.mxu0 0.0
    %1810 = vmatprep.subr.mxu0 0.0
    %1811 = vmatpush1.msra.mxu0 0.0
    %1812 = vmatprep.subr.mxu0 0.0
    %1813 = vmatpush1.msra.mxu0 0.0
    %1814 = vmatprep.subr.mxu0 0.0
    %1815 = vmatpush1.msra.mxu0 0.0
    %1816 = vmatprep.subr.mxu0 0.0
    %1817 = vmatpush1.msra.mxu0 0.0
    %1818 = vmatprep.subr.mxu0 0.0
    %1819 = vmatpush1.msra.mxu0 0.0
    %1820 = vmatprep.subr.mxu0 0.0
    %1821 = vmatpush1.msra.mxu0 0.0
    %1822 = vmatprep.subr.mxu0 0.0
    %1823 = vmatpush1.msra.mxu0 0.0
    %1824 = vmatprep.subr.mxu0 0.0
    %1825 = vmatpush1.msra.mxu0 0.0
    %1826 = vmatprep.subr.mxu0 0.0
    %1827 = vmatpush1.msra.mxu0 0.0
    %1828 = vmatprep.subr.mxu0 0.0
    %1829 = vmatpush1.msra.mxu0 0.0
    %1830 = vmatprep.subr.mxu0 0.0
    %1831 = vmatpush1.msra.mxu0 0.0
    %1832 = vmatprep.mubr.f32.mxu0 0.0
    %v1833 = vand.u32 %v1352, 4294901760
    %1834 = vmatmul.mubr.f32.gmra.mrb[0].mxu0 %v1833
    %v1835 = vpop.f32.mrb[0].mxu0
    %v1836 = vadd.f32 %v1761, %v1835
    %v1837 = vpop.f32.mrb[0].mxu0
    %1838 = vdwg.mxu0
    %v1839 = vadd.f32 %v824, %v1836
    %v1840 = vmul.f32 %v1839, %v836
    %v1841 = vtanh.pop %v1840
    %v1842 = vmul.f32 %v836, %v1841
    %v1843 = vadd.f32 %v1842, %v837
    %v1844 = vmul.f32 %v1843, %v1342
    %1846 = vrot.lane.b32.xlu0 %v1843, 64
    %v1847 = vpop.permute.xlu0 %1846
    %v1849 = vmul.f32 %v1843, %v1847
    %1851 = vrot.lane.b32.xlu0 %v1849, 32
    %v1852 = vpop.permute.xlu0 %1851
    %v1854 = vadd.f32 %v1844, %v1852
    %v1855 = vtanh.pop %v1854
    %1857 = vrot.lane.b32.xlu0 %v1855, 64
    %v1858 = vpop.permute.xlu0 %1857
    %v1860 = vmul.f32 %v1843, %v1858
    %1862 = vrot.lane.b32.xlu0 %v1860, 32
    %v1863 = vpop.permute.xlu0 %1862
    %v1864 = vsel %vm838, %v1863, 0
    %1866 = vmatprep.subr.mxu0 0.0
    %v1867 = vand.u32 %v27, 4294901760
    %1868 = vmatpush1.msra.mxu0 %v1867
    %1869 = vmatprep.subr.mxu0 0.0
    %v1870 = vand.u32 %v28, 4294901760
    %1871 = vmatpush1.msra.mxu0 %v1870
    %1872 = vmatprep.subr.mxu0 0.0
    %v1873 = vand.u32 %v29, 4294901760
    %1874 = vmatpush1.msra.mxu0 %v1873
    %1875 = vmatprep.subr.mxu0 0.0
    %v1876 = vand.u32 %v30, 4294901760
    %1877 = vmatpush1.msra.mxu0 %v1876
    %1878 = vmatprep.subr.mxu0 0.0
    %1879 = vmatpush1.msra.mxu0 0.0
    %1880 = vmatprep.subr.mxu0 0.0
    %1881 = vmatpush1.msra.mxu0 0.0
    %1882 = vmatprep.subr.mxu0 0.0
    %1883 = vmatpush1.msra.mxu0 0.0
    %1884 = vmatprep.subr.mxu0 0.0
    %1885 = vmatpush1.msra.mxu0 0.0
    %1886 = vmatprep.subr.mxu0 0.0
    %1887 = vmatpush1.msra.mxu0 0.0
    %1888 = vmatprep.subr.mxu0 0.0
    %1889 = vmatpush1.msra.mxu0 0.0
    %1890 = vmatprep.subr.mxu0 0.0
    %1891 = vmatpush1.msra.mxu0 0.0
    %1892 = vmatprep.subr.mxu0 0.0
    %1893 = vmatpush1.msra.mxu0 0.0
    %1894 = vmatprep.subr.mxu0 0.0
    %1895 = vmatpush1.msra.mxu0 0.0
    %1896 = vmatprep.subr.mxu0 0.0
    %1897 = vmatpush1.msra.mxu0 0.0
    %1898 = vmatprep.subr.mxu0 0.0
    %1899 = vmatpush1.msra.mxu0 0.0
    %1900 = vmatprep.subr.mxu0 0.0
    %1901 = vmatpush1.msra.mxu0 0.0
    %1902 = vmatprep.subr.mxu0 0.0
    %1903 = vmatpush1.msra.mxu0 0.0
    %1904 = vmatprep.subr.mxu0 0.0
    %1905 = vmatpush1.msra.mxu0 0.0
    %1906 = vmatprep.subr.mxu0 0.0
    %1907 = vmatpush1.msra.mxu0 0.0
    %1908 = vmatprep.subr.mxu0 0.0
    %1909 = vmatpush1.msra.mxu0 0.0
    %1910 = vmatprep.subr.mxu0 0.0
    %1911 = vmatpush1.msra.mxu0 0.0
    %1912 = vmatprep.subr.mxu0 0.0
    %1913 = vmatpush1.msra.mxu0 0.0
    %1914 = vmatprep.subr.mxu0 0.0
    %1915 = vmatpush1.msra.mxu0 0.0
    %1916 = vmatprep.subr.mxu0 0.0
    %1917 = vmatpush1.msra.mxu0 0.0
    %1918 = vmatprep.subr.mxu0 0.0
    %1919 = vmatpush1.msra.mxu0 0.0
    %1920 = vmatprep.subr.mxu0 0.0
    %1921 = vmatpush1.msra.mxu0 0.0
    %1922 = vmatprep.subr.mxu0 0.0
    %1923 = vmatpush1.msra.mxu0 0.0
    %1924 = vmatprep.subr.mxu0 0.0
    %1925 = vmatpush1.msra.mxu0 0.0
    %1926 = vmatprep.subr.mxu0 0.0
    %1927 = vmatpush1.msra.mxu0 0.0
    %1928 = vmatprep.subr.mxu0 0.0
    %1929 = vmatpush1.msra.mxu0 0.0
    %1930 = vmatprep.subr.mxu0 0.0
    %1931 = vmatpush1.msra.mxu0 0.0
    %1932 = vmatprep.subr.mxu0 0.0
    %1933 = vmatpush1.msra.mxu0 0.0
    %1934 = vmatprep.mubr.f32.mxu0 0.0
    %v1935 = vand.u32 %v1864, 4294901760
    %v1936 = vsub.f32 %v1864, %v1935
    %v1937 = vand.u32 %v1936, 4294901760
    %v1938 = vsub.f32 %v1936, %v1937
    %v1939 = vand.u32 %v1938, 4294901760
    %1940 = vmatmul.mubr.f32.gmra.mrb[0].mxu0 %v1939
    %v1941 = vpop.f32.mrb[0].mxu0
    %v1942 = vadd.f32 0.0, %v1941
    %v1943 = vpop.f32.mrb[0].mxu0
    %1944 = vdwg.mxu0
    %1945 = vmatprep.subr.mxu0 0.0
    %v1946 = vand.u32 %v27, 4294901760
    %v1947 = vsub.f32 %v27, %v1946
    %v1948 = vand.u32 %v1947, 4294901760
    %v1949 = vsub.f32 %v1947, %v1948
    %v1950 = vand.u32 %v1949, 4294901760
    %1951 = vmatpush1.msra.mxu0 %v1950
    %1952 = vmatprep.subr.mxu0 0.0
    %v1953 = vand.u32 %v28, 4294901760
    %v1954 = vsub.f32 %v28, %v1953
    %v1955 = vand.u32 %v1954, 4294901760
    %v1956 = vsub.f32 %v1954, %v1955
    %v1957 = vand.u32 %v1956, 4294901760
    %1958 = vmatpush1.msra.mxu0 %v1957
    %1959 = vmatprep.subr.mxu0 0.0
    %v1960 = vand.u32 %v29, 4294901760
    %v1961 = vsub.f32 %v29, %v1960
    %v1962 = vand.u32 %v1961, 4294901760
    %v1963 = vsub.f32 %v1961, %v1962
    %v1964 = vand.u32 %v1963, 4294901760
    %1965 = vmatpush1.msra.mxu0 %v1964
    %1966 = vmatprep.subr.mxu0 0.0
    %v1967 = vand.u32 %v30, 4294901760
    %v1968 = vsub.f32 %v30, %v1967
    %v1969 = vand.u32 %v1968, 4294901760
    %v1970 = vsub.f32 %v1968, %v1969
    %v1971 = vand.u32 %v1970, 4294901760
    %1972 = vmatpush1.msra.mxu0 %v1971
    %1973 = vmatprep.subr.mxu0 0.0
    %1974 = vmatpush1.msra.mxu0 0.0
    %1975 = vmatprep.subr.mxu0 0.0
    %1976 = vmatpush1.msra.mxu0 0.0
    %1977 = vmatprep.subr.mxu0 0.0
    %1978 = vmatpush1.msra.mxu0 0.0
    %1979 = vmatprep.subr.mxu0 0.0
    %1980 = vmatpush1.msra.mxu0 0.0
    %1981 = vmatprep.subr.mxu0 0.0
    %1982 = vmatpush1.msra.mxu0 0.0
    %1983 = vmatprep.subr.mxu0 0.0
    %1984 = vmatpush1.msra.mxu0 0.0
    %1985 = vmatprep.subr.mxu0 0.0
    %1986 = vmatpush1.msra.mxu0 0.0
    %1987 = vmatprep.subr.mxu0 0.0
    %1988 = vmatpush1.msra.mxu0 0.0
    %1989 = vmatprep.subr.mxu0 0.0
    %1990 = vmatpush1.msra.mxu0 0.0
    %1991 = vmatprep.subr.mxu0 0.0
    %1992 = vmatpush1.msra.mxu0 0.0
    %1993 = vmatprep.subr.mxu0 0.0
    %1994 = vmatpush1.msra.mxu0 0.0
    %1995 = vmatprep.subr.mxu0 0.0
    %1996 = vmatpush1.msra.mxu0 0.0
    %1997 = vmatprep.subr.mxu0 0.0
    %1998 = vmatpush1.msra.mxu0 0.0
    %1999 = vmatprep.subr.mxu0 0.0
    %2000 = vmatpush1.msra.mxu0 0.0
    %2001 = vmatprep.subr.mxu0 0.0
    %2002 = vmatpush1.msra.mxu0 0.0
    %2003 = vmatprep.subr.mxu0 0.0
    %2004 = vmatpush1.msra.mxu0 0.0
    %2005 = vmatprep.subr.mxu0 0.0
    %2006 = vmatpush1.msra.mxu0 0.0
    %2007 = vmatprep.subr.mxu0 0.0
    %2008 = vmatpush1.msra.mxu0 0.0
    %2009 = vmatprep.subr.mxu0 0.0
    %2010 = vmatpush1.msra.mxu0 0.0
    %2011 = vmatprep.subr.mxu0 0.0
    %2012 = vmatpush1.msra.mxu0 0.0
    %2013 = vmatprep.subr.mxu0 0.0
    %2014 = vmatpush1.msra.mxu0 0.0
    %2015 = vmatprep.subr.mxu0 0.0
    %2016 = vmatpush1.msra.mxu0 0.0
    %2017 = vmatprep.subr.mxu0 0.0
    %2018 = vmatpush1.msra.mxu0 0.0
    %2019 = vmatprep.subr.mxu0 0.0
    %2020 = vmatpush1.msra.mxu0 0.0
    %2021 = vmatprep.subr.mxu0 0.0
    %2022 = vmatpush1.msra.mxu0 0.0
    %2023 = vmatprep.subr.mxu0 0.0
    %2024 = vmatpush1.msra.mxu0 0.0
    %2025 = vmatprep.subr.mxu0 0.0
    %2026 = vmatpush1.msra.mxu0 0.0
    %2027 = vmatprep.subr.mxu0 0.0
    %2028 = vmatpush1.msra.mxu0 0.0
    %2029 = vmatprep.mubr.f32.mxu0 0.0
    %v2030 = vand.u32 %v1864, 4294901760
    %2031 = vmatmul.mubr.f32.gmra.mrb[0].mxu0 %v2030
    %v2032 = vpop.f32.mrb[0].mxu0
    %v2033 = vadd.f32 %v1942, %v2032
    %v2034 = vpop.f32.mrb[0].mxu0
    %2035 = vdwg.mxu0
    %2036 = vmatprep.subr.mxu0 0.0
    %v2037 = vand.u32 %v27, 4294901760
    %v2038 = vsub.f32 %v27, %v2037
    %2039 = vmatpush1.msra.mxu0 %v2038
    %2040 = vmatprep.subr.mxu0 0.0
    %v2041 = vand.u32 %v28, 4294901760
    %v2042 = vsub.f32 %v28, %v2041
    %2043 = vmatpush1.msra.mxu0 %v2042
    %2044 = vmatprep.subr.mxu0 0.0
    %v2045 = vand.u32 %v29, 4294901760
    %v2046 = vsub.f32 %v29, %v2045
    %2047 = vmatpush1.msra.mxu0 %v2046
    %2048 = vmatprep.subr.mxu0 0.0
    %v2049 = vand.u32 %v30, 4294901760
    %v2050 = vsub.f32 %v30, %v2049
    %2051 = vmatpush1.msra.mxu0 %v2050
    %2052 = vmatprep.subr.mxu0 0.0
    %2053 = vmatpush1.msra.mxu0 0.0
    %2054 = vmatprep.subr.mxu0 0.0
    %2055 = vmatpush1.msra.mxu0 0.0
    %2056 = vmatprep.subr.mxu0 0.0
    %2057 = vmatpush1.msra.mxu0 0.0
    %2058 = vmatprep.subr.mxu0 0.0
    %2059 = vmatpush1.msra.mxu0 0.0
    %2060 = vmatprep.subr.mxu0 0.0
    %2061 = vmatpush1.msra.mxu0 0.0
    %2062 = vmatprep.subr.mxu0 0.0
    %2063 = vmatpush1.msra.mxu0 0.0
    %2064 = vmatprep.subr.mxu0 0.0
    %2065 = vmatpush1.msra.mxu0 0.0
    %2066 = vmatprep.subr.mxu0 0.0
    %2067 = vmatpush1.msra.mxu0 0.0
    %2068 = vmatprep.subr.mxu0 0.0
    %2069 = vmatpush1.msra.mxu0 0.0
    %2070 = vmatprep.subr.mxu0 0.0
    %2071 = vmatpush1.msra.mxu0 0.0
    %2072 = vmatprep.subr.mxu0 0.0
    %2073 = vmatpush1.msra.mxu0 0.0
    %2074 = vmatprep.subr.mxu0 0.0
    %2075 = vmatpush1.msra.mxu0 0.0
    %2076 = vmatprep.subr.mxu0 0.0
    %2077 = vmatpush1.msra.mxu0 0.0
    %2078 = vmatprep.subr.mxu0 0.0
    %2079 = vmatpush1.msra.mxu0 0.0
    %2080 = vmatprep.subr.mxu0 0.0
    %2081 = vmatpush1.msra.mxu0 0.0
    %2082 = vmatprep.subr.mxu0 0.0
    %2083 = vmatpush1.msra.mxu0 0.0
    %2084 = vmatprep.subr.mxu0 0.0
    %2085 = vmatpush1.msra.mxu0 0.0
    %2086 = vmatprep.subr.mxu0 0.0
    %2087 = vmatpush1.msra.mxu0 0.0
    %2088 = vmatprep.subr.mxu0 0.0
    %2089 = vmatpush1.msra.mxu0 0.0
    %2090 = vmatprep.subr.mxu0 0.0
    %2091 = vmatpush1.msra.mxu0 0.0
    %2092 = vmatprep.subr.mxu0 0.0
    %2093 = vmatpush1.msra.mxu0 0.0
    %2094 = vmatprep.subr.mxu0 0.0
    %2095 = vmatpush1.msra.mxu0 0.0
    %2096 = vmatprep.subr.mxu0 0.0
    %2097 = vmatpush1.msra.mxu0 0.0
    %2098 = vmatprep.subr.mxu0 0.0
    %2099 = vmatpush1.msra.mxu0 0.0
    %2100 = vmatprep.subr.mxu0 0.0
    %2101 = vmatpush1.msra.mxu0 0.0
    %2102 = vmatprep.subr.mxu0 0.0
    %2103 = vmatpush1.msra.mxu0 0.0
    %2104 = vmatprep.subr.mxu0 0.0
    %2105 = vmatpush1.msra.mxu0 0.0
    %2106 = vmatprep.subr.mxu0 0.0
    %2107 = vmatpush1.msra.mxu0 0.0
    %2108 = vmatprep.mubr.f32.mxu0 0.0
    %v2109 = vand.u32 %v1864, 4294901760
    %v2110 = vsub.f32 %v1864, %v2109
    %2111 = vmatmul.mubr.f32.gmra.mrb[0].mxu0 %v2110
    %v2112 = vpop.f32.mrb[0].mxu0
    %v2113 = vadd.f32 %v2033, %v2112
    %v2114 = vpop.f32.mrb[0].mxu0
    %2115 = vdwg.mxu0
    %2116 = vmatprep.subr.mxu0 0.0
    %v2117 = vand.u32 %v27, 4294901760
    %2118 = vmatpush1.msra.mxu0 %v2117
    %2119 = vmatprep.subr.mxu0 0.0
    %v2120 = vand.u32 %v28, 4294901760
    %2121 = vmatpush1.msra.mxu0 %v2120
    %2122 = vmatprep.subr.mxu0 0.0
    %v2123 = vand.u32 %v29, 4294901760
    %2124 = vmatpush1.msra.mxu0 %v2123
    %2125 = vmatprep.subr.mxu0 0.0
    %v2126 = vand.u32 %v30, 4294901760
    %2127 = vmatpush1.msra.mxu0 %v2126
    %2128 = vmatprep.subr.mxu0 0.0
    %2129 = vmatpush1.msra.mxu0 0.0
    %2130 = vmatprep.subr.mxu0 0.0
    %2131 = vmatpush1.msra.mxu0 0.0
    %2132 = vmatprep.subr.mxu0 0.0
    %2133 = vmatpush1.msra.mxu0 0.0
    %2134 = vmatprep.subr.mxu0 0.0
    %2135 = vmatpush1.msra.mxu0 0.0
    %2136 = vmatprep.subr.mxu0 0.0
    %2137 = vmatpush1.msra.mxu0 0.0
    %2138 = vmatprep.subr.mxu0 0.0
    %2139 = vmatpush1.msra.mxu0 0.0
    %2140 = vmatprep.subr.mxu0 0.0
    %2141 = vmatpush1.msra.mxu0 0.0
    %2142 = vmatprep.subr.mxu0 0.0
    %2143 = vmatpush1.msra.mxu0 0.0
    %2144 = vmatprep.subr.mxu0 0.0
    %2145 = vmatpush1.msra.mxu0 0.0
    %2146 = vmatprep.subr.mxu0 0.0
    %2147 = vmatpush1.msra.mxu0 0.0
    %2148 = vmatprep.subr.mxu0 0.0
    %2149 = vmatpush1.msra.mxu0 0.0
    %2150 = vmatprep.subr.mxu0 0.0
    %2151 = vmatpush1.msra.mxu0 0.0
    %2152 = vmatprep.subr.mxu0 0.0
    %2153 = vmatpush1.msra.mxu0 0.0
    %2154 = vmatprep.subr.mxu0 0.0
    %2155 = vmatpush1.msra.mxu0 0.0
    %2156 = vmatprep.subr.mxu0 0.0
    %2157 = vmatpush1.msra.mxu0 0.0
    %2158 = vmatprep.subr.mxu0 0.0
    %2159 = vmatpush1.msra.mxu0 0.0
    %2160 = vmatprep.subr.mxu0 0.0
    %2161 = vmatpush1.msra.mxu0 0.0
    %2162 = vmatprep.subr.mxu0 0.0
    %2163 = vmatpush1.msra.mxu0 0.0
    %2164 = vmatprep.subr.mxu0 0.0
    %2165 = vmatpush1.msra.mxu0 0.0
    %2166 = vmatprep.subr.mxu0 0.0
    %2167 = vmatpush1.msra.mxu0 0.0
    %2168 = vmatprep.subr.mxu0 0.0
    %2169 = vmatpush1.msra.mxu0 0.0
    %2170 = vmatprep.subr.mxu0 0.0
    %2171 = vmatpush1.msra.mxu0 0.0
    %2172 = vmatprep.subr.mxu0 0.0
    %2173 = vmatpush1.msra.mxu0 0.0
    %2174 = vmatprep.subr.mxu0 0.0
    %2175 = vmatpush1.msra.mxu0 0.0
    %2176 = vmatprep.subr.mxu0 0.0
    %2177 = vmatpush1.msra.mxu0 0.0
    %2178 = vmatprep.subr.mxu0 0.0
    %2179 = vmatpush1.msra.mxu0 0.0
    %2180 = vmatprep.subr.mxu0 0.0
    %2181 = vmatpush1.msra.mxu0 0.0
    %2182 = vmatprep.subr.mxu0 0.0
    %2183 = vmatpush1.msra.mxu0 0.0
    %2184 = vmatprep.mubr.f32.mxu0 0.0
    %v2185 = vand.u32 %v1864, 4294901760
    %v2186 = vsub.f32 %v1864, %v2185
    %v2187 = vand.u32 %v2186, 4294901760
    %2188 = vmatmul.mubr.f32.gmra.mrb[0].mxu0 %v2187
    %v2189 = vpop.f32.mrb[0].mxu0
    %v2190 = vadd.f32 %v2113, %v2189
    %v2191 = vpop.f32.mrb[0].mxu0
    %2192 = vdwg.mxu0
    %2193 = vmatprep.subr.mxu0 0.0
    %v2194 = vand.u32 %v27, 4294901760
    %v2195 = vsub.f32 %v27, %v2194
    %v2196 = vand.u32 %v2195, 4294901760
    %2197 = vmatpush1.msra.mxu0 %v2196
    %2198 = vmatprep.subr.mxu0 0.0
    %v2199 = vand.u32 %v28, 4294901760
    %v2200 = vsub.f32 %v28, %v2199
    %v2201 = vand.u32 %v2200, 4294901760
    %2202 = vmatpush1.msra.mxu0 %v2201
    %2203 = vmatprep.subr.mxu0 0.0
    %v2204 = vand.u32 %v29, 4294901760
    %v2205 = vsub.f32 %v29, %v2204
    %v2206 = vand.u32 %v2205, 4294901760
    %2207 = vmatpush1.msra.mxu0 %v2206
    %2208 = vmatprep.subr.mxu0 0.0
    %v2209 = vand.u32 %v30, 4294901760
    %v2210 = vsub.f32 %v30, %v2209
    %v2211 = vand.u32 %v2210, 4294901760
    %2212 = vmatpush1.msra.mxu0 %v2211
    %2213 = vmatprep.subr.mxu0 0.0
    %2214 = vmatpush1.msra.mxu0 0.0
    %2215 = vmatprep.subr.mxu0 0.0
    %2216 = vmatpush1.msra.mxu0 0.0
    %2217 = vmatprep.subr.mxu0 0.0
    %2218 = vmatpush1.msra.mxu0 0.0
    %2219 = vmatprep.subr.mxu0 0.0
    %2220 = vmatpush1.msra.mxu0 0.0
    %2221 = vmatprep.subr.mxu0 0.0
    %2222 = vmatpush1.msra.mxu0 0.0
    %2223 = vmatprep.subr.mxu0 0.0
    %2224 = vmatpush1.msra.mxu0 0.0
    %2225 = vmatprep.subr.mxu0 0.0
    %2226 = vmatpush1.msra.mxu0 0.0
    %2227 = vmatprep.subr.mxu0 0.0
    %2228 = vmatpush1.msra.mxu0 0.0
    %2229 = vmatprep.subr.mxu0 0.0
    %2230 = vmatpush1.msra.mxu0 0.0
    %2231 = vmatprep.subr.mxu0 0.0
    %2232 = vmatpush1.msra.mxu0 0.0
    %2233 = vmatprep.subr.mxu0 0.0
    %2234 = vmatpush1.msra.mxu0 0.0
    %2235 = vmatprep.subr.mxu0 0.0
    %2236 = vmatpush1.msra.mxu0 0.0
    %2237 = vmatprep.subr.mxu0 0.0
    %2238 = vmatpush1.msra.mxu0 0.0
    %2239 = vmatprep.subr.mxu0 0.0
    %2240 = vmatpush1.msra.mxu0 0.0
    %2241 = vmatprep.subr.mxu0 0.0
    %2242 = vmatpush1.msra.mxu0 0.0
    %2243 = vmatprep.subr.mxu0 0.0
    %2244 = vmatpush1.msra.mxu0 0.0
    %2245 = vmatprep.subr.mxu0 0.0
    %2246 = vmatpush1.msra.mxu0 0.0
    %2247 = vmatprep.subr.mxu0 0.0
    %2248 = vmatpush1.msra.mxu0 0.0
    %2249 = vmatprep.subr.mxu0 0.0
    %2250 = vmatpush1.msra.mxu0 0.0
    %2251 = vmatprep.subr.mxu0 0.0
    %2252 = vmatpush1.msra.mxu0 0.0
    %2253 = vmatprep.subr.mxu0 0.0
    %2254 = vmatpush1.msra.mxu0 0.0
    %2255 = vmatprep.subr.mxu0 0.0
    %2256 = vmatpush1.msra.mxu0 0.0
    %2257 = vmatprep.subr.mxu0 0.0
    %2258 = vmatpush1.msra.mxu0 0.0
    %2259 = vmatprep.subr.mxu0 0.0
    %2260 = vmatpush1.msra.mxu0 0.0
    %2261 = vmatprep.subr.mxu0 0.0
    %2262 = vmatpush1.msra.mxu0 0.0
    %2263 = vmatprep.subr.mxu0 0.0
    %2264 = vmatpush1.msra.mxu0 0.0
    %2265 = vmatprep.subr.mxu0 0.0
    %2266 = vmatpush1.msra.mxu0 0.0
    %2267 = vmatprep.subr.mxu0 0.0
    %2268 = vmatpush1.msra.mxu0 0.0
    %2269 = vmatprep.mubr.f32.mxu0 0.0
    %v2270 = vand.u32 %v1864, 4294901760
    %2271 = vmatmul.mubr.f32.gmra.mrb[0].mxu0 %v2270
    %v2272 = vpop.f32.mrb[0].mxu0
    %v2273 = vadd.f32 %v2190, %v2272
    %v2274 = vpop.f32.mrb[0].mxu0
    %2275 = vdwg.mxu0
    %2276 = vmatprep.subr.mxu0 0.0
    %v2277 = vand.u32 %v27, 4294901760
    %2278 = vmatpush1.msra.mxu0 %v2277
    %2279 = vmatprep.subr.mxu0 0.0
    %v2280 = vand.u32 %v28, 4294901760
    %2281 = vmatpush1.msra.mxu0 %v2280
    %2282 = vmatprep.subr.mxu0 0.0
    %v2283 = vand.u32 %v29, 4294901760
    %2284 = vmatpush1.msra.mxu0 %v2283
    %2285 = vmatprep.subr.mxu0 0.0
    %v2286 = vand.u32 %v30, 4294901760
    %2287 = vmatpush1.msra.mxu0 %v2286
    %2288 = vmatprep.subr.mxu0 0.0
    %2289 = vmatpush1.msra.mxu0 0.0
    %2290 = vmatprep.subr.mxu0 0.0
    %2291 = vmatpush1.msra.mxu0 0.0
    %2292 = vmatprep.subr.mxu0 0.0
    %2293 = vmatpush1.msra.mxu0 0.0
    %2294 = vmatprep.subr.mxu0 0.0
    %2295 = vmatpush1.msra.mxu0 0.0
    %2296 = vmatprep.subr.mxu0 0.0
    %2297 = vmatpush1.msra.mxu0 0.0
    %2298 = vmatprep.subr.mxu0 0.0
    %2299 = vmatpush1.msra.mxu0 0.0
    %2300 = vmatprep.subr.mxu0 0.0
    %2301 = vmatpush1.msra.mxu0 0.0
    %2302 = vmatprep.subr.mxu0 0.0
    %2303 = vmatpush1.msra.mxu0 0.0
    %2304 = vmatprep.subr.mxu0 0.0
    %2305 = vmatpush1.msra.mxu0 0.0
    %2306 = vmatprep.subr.mxu0 0.0
    %2307 = vmatpush1.msra.mxu0 0.0
    %2308 = vmatprep.subr.mxu0 0.0
    %2309 = vmatpush1.msra.mxu0 0.0
    %2310 = vmatprep.subr.mxu0 0.0
    %2311 = vmatpush1.msra.mxu0 0.0
    %2312 = vmatprep.subr.mxu0 0.0
    %2313 = vmatpush1.msra.mxu0 0.0
    %2314 = vmatprep.subr.mxu0 0.0
    %2315 = vmatpush1.msra.mxu0 0.0
    %2316 = vmatprep.subr.mxu0 0.0
    %2317 = vmatpush1.msra.mxu0 0.0
    %2318 = vmatprep.subr.mxu0 0.0
    %2319 = vmatpush1.msra.mxu0 0.0
    %2320 = vmatprep.subr.mxu0 0.0
    %2321 = vmatpush1.msra.mxu0 0.0
    %2322 = vmatprep.subr.mxu0 0.0
    %2323 = vmatpush1.msra.mxu0 0.0
    %2324 = vmatprep.subr.mxu0 0.0
    %2325 = vmatpush1.msra.mxu0 0.0
    %2326 = vmatprep.subr.mxu0 0.0
    %2327 = vmatpush1.msra.mxu0 0.0
    %2328 = vmatprep.subr.mxu0 0.0
    %2329 = vmatpush1.msra.mxu0 0.0
    %2330 = vmatprep.subr.mxu0 0.0
    %2331 = vmatpush1.msra.mxu0 0.0
    %2332 = vmatprep.subr.mxu0 0.0
    %2333 = vmatpush1.msra.mxu0 0.0
    %2334 = vmatprep.subr.mxu0 0.0
    %2335 = vmatpush1.msra.mxu0 0.0
    %2336 = vmatprep.subr.mxu0 0.0
    %2337 = vmatpush1.msra.mxu0 0.0
    %2338 = vmatprep.subr.mxu0 0.0
    %2339 = vmatpush1.msra.mxu0 0.0
    %2340 = vmatprep.subr.mxu0 0.0
    %2341 = vmatpush1.msra.mxu0 0.0
    %2342 = vmatprep.subr.mxu0 0.0
    %2343 = vmatpush1.msra.mxu0 0.0
    %2344 = vmatprep.mubr.f32.mxu0 0.0
    %v2345 = vand.u32 %v1864, 4294901760
    %2346 = vmatmul.mubr.f32.gmra.mrb[0].mxu0 %v2345
    %v2347 = vpop.f32.mrb[0].mxu0
    %v2348 = vadd.f32 %v2273, %v2347
    %v2349 = vpop.f32.mrb[0].mxu0
    %2350 = vdwg.mxu0
    %v2351 = vadd.f32 %v825, %v2348
    %v2352 = vmul.f32 %v2351, %v836
    %v2353 = vtanh.pop %v2352
    %v2354 = vmul.f32 %v836, %v2353
    %v2355 = vadd.f32 %v2354, %v837
    %v2356 = vmul.f32 %v2355, %v1854
    %2358 = vrot.lane.b32.xlu0 %v2355, 64
    %v2359 = vpop.permute.xlu0 %2358
    %v2361 = vmul.f32 %v2355, %v2359
    %2363 = vrot.lane.b32.xlu0 %v2361, 32
    %v2364 = vpop.permute.xlu0 %2363
    %v2366 = vadd.f32 %v2356, %v2364
    %v2367 = vtanh.pop %v2366
    %2369 = vrot.lane.b32.xlu0 %v2367, 64
    %v2370 = vpop.permute.xlu0 %2369
    %v2372 = vmul.f32 %v2355, %v2370
    %2374 = vrot.lane.b32.xlu0 %v2372, 32
    %v2375 = vpop.permute.xlu0 %2374
    %v2376 = vsel %vm838, %v2375, 0
    %2378 = vmatprep.subr.mxu0 0.0
    %v2379 = vand.u32 %v27, 4294901760
    %2380 = vmatpush1.msra.mxu0 %v2379
    %2381 = vmatprep.subr.mxu0 0.0
    %v2382 = vand.u32 %v28, 4294901760
    %2383 = vmatpush1.msra.mxu0 %v2382
    %2384 = vmatprep.subr.mxu0 0.0
    %v2385 = vand.u32 %v29, 4294901760
    %2386 = vmatpush1.msra.mxu0 %v2385
    %2387 = vmatprep.subr.mxu0 0.0
    %v2388 = vand.u32 %v30, 4294901760
    %2389 = vmatpush1.msra.mxu0 %v2388
    %2390 = vmatprep.subr.mxu0 0.0
    %2391 = vmatpush1.msra.mxu0 0.0
    %2392 = vmatprep.subr.mxu0 0.0
    %2393 = vmatpush1.msra.mxu0 0.0
    %2394 = vmatprep.subr.mxu0 0.0
    %2395 = vmatpush1.msra.mxu0 0.0
    %2396 = vmatprep.subr.mxu0 0.0
    %2397 = vmatpush1.msra.mxu0 0.0
    %2398 = vmatprep.subr.mxu0 0.0
    %2399 = vmatpush1.msra.mxu0 0.0
    %2400 = vmatprep.subr.mxu0 0.0
    %2401 = vmatpush1.msra.mxu0 0.0
    %2402 = vmatprep.subr.mxu0 0.0
    %2403 = vmatpush1.msra.mxu0 0.0
    %2404 = vmatprep.subr.mxu0 0.0
    %2405 = vmatpush1.msra.mxu0 0.0
    %2406 = vmatprep.subr.mxu0 0.0
    %2407 = vmatpush1.msra.mxu0 0.0
    %2408 = vmatprep.subr.mxu0 0.0
    %2409 = vmatpush1.msra.mxu0 0.0
    %2410 = vmatprep.subr.mxu0 0.0
    %2411 = vmatpush1.msra.mxu0 0.0
    %2412 = vmatprep.subr.mxu0 0.0
    %2413 = vmatpush1.msra.mxu0 0.0
    %2414 = vmatprep.subr.mxu0 0.0
    %2415 = vmatpush1.msra.mxu0 0.0
    %2416 = vmatprep.subr.mxu0 0.0
    %2417 = vmatpush1.msra.mxu0 0.0
    %2418 = vmatprep.subr.mxu0 0.0
    %2419 = vmatpush1.msra.mxu0 0.0
    %2420 = vmatprep.subr.mxu0 0.0
    %2421 = vmatpush1.msra.mxu0 0.0
    %2422 = vmatprep.subr.mxu0 0.0
    %2423 = vmatpush1.msra.mxu0 0.0
    %2424 = vmatprep.subr.mxu0 0.0
    %2425 = vmatpush1.msra.mxu0 0.0
    %2426 = vmatprep.subr.mxu0 0.0
    %2427 = vmatpush1.msra.mxu0 0.0
    %2428 = vmatprep.subr.mxu0 0.0
    %2429 = vmatpush1.msra.mxu0 0.0
    %2430 = vmatprep.subr.mxu0 0.0
    %2431 = vmatpush1.msra.mxu0 0.0
    %2432 = vmatprep.subr.mxu0 0.0
    %2433 = vmatpush1.msra.mxu0 0.0
    %2434 = vmatprep.subr.mxu0 0.0
    %2435 = vmatpush1.msra.mxu0 0.0
    %2436 = vmatprep.subr.mxu0 0.0
    %2437 = vmatpush1.msra.mxu0 0.0
    %2438 = vmatprep.subr.mxu0 0.0
    %2439 = vmatpush1.msra.mxu0 0.0
    %2440 = vmatprep.subr.mxu0 0.0
    %2441 = vmatpush1.msra.mxu0 0.0
    %2442 = vmatprep.subr.mxu0 0.0
    %2443 = vmatpush1.msra.mxu0 0.0
    %2444 = vmatprep.subr.mxu0 0.0
    %2445 = vmatpush1.msra.mxu0 0.0
    %2446 = vmatprep.mubr.f32.mxu0 0.0
    %v2447 = vand.u32 %v2376, 4294901760
    %v2448 = vsub.f32 %v2376, %v2447
    %v2449 = vand.u32 %v2448, 4294901760
    %v2450 = vsub.f32 %v2448, %v2449
    %v2451 = vand.u32 %v2450, 4294901760
    %2452 = vmatmul.mubr.f32.gmra.mrb[0].mxu0 %v2451
    %v2453 = vpop.f32.mrb[0].mxu0
    %v2454 = vadd.f32 0.0, %v2453
    %v2455 = vpop.f32.mrb[0].mxu0
    %2456 = vdwg.mxu0
    %2457 = vmatprep.subr.mxu0 0.0
    %v2458 = vand.u32 %v27, 4294901760
    %v2459 = vsub.f32 %v27, %v2458
    %v2460 = vand.u32 %v2459, 4294901760
    %v2461 = vsub.f32 %v2459, %v2460
    %v2462 = vand.u32 %v2461, 4294901760
    %2463 = vmatpush1.msra.mxu0 %v2462
    %2464 = vmatprep.subr.mxu0 0.0
    %v2465 = vand.u32 %v28, 4294901760
    %v2466 = vsub.f32 %v28, %v2465
    %v2467 = vand.u32 %v2466, 4294901760
    %v2468 = vsub.f32 %v2466, %v2467
    %v2469 = vand.u32 %v2468, 4294901760
    %2470 = vmatpush1.msra.mxu0 %v2469
    %2471 = vmatprep.subr.mxu0 0.0
    %v2472 = vand.u32 %v29, 4294901760
    %v2473 = vsub.f32 %v29, %v2472
    %v2474 = vand.u32 %v2473, 4294901760
    %v2475 = vsub.f32 %v2473, %v2474
    %v2476 = vand.u32 %v2475, 4294901760
    %2477 = vmatpush1.msra.mxu0 %v2476
    %2478 = vmatprep.subr.mxu0 0.0
    %v2479 = vand.u32 %v30, 4294901760
    %v2480 = vsub.f32 %v30, %v2479
    %v2481 = vand.u32 %v2480, 4294901760
    %v2482 = vsub.f32 %v2480, %v2481
    %v2483 = vand.u32 %v2482, 4294901760
    %2484 = vmatpush1.msra.mxu0 %v2483
    %2485 = vmatprep.subr.mxu0 0.0
    %2486 = vmatpush1.msra.mxu0 0.0
    %2487 = vmatprep.subr.mxu0 0.0
    %2488 = vmatpush1.msra.mxu0 0.0
    %2489 = vmatprep.subr.mxu0 0.0
    %2490 = vmatpush1.msra.mxu0 0.0
    %2491 = vmatprep.subr.mxu0 0.0
    %2492 = vmatpush1.msra.mxu0 0.0
    %2493 = vmatprep.subr.mxu0 0.0
    %2494 = vmatpush1.msra.mxu0 0.0
    %2495 = vmatprep.subr.mxu0 0.0
    %2496 = vmatpush1.msra.mxu0 0.0
    %2497 = vmatprep.subr.mxu0 0.0
    %2498 = vmatpush1.msra.mxu0 0.0
    %2499 = vmatprep.subr.mxu0 0.0
    %2500 = vmatpush1.msra.mxu0 0.0
    %2501 = vmatprep.subr.mxu0 0.0
    %2502 = vmatpush1.msra.mxu0 0.0
    %2503 = vmatprep.subr.mxu0 0.0
    %2504 = vmatpush1.msra.mxu0 0.0
    %2505 = vmatprep.subr.mxu0 0.0
    %2506 = vmatpush1.msra.mxu0 0.0
    %2507 = vmatprep.subr.mxu0 0.0
    %2508 = vmatpush1.msra.mxu0 0.0
    %2509 = vmatprep.subr.mxu0 0.0
    %2510 = vmatpush1.msra.mxu0 0.0
    %2511 = vmatprep.subr.mxu0 0.0
    %2512 = vmatpush1.msra.mxu0 0.0
    %2513 = vmatprep.subr.mxu0 0.0
    %2514 = vmatpush1.msra.mxu0 0.0
    %2515 = vmatprep.subr.mxu0 0.0
    %2516 = vmatpush1.msra.mxu0 0.0
    %2517 = vmatprep.subr.mxu0 0.0
    %2518 = vmatpush1.msra.mxu0 0.0
    %2519 = vmatprep.subr.mxu0 0.0
    %2520 = vmatpush1.msra.mxu0 0.0
    %2521 = vmatprep.subr.mxu0 0.0
    %2522 = vmatpush1.msra.mxu0 0.0
    %2523 = vmatprep.subr.mxu0 0.0
    %2524 = vmatpush1.msra.mxu0 0.0
    %2525 = vmatprep.subr.mxu0 0.0
    %2526 = vmatpush1.msra.mxu0 0.0
    %2527 = vmatprep.subr.mxu0 0.0
    %2528 = vmatpush1.msra.mxu0 0.0
    %2529 = vmatprep.subr.mxu0 0.0
    %2530 = vmatpush1.msra.mxu0 0.0
    %2531 = vmatprep.subr.mxu0 0.0
    %2532 = vmatpush1.msra.mxu0 0.0
    %2533 = vmatprep.subr.mxu0 0.0
    %2534 = vmatpush1.msra.mxu0 0.0
    %2535 = vmatprep.subr.mxu0 0.0
    %2536 = vmatpush1.msra.mxu0 0.0
    %2537 = vmatprep.subr.mxu0 0.0
    %2538 = vmatpush1.msra.mxu0 0.0
    %2539 = vmatprep.subr.mxu0 0.0
    %2540 = vmatpush1.msra.mxu0 0.0
    %2541 = vmatprep.mubr.f32.mxu0 0.0
    %v2542 = vand.u32 %v2376, 4294901760
    %2543 = vmatmul.mubr.f32.gmra.mrb[0].mxu0 %v2542
    %v2544 = vpop.f32.mrb[0].mxu0
    %v2545 = vadd.f32 %v2454, %v2544
    %v2546 = vpop.f32.mrb[0].mxu0
    %2547 = vdwg.mxu0
    %2548 = vmatprep.subr.mxu0 0.0
    %v2549 = vand.u32 %v27, 4294901760
    %v2550 = vsub.f32 %v27, %v2549
    %2551 = vmatpush1.msra.mxu0 %v2550
    %2552 = vmatprep.subr.mxu0 0.0
    %v2553 = vand.u32 %v28, 4294901760
    %v2554 = vsub.f32 %v28, %v2553
    %2555 = vmatpush1.msra.mxu0 %v2554
    %2556 = vmatprep.subr.mxu0 0.0
    %v2557 = vand.u32 %v29, 4294901760
    %v2558 = vsub.f32 %v29, %v2557
    %2559 = vmatpush1.msra.mxu0 %v2558
    %2560 = vmatprep.subr.mxu0 0.0
    %v2561 = vand.u32 %v30, 4294901760
    %v2562 = vsub.f32 %v30, %v2561
    %2563 = vmatpush1.msra.mxu0 %v2562
    %2564 = vmatprep.subr.mxu0 0.0
    %2565 = vmatpush1.msra.mxu0 0.0
    %2566 = vmatprep.subr.mxu0 0.0
    %2567 = vmatpush1.msra.mxu0 0.0
    %2568 = vmatprep.subr.mxu0 0.0
    %2569 = vmatpush1.msra.mxu0 0.0
    %2570 = vmatprep.subr.mxu0 0.0
    %2571 = vmatpush1.msra.mxu0 0.0
    %2572 = vmatprep.subr.mxu0 0.0
    %2573 = vmatpush1.msra.mxu0 0.0
    %2574 = vmatprep.subr.mxu0 0.0
    %2575 = vmatpush1.msra.mxu0 0.0
    %2576 = vmatprep.subr.mxu0 0.0
    %2577 = vmatpush1.msra.mxu0 0.0
    %2578 = vmatprep.subr.mxu0 0.0
    %2579 = vmatpush1.msra.mxu0 0.0
    %2580 = vmatprep.subr.mxu0 0.0
    %2581 = vmatpush1.msra.mxu0 0.0
    %2582 = vmatprep.subr.mxu0 0.0
    %2583 = vmatpush1.msra.mxu0 0.0
    %2584 = vmatprep.subr.mxu0 0.0
    %2585 = vmatpush1.msra.mxu0 0.0
    %2586 = vmatprep.subr.mxu0 0.0
    %2587 = vmatpush1.msra.mxu0 0.0
    %2588 = vmatprep.subr.mxu0 0.0
    %2589 = vmatpush1.msra.mxu0 0.0
    %2590 = vmatprep.subr.mxu0 0.0
    %2591 = vmatpush1.msra.mxu0 0.0
    %2592 = vmatprep.subr.mxu0 0.0
    %2593 = vmatpush1.msra.mxu0 0.0
    %2594 = vmatprep.subr.mxu0 0.0
    %2595 = vmatpush1.msra.mxu0 0.0
    %2596 = vmatprep.subr.mxu0 0.0
    %2597 = vmatpush1.msra.mxu0 0.0
    %2598 = vmatprep.subr.mxu0 0.0
    %2599 = vmatpush1.msra.mxu0 0.0
    %2600 = vmatprep.subr.mxu0 0.0
    %2601 = vmatpush1.msra.mxu0 0.0
    %2602 = vmatprep.subr.mxu0 0.0
    %2603 = vmatpush1.msra.mxu0 0.0
    %2604 = vmatprep.subr.mxu0 0.0
    %2605 = vmatpush1.msra.mxu0 0.0
    %2606 = vmatprep.subr.mxu0 0.0
    %2607 = vmatpush1.msra.mxu0 0.0
    %2608 = vmatprep.subr.mxu0 0.0
    %2609 = vmatpush1.msra.mxu0 0.0
    %2610 = vmatprep.subr.mxu0 0.0
    %2611 = vmatpush1.msra.mxu0 0.0
    %2612 = vmatprep.subr.mxu0 0.0
    %2613 = vmatpush1.msra.mxu0 0.0
    %2614 = vmatprep.subr.mxu0 0.0
    %2615 = vmatpush1.msra.mxu0 0.0
    %2616 = vmatprep.subr.mxu0 0.0
    %2617 = vmatpush1.msra.mxu0 0.0
    %2618 = vmatprep.subr.mxu0 0.0
    %2619 = vmatpush1.msra.mxu0 0.0
    %2620 = vmatprep.mubr.f32.mxu0 0.0
    %v2621 = vand.u32 %v2376, 4294901760
    %v2622 = vsub.f32 %v2376, %v2621
    %2623 = vmatmul.mubr.f32.gmra.mrb[0].mxu0 %v2622
    %v2624 = vpop.f32.mrb[0].mxu0
    %v2625 = vadd.f32 %v2545, %v2624
    %v2626 = vpop.f32.mrb[0].mxu0
    %2627 = vdwg.mxu0
    %2628 = vmatprep.subr.mxu0 0.0
    %v2629 = vand.u32 %v27, 4294901760
    %2630 = vmatpush1.msra.mxu0 %v2629
    %2631 = vmatprep.subr.mxu0 0.0
    %v2632 = vand.u32 %v28, 4294901760
    %2633 = vmatpush1.msra.mxu0 %v2632
    %2634 = vmatprep.subr.mxu0 0.0
    %v2635 = vand.u32 %v29, 4294901760
    %2636 = vmatpush1.msra.mxu0 %v2635
    %2637 = vmatprep.subr.mxu0 0.0
    %v2638 = vand.u32 %v30, 4294901760
    %2639 = vmatpush1.msra.mxu0 %v2638
    %2640 = vmatprep.subr.mxu0 0.0
    %2641 = vmatpush1.msra.mxu0 0.0
    %2642 = vmatprep.subr.mxu0 0.0
    %2643 = vmatpush1.msra.mxu0 0.0
    %2644 = vmatprep.subr.mxu0 0.0
    %2645 = vmatpush1.msra.mxu0 0.0
    %2646 = vmatprep.subr.mxu0 0.0
    %2647 = vmatpush1.msra.mxu0 0.0
    %2648 = vmatprep.subr.mxu0 0.0
    %2649 = vmatpush1.msra.mxu0 0.0
    %2650 = vmatprep.subr.mxu0 0.0
    %2651 = vmatpush1.msra.mxu0 0.0
    %2652 = vmatprep.subr.mxu0 0.0
    %2653 = vmatpush1.msra.mxu0 0.0
    %2654 = vmatprep.subr.mxu0 0.0
    %2655 = vmatpush1.msra.mxu0 0.0
    %2656 = vmatprep.subr.mxu0 0.0
    %2657 = vmatpush1.msra.mxu0 0.0
    %2658 = vmatprep.subr.mxu0 0.0
    %2659 = vmatpush1.msra.mxu0 0.0
    %2660 = vmatprep.subr.mxu0 0.0
    %2661 = vmatpush1.msra.mxu0 0.0
    %2662 = vmatprep.subr.mxu0 0.0
    %2663 = vmatpush1.msra.mxu0 0.0
    %2664 = vmatprep.subr.mxu0 0.0
    %2665 = vmatpush1.msra.mxu0 0.0
    %2666 = vmatprep.subr.mxu0 0.0
    %2667 = vmatpush1.msra.mxu0 0.0
    %2668 = vmatprep.subr.mxu0 0.0
    %2669 = vmatpush1.msra.mxu0 0.0
    %2670 = vmatprep.subr.mxu0 0.0
    %2671 = vmatpush1.msra.mxu0 0.0
    %2672 = vmatprep.subr.mxu0 0.0
    %2673 = vmatpush1.msra.mxu0 0.0
    %2674 = vmatprep.subr.mxu0 0.0
    %2675 = vmatpush1.msra.mxu0 0.0
    %2676 = vmatprep.subr.mxu0 0.0
    %2677 = vmatpush1.msra.mxu0 0.0
    %2678 = vmatprep.subr.mxu0 0.0
    %2679 = vmatpush1.msra.mxu0 0.0
    %2680 = vmatprep.subr.mxu0 0.0
    %2681 = vmatpush1.msra.mxu0 0.0
    %2682 = vmatprep.subr.mxu0 0.0
    %2683 = vmatpush1.msra.mxu0 0.0
    %2684 = vmatprep.subr.mxu0 0.0
    %2685 = vmatpush1.msra.mxu0 0.0
    %2686 = vmatprep.subr.mxu0 0.0
    %2687 = vmatpush1.msra.mxu0 0.0
    %2688 = vmatprep.subr.mxu0 0.0
    %2689 = vmatpush1.msra.mxu0 0.0
    %2690 = vmatprep.subr.mxu0 0.0
    %2691 = vmatpush1.msra.mxu0 0.0
    %2692 = vmatprep.subr.mxu0 0.0
    %2693 = vmatpush1.msra.mxu0 0.0
    %2694 = vmatprep.subr.mxu0 0.0
    %2695 = vmatpush1.msra.mxu0 0.0
    %2696 = vmatprep.mubr.f32.mxu0 0.0
    %v2697 = vand.u32 %v2376, 4294901760
    %v2698 = vsub.f32 %v2376, %v2697
    %v2699 = vand.u32 %v2698, 4294901760
    %2700 = vmatmul.mubr.f32.gmra.mrb[0].mxu0 %v2699
    %v2701 = vpop.f32.mrb[0].mxu0
    %v2702 = vadd.f32 %v2625, %v2701
    %v2703 = vpop.f32.mrb[0].mxu0
    %2704 = vdwg.mxu0
    %2705 = vmatprep.subr.mxu0 0.0
    %v2706 = vand.u32 %v27, 4294901760
    %v2707 = vsub.f32 %v27, %v2706
    %v2708 = vand.u32 %v2707, 4294901760
    %2709 = vmatpush1.msra.mxu0 %v2708
    %2710 = vmatprep.subr.mxu0 0.0
    %v2711 = vand.u32 %v28, 4294901760
    %v2712 = vsub.f32 %v28, %v2711
    %v2713 = vand.u32 %v2712, 4294901760
    %2714 = vmatpush1.msra.mxu0 %v2713
    %2715 = vmatprep.subr.mxu0 0.0
    %v2716 = vand.u32 %v29, 4294901760
    %v2717 = vsub.f32 %v29, %v2716
    %v2718 = vand.u32 %v2717, 4294901760
    %2719 = vmatpush1.msra.mxu0 %v2718
    %2720 = vmatprep.subr.mxu0 0.0
    %v2721 = vand.u32 %v30, 4294901760
    %v2722 = vsub.f32 %v30, %v2721
    %v2723 = vand.u32 %v2722, 4294901760
    %2724 = vmatpush1.msra.mxu0 %v2723
    %2725 = vmatprep.subr.mxu0 0.0
    %2726 = vmatpush1.msra.mxu0 0.0
    %2727 = vmatprep.subr.mxu0 0.0
    %2728 = vmatpush1.msra.mxu0 0.0
    %2729 = vmatprep.subr.mxu0 0.0
    %2730 = vmatpush1.msra.mxu0 0.0
    %2731 = vmatprep.subr.mxu0 0.0
    %2732 = vmatpush1.msra.mxu0 0.0
    %2733 = vmatprep.subr.mxu0 0.0
    %2734 = vmatpush1.msra.mxu0 0.0
    %2735 = vmatprep.subr.mxu0 0.0
    %2736 = vmatpush1.msra.mxu0 0.0
    %2737 = vmatprep.subr.mxu0 0.0
    %2738 = vmatpush1.msra.mxu0 0.0
    %2739 = vmatprep.subr.mxu0 0.0
    %2740 = vmatpush1.msra.mxu0 0.0
    %2741 = vmatprep.subr.mxu0 0.0
    %2742 = vmatpush1.msra.mxu0 0.0
    %2743 = vmatprep.subr.mxu0 0.0
    %2744 = vmatpush1.msra.mxu0 0.0
    %2745 = vmatprep.subr.mxu0 0.0
    %2746 = vmatpush1.msra.mxu0 0.0
    %2747 = vmatprep.subr.mxu0 0.0
    %2748 = vmatpush1.msra.mxu0 0.0
    %2749 = vmatprep.subr.mxu0 0.0
    %2750 = vmatpush1.msra.mxu0 0.0
    %2751 = vmatprep.subr.mxu0 0.0
    %2752 = vmatpush1.msra.mxu0 0.0
    %2753 = vmatprep.subr.mxu0 0.0
    %2754 = vmatpush1.msra.mxu0 0.0
    %2755 = vmatprep.subr.mxu0 0.0
    %2756 = vmatpush1.msra.mxu0 0.0
    %2757 = vmatprep.subr.mxu0 0.0
    %2758 = vmatpush1.msra.mxu0 0.0
    %2759 = vmatprep.subr.mxu0 0.0
    %2760 = vmatpush1.msra.mxu0 0.0
    %2761 = vmatprep.subr.mxu0 0.0
    %2762 = vmatpush1.msra.mxu0 0.0
    %2763 = vmatprep.subr.mxu0 0.0
    %2764 = vmatpush1.msra.mxu0 0.0
    %2765 = vmatprep.subr.mxu0 0.0
    %2766 = vmatpush1.msra.mxu0 0.0
    %2767 = vmatprep.subr.mxu0 0.0
    %2768 = vmatpush1.msra.mxu0 0.0
    %2769 = vmatprep.subr.mxu0 0.0
    %2770 = vmatpush1.msra.mxu0 0.0
    %2771 = vmatprep.subr.mxu0 0.0
    %2772 = vmatpush1.msra.mxu0 0.0
    %2773 = vmatprep.subr.mxu0 0.0
    %2774 = vmatpush1.msra.mxu0 0.0
    %2775 = vmatprep.subr.mxu0 0.0
    %2776 = vmatpush1.msra.mxu0 0.0
    %2777 = vmatprep.subr.mxu0 0.0
    %2778 = vmatpush1.msra.mxu0 0.0
    %2779 = vmatprep.subr.mxu0 0.0
    %2780 = vmatpush1.msra.mxu0 0.0
    %2781 = vmatprep.mubr.f32.mxu0 0.0
    %v2782 = vand.u32 %v2376, 4294901760
    %2783 = vmatmul.mubr.f32.gmra.mrb[0].mxu0 %v2782
    %v2784 = vpop.f32.mrb[0].mxu0
    %v2785 = vadd.f32 %v2702, %v2784
    %v2786 = vpop.f32.mrb[0].mxu0
    %2787 = vdwg.mxu0
    %2788 = vmatprep.subr.mxu0 0.0
    %v2789 = vand.u32 %v27, 4294901760
    %2790 = vmatpush1.msra.mxu0 %v2789
    %2791 = vmatprep.subr.mxu0 0.0
    %v2792 = vand.u32 %v28, 4294901760
    %2793 = vmatpush1.msra.mxu0 %v2792
    %2794 = vmatprep.subr.mxu0 0.0
    %v2795 = vand.u32 %v29, 4294901760
    %2796 = vmatpush1.msra.mxu0 %v2795
    %2797 = vmatprep.subr.mxu0 0.0
    %v2798 = vand.u32 %v30, 4294901760
    %2799 = vmatpush1.msra.mxu0 %v2798
    %2800 = vmatprep.subr.mxu0 0.0
    %2801 = vmatpush1.msra.mxu0 0.0
    %2802 = vmatprep.subr.mxu0 0.0
    %2803 = vmatpush1.msra.mxu0 0.0
    %2804 = vmatprep.subr.mxu0 0.0
    %2805 = vmatpush1.msra.mxu0 0.0
    %2806 = vmatprep.subr.mxu0 0.0
    %2807 = vmatpush1.msra.mxu0 0.0
    %2808 = vmatprep.subr.mxu0 0.0
    %2809 = vmatpush1.msra.mxu0 0.0
    %2810 = vmatprep.subr.mxu0 0.0
    %2811 = vmatpush1.msra.mxu0 0.0
    %2812 = vmatprep.subr.mxu0 0.0
    %2813 = vmatpush1.msra.mxu0 0.0
    %2814 = vmatprep.subr.mxu0 0.0
    %2815 = vmatpush1.msra.mxu0 0.0
    %2816 = vmatprep.subr.mxu0 0.0
    %2817 = vmatpush1.msra.mxu0 0.0
    %2818 = vmatprep.subr.mxu0 0.0
    %2819 = vmatpush1.msra.mxu0 0.0
    %2820 = vmatprep.subr.mxu0 0.0
    %2821 = vmatpush1.msra.mxu0 0.0
    %2822 = vmatprep.subr.mxu0 0.0
    %2823 = vmatpush1.msra.mxu0 0.0
    %2824 = vmatprep.subr.mxu0 0.0
    %2825 = vmatpush1.msra.mxu0 0.0
    %2826 = vmatprep.subr.mxu0 0.0
    %2827 = vmatpush1.msra.mxu0 0.0
    %2828 = vmatprep.subr.mxu0 0.0
    %2829 = vmatpush1.msra.mxu0 0.0
    %2830 = vmatprep.subr.mxu0 0.0
    %2831 = vmatpush1.msra.mxu0 0.0
    %2832 = vmatprep.subr.mxu0 0.0
    %2833 = vmatpush1.msra.mxu0 0.0
    %2834 = vmatprep.subr.mxu0 0.0
    %2835 = vmatpush1.msra.mxu0 0.0
    %2836 = vmatprep.subr.mxu0 0.0
    %2837 = vmatpush1.msra.mxu0 0.0
    %2838 = vmatprep.subr.mxu0 0.0
    %2839 = vmatpush1.msra.mxu0 0.0
    %2840 = vmatprep.subr.mxu0 0.0
    %2841 = vmatpush1.msra.mxu0 0.0
    %2842 = vmatprep.subr.mxu0 0.0
    %2843 = vmatpush1.msra.mxu0 0.0
    %2844 = vmatprep.subr.mxu0 0.0
    %2845 = vmatpush1.msra.mxu0 0.0
    %2846 = vmatprep.subr.mxu0 0.0
    %2847 = vmatpush1.msra.mxu0 0.0
    %2848 = vmatprep.subr.mxu0 0.0
    %2849 = vmatpush1.msra.mxu0 0.0
    %2850 = vmatprep.subr.mxu0 0.0
    %2851 = vmatpush1.msra.mxu0 0.0
    %2852 = vmatprep.subr.mxu0 0.0
    %2853 = vmatpush1.msra.mxu0 0.0
    %2854 = vmatprep.subr.mxu0 0.0
    %2855 = vmatpush1.msra.mxu0 0.0
    %2856 = vmatprep.mubr.f32.mxu0 0.0
    %v2857 = vand.u32 %v2376, 4294901760
    %2858 = vmatmul.mubr.f32.gmra.mrb[0].mxu0 %v2857
    %v2859 = vpop.f32.mrb[0].mxu0
    %v2860 = vadd.f32 %v2785, %v2859
    %v2861 = vpop.f32.mrb[0].mxu0
    %2862 = vdwg.mxu0
    %v2863 = vadd.f32 %v826, %v2860
    %v2864 = vmul.f32 %v2863, %v836
    %v2865 = vtanh.pop %v2864
    %v2866 = vmul.f32 %v836, %v2865
    %v2867 = vadd.f32 %v2866, %v837
    %v2868 = vmul.f32 %v2867, %v2366
    %2870 = vrot.lane.b32.xlu0 %v2867, 64
    %v2871 = vpop.permute.xlu0 %2870
    %v2873 = vmul.f32 %v2867, %v2871
    %2875 = vrot.lane.b32.xlu0 %v2873, 32
    %v2876 = vpop.permute.xlu0 %2875
    %v2878 = vadd.f32 %v2868, %v2876
    %v2879 = vtanh.pop %v2878
    %2881 = vrot.lane.b32.xlu0 %v2879, 64
    %v2882 = vpop.permute.xlu0 %2881
    %v2884 = vmul.f32 %v2867, %v2882
    %2886 = vrot.lane.b32.xlu0 %v2884, 32
    %v2887 = vpop.permute.xlu0 %2886
    %v2888 = vsel %vm838, %v2887, 0
    %2890 = vmatprep.subr.mxu0 0.0
    %v2891 = vand.u32 %v27, 4294901760
    %2892 = vmatpush1.msra.mxu0 %v2891
    %2893 = vmatprep.subr.mxu0 0.0
    %v2894 = vand.u32 %v28, 4294901760
    %2895 = vmatpush1.msra.mxu0 %v2894
    %2896 = vmatprep.subr.mxu0 0.0
    %v2897 = vand.u32 %v29, 4294901760
    %2898 = vmatpush1.msra.mxu0 %v2897
    %2899 = vmatprep.subr.mxu0 0.0
    %v2900 = vand.u32 %v30, 4294901760
    %2901 = vmatpush1.msra.mxu0 %v2900
    %2902 = vmatprep.subr.mxu0 0.0
    %2903 = vmatpush1.msra.mxu0 0.0
    %2904 = vmatprep.subr.mxu0 0.0
    %2905 = vmatpush1.msra.mxu0 0.0
    %2906 = vmatprep.subr.mxu0 0.0
    %2907 = vmatpush1.msra.mxu0 0.0
    %2908 = vmatprep.subr.mxu0 0.0
    %2909 = vmatpush1.msra.mxu0 0.0
    %2910 = vmatprep.subr.mxu0 0.0
    %2911 = vmatpush1.msra.mxu0 0.0
    %2912 = vmatprep.subr.mxu0 0.0
    %2913 = vmatpush1.msra.mxu0 0.0
    %2914 = vmatprep.subr.mxu0 0.0
    %2915 = vmatpush1.msra.mxu0 0.0
    %2916 = vmatprep.subr.mxu0 0.0
    %2917 = vmatpush1.msra.mxu0 0.0
    %2918 = vmatprep.subr.mxu0 0.0
    %2919 = vmatpush1.msra.mxu0 0.0
    %2920 = vmatprep.subr.mxu0 0.0
    %2921 = vmatpush1.msra.mxu0 0.0
    %2922 = vmatprep.subr.mxu0 0.0
    %2923 = vmatpush1.msra.mxu0 0.0
    %2924 = vmatprep.subr.mxu0 0.0
    %2925 = vmatpush1.msra.mxu0 0.0
    %2926 = vmatprep.subr.mxu0 0.0
    %2927 = vmatpush1.msra.mxu0 0.0
    %2928 = vmatprep.subr.mxu0 0.0
    %2929 = vmatpush1.msra.mxu0 0.0
    %2930 = vmatprep.subr.mxu0 0.0
    %2931 = vmatpush1.msra.mxu0 0.0
    %2932 = vmatprep.subr.mxu0 0.0
    %2933 = vmatpush1.msra.mxu0 0.0
    %2934 = vmatprep.subr.mxu0 0.0
    %2935 = vmatpush1.msra.mxu0 0.0
    %2936 = vmatprep.subr.mxu0 0.0
    %2937 = vmatpush1.msra.mxu0 0.0
    %2938 = vmatprep.subr.mxu0 0.0
    %2939 = vmatpush1.msra.mxu0 0.0
    %2940 = vmatprep.subr.mxu0 0.0
    %2941 = vmatpush1.msra.mxu0 0.0
    %2942 = vmatprep.subr.mxu0 0.0
    %2943 = vmatpush1.msra.mxu0 0.0
    %2944 = vmatprep.subr.mxu0 0.0
    %2945 = vmatpush1.msra.mxu0 0.0
    %2946 = vmatprep.subr.mxu0 0.0
    %2947 = vmatpush1.msra.mxu0 0.0
    %2948 = vmatprep.subr.mxu0 0.0
    %2949 = vmatpush1.msra.mxu0 0.0
    %2950 = vmatprep.subr.mxu0 0.0
    %2951 = vmatpush1.msra.mxu0 0.0
    %2952 = vmatprep.subr.mxu0 0.0
    %2953 = vmatpush1.msra.mxu0 0.0
    %2954 = vmatprep.subr.mxu0 0.0
    %2955 = vmatpush1.msra.mxu0 0.0
    %2956 = vmatprep.subr.mxu0 0.0
    %2957 = vmatpush1.msra.mxu0 0.0
    %2958 = vmatprep.mubr.f32.mxu0 0.0
    %v2959 = vand.u32 %v2888, 4294901760
    %v2960 = vsub.f32 %v2888, %v2959
    %v2961 = vand.u32 %v2960, 4294901760
    %v2962 = vsub.f32 %v2960, %v2961
    %v2963 = vand.u32 %v2962, 4294901760
    %2964 = vmatmul.mubr.f32.gmra.mrb[0].mxu0 %v2963
    %v2965 = vpop.f32.mrb[0].mxu0
    %v2966 = vadd.f32 0.0, %v2965
    %v2967 = vpop.f32.mrb[0].mxu0
    %2968 = vdwg.mxu0
    %2969 = vmatprep.subr.mxu0 0.0
    %v2970 = vand.u32 %v27, 4294901760
    %v2971 = vsub.f32 %v27, %v2970
    %v2972 = vand.u32 %v2971, 4294901760
    %v2973 = vsub.f32 %v2971, %v2972
    %v2974 = vand.u32 %v2973, 4294901760
    %2975 = vmatpush1.msra.mxu0 %v2974
    %2976 = vmatprep.subr.mxu0 0.0
    %v2977 = vand.u32 %v28, 4294901760
    %v2978 = vsub.f32 %v28, %v2977
    %v2979 = vand.u32 %v2978, 4294901760
    %v2980 = vsub.f32 %v2978, %v2979
    %v2981 = vand.u32 %v2980, 4294901760
    %2982 = vmatpush1.msra.mxu0 %v2981
    %2983 = vmatprep.subr.mxu0 0.0
    %v2984 = vand.u32 %v29, 4294901760
    %v2985 = vsub.f32 %v29, %v2984
    %v2986 = vand.u32 %v2985, 4294901760
    %v2987 = vsub.f32 %v2985, %v2986
    %v2988 = vand.u32 %v2987, 4294901760
    %2989 = vmatpush1.msra.mxu0 %v2988
    %2990 = vmatprep.subr.mxu0 0.0
    %v2991 = vand.u32 %v30, 4294901760
    %v2992 = vsub.f32 %v30, %v2991
    %v2993 = vand.u32 %v2992, 4294901760
    %v2994 = vsub.f32 %v2992, %v2993
    %v2995 = vand.u32 %v2994, 4294901760
    %2996 = vmatpush1.msra.mxu0 %v2995
    %2997 = vmatprep.subr.mxu0 0.0
    %2998 = vmatpush1.msra.mxu0 0.0
    %2999 = vmatprep.subr.mxu0 0.0
    %3000 = vmatpush1.msra.mxu0 0.0
    %3001 = vmatprep.subr.mxu0 0.0
    %3002 = vmatpush1.msra.mxu0 0.0
    %3003 = vmatprep.subr.mxu0 0.0
    %3004 = vmatpush1.msra.mxu0 0.0
    %3005 = vmatprep.subr.mxu0 0.0
    %3006 = vmatpush1.msra.mxu0 0.0
    %3007 = vmatprep.subr.mxu0 0.0
    %3008 = vmatpush1.msra.mxu0 0.0
    %3009 = vmatprep.subr.mxu0 0.0
    %3010 = vmatpush1.msra.mxu0 0.0
    %3011 = vmatprep.subr.mxu0 0.0
    %3012 = vmatpush1.msra.mxu0 0.0
    %3013 = vmatprep.subr.mxu0 0.0
    %3014 = vmatpush1.msra.mxu0 0.0
    %3015 = vmatprep.subr.mxu0 0.0
    %3016 = vmatpush1.msra.mxu0 0.0
    %3017 = vmatprep.subr.mxu0 0.0
    %3018 = vmatpush1.msra.mxu0 0.0
    %3019 = vmatprep.subr.mxu0 0.0
    %3020 = vmatpush1.msra.mxu0 0.0
    %3021 = vmatprep.subr.mxu0 0.0
    %3022 = vmatpush1.msra.mxu0 0.0
    %3023 = vmatprep.subr.mxu0 0.0
    %3024 = vmatpush1.msra.mxu0 0.0
    %3025 = vmatprep.subr.mxu0 0.0
    %3026 = vmatpush1.msra.mxu0 0.0
    %3027 = vmatprep.subr.mxu0 0.0
    %3028 = vmatpush1.msra.mxu0 0.0
    %3029 = vmatprep.subr.mxu0 0.0
    %3030 = vmatpush1.msra.mxu0 0.0
    %3031 = vmatprep.subr.mxu0 0.0
    %3032 = vmatpush1.msra.mxu0 0.0
    %3033 = vmatprep.subr.mxu0 0.0
    %3034 = vmatpush1.msra.mxu0 0.0
    %3035 = vmatprep.subr.mxu0 0.0
    %3036 = vmatpush1.msra.mxu0 0.0
    %3037 = vmatprep.subr.mxu0 0.0
    %3038 = vmatpush1.msra.mxu0 0.0
    %3039 = vmatprep.subr.mxu0 0.0
    %3040 = vmatpush1.msra.mxu0 0.0
    %3041 = vmatprep.subr.mxu0 0.0
    %3042 = vmatpush1.msra.mxu0 0.0
    %3043 = vmatprep.subr.mxu0 0.0
    %3044 = vmatpush1.msra.mxu0 0.0
    %3045 = vmatprep.subr.mxu0 0.0
    %3046 = vmatpush1.msra.mxu0 0.0
    %3047 = vmatprep.subr.mxu0 0.0
    %3048 = vmatpush1.msra.mxu0 0.0
    %3049 = vmatprep.subr.mxu0 0.0
    %3050 = vmatpush1.msra.mxu0 0.0
    %3051 = vmatprep.subr.mxu0 0.0
    %3052 = vmatpush1.msra.mxu0 0.0
    %3053 = vmatprep.mubr.f32.mxu0 0.0
    %v3054 = vand.u32 %v2888, 4294901760
    %3055 = vmatmul.mubr.f32.gmra.mrb[0].mxu0 %v3054
    %v3056 = vpop.f32.mrb[0].mxu0
    %v3057 = vadd.f32 %v2966, %v3056
    %v3058 = vpop.f32.mrb[0].mxu0
    %3059 = vdwg.mxu0
    %3060 = vmatprep.subr.mxu0 0.0
    %v3061 = vand.u32 %v27, 4294901760
    %v3062 = vsub.f32 %v27, %v3061
    %3063 = vmatpush1.msra.mxu0 %v3062
    %3064 = vmatprep.subr.mxu0 0.0
    %v3065 = vand.u32 %v28, 4294901760
    %v3066 = vsub.f32 %v28, %v3065
    %3067 = vmatpush1.msra.mxu0 %v3066
    %3068 = vmatprep.subr.mxu0 0.0
    %v3069 = vand.u32 %v29, 4294901760
    %v3070 = vsub.f32 %v29, %v3069
    %3071 = vmatpush1.msra.mxu0 %v3070
    %3072 = vmatprep.subr.mxu0 0.0
    %v3073 = vand.u32 %v30, 4294901760
    %v3074 = vsub.f32 %v30, %v3073
    %3075 = vmatpush1.msra.mxu0 %v3074
    %3076 = vmatprep.subr.mxu0 0.0
    %3077 = vmatpush1.msra.mxu0 0.0
    %3078 = vmatprep.subr.mxu0 0.0
    %3079 = vmatpush1.msra.mxu0 0.0
    %3080 = vmatprep.subr.mxu0 0.0
    %3081 = vmatpush1.msra.mxu0 0.0
    %3082 = vmatprep.subr.mxu0 0.0
    %3083 = vmatpush1.msra.mxu0 0.0
    %3084 = vmatprep.subr.mxu0 0.0
    %3085 = vmatpush1.msra.mxu0 0.0
    %3086 = vmatprep.subr.mxu0 0.0
    %3087 = vmatpush1.msra.mxu0 0.0
    %3088 = vmatprep.subr.mxu0 0.0
    %3089 = vmatpush1.msra.mxu0 0.0
    %3090 = vmatprep.subr.mxu0 0.0
    %3091 = vmatpush1.msra.mxu0 0.0
    %3092 = vmatprep.subr.mxu0 0.0
    %3093 = vmatpush1.msra.mxu0 0.0
    %3094 = vmatprep.subr.mxu0 0.0
    %3095 = vmatpush1.msra.mxu0 0.0
    %3096 = vmatprep.subr.mxu0 0.0
    %3097 = vmatpush1.msra.mxu0 0.0
    %3098 = vmatprep.subr.mxu0 0.0
    %3099 = vmatpush1.msra.mxu0 0.0
    %3100 = vmatprep.subr.mxu0 0.0
    %3101 = vmatpush1.msra.mxu0 0.0
    %3102 = vmatprep.subr.mxu0 0.0
    %3103 = vmatpush1.msra.mxu0 0.0
    %3104 = vmatprep.subr.mxu0 0.0
    %3105 = vmatpush1.msra.mxu0 0.0
    %3106 = vmatprep.subr.mxu0 0.0
    %3107 = vmatpush1.msra.mxu0 0.0
    %3108 = vmatprep.subr.mxu0 0.0
    %3109 = vmatpush1.msra.mxu0 0.0
    %3110 = vmatprep.subr.mxu0 0.0
    %3111 = vmatpush1.msra.mxu0 0.0
    %3112 = vmatprep.subr.mxu0 0.0
    %3113 = vmatpush1.msra.mxu0 0.0
    %3114 = vmatprep.subr.mxu0 0.0
    %3115 = vmatpush1.msra.mxu0 0.0
    %3116 = vmatprep.subr.mxu0 0.0
    %3117 = vmatpush1.msra.mxu0 0.0
    %3118 = vmatprep.subr.mxu0 0.0
    %3119 = vmatpush1.msra.mxu0 0.0
    %3120 = vmatprep.subr.mxu0 0.0
    %3121 = vmatpush1.msra.mxu0 0.0
    %3122 = vmatprep.subr.mxu0 0.0
    %3123 = vmatpush1.msra.mxu0 0.0
    %3124 = vmatprep.subr.mxu0 0.0
    %3125 = vmatpush1.msra.mxu0 0.0
    %3126 = vmatprep.subr.mxu0 0.0
    %3127 = vmatpush1.msra.mxu0 0.0
    %3128 = vmatprep.subr.mxu0 0.0
    %3129 = vmatpush1.msra.mxu0 0.0
    %3130 = vmatprep.subr.mxu0 0.0
    %3131 = vmatpush1.msra.mxu0 0.0
    %3132 = vmatprep.mubr.f32.mxu0 0.0
    %v3133 = vand.u32 %v2888, 4294901760
    %v3134 = vsub.f32 %v2888, %v3133
    %3135 = vmatmul.mubr.f32.gmra.mrb[0].mxu0 %v3134
    %v3136 = vpop.f32.mrb[0].mxu0
    %v3137 = vadd.f32 %v3057, %v3136
    %v3138 = vpop.f32.mrb[0].mxu0
    %3139 = vdwg.mxu0
    %3140 = vmatprep.subr.mxu0 0.0
    %v3141 = vand.u32 %v27, 4294901760
    %3142 = vmatpush1.msra.mxu0 %v3141
    %3143 = vmatprep.subr.mxu0 0.0
    %v3144 = vand.u32 %v28, 4294901760
    %3145 = vmatpush1.msra.mxu0 %v3144
    %3146 = vmatprep.subr.mxu0 0.0
    %v3147 = vand.u32 %v29, 4294901760
    %3148 = vmatpush1.msra.mxu0 %v3147
    %3149 = vmatprep.subr.mxu0 0.0
    %v3150 = vand.u32 %v30, 4294901760
    %3151 = vmatpush1.msra.mxu0 %v3150
    %3152 = vmatprep.subr.mxu0 0.0
    %3153 = vmatpush1.msra.mxu0 0.0
    %3154 = vmatprep.subr.mxu0 0.0
    %3155 = vmatpush1.msra.mxu0 0.0
    %3156 = vmatprep.subr.mxu0 0.0
    %3157 = vmatpush1.msra.mxu0 0.0
    %3158 = vmatprep.subr.mxu0 0.0
    %3159 = vmatpush1.msra.mxu0 0.0
    %3160 = vmatprep.subr.mxu0 0.0
    %3161 = vmatpush1.msra.mxu0 0.0
    %3162 = vmatprep.subr.mxu0 0.0
    %3163 = vmatpush1.msra.mxu0 0.0
    %3164 = vmatprep.subr.mxu0 0.0
    %3165 = vmatpush1.msra.mxu0 0.0
    %3166 = vmatprep.subr.mxu0 0.0
    %3167 = vmatpush1.msra.mxu0 0.0
    %3168 = vmatprep.subr.mxu0 0.0
    %3169 = vmatpush1.msra.mxu0 0.0
    %3170 = vmatprep.subr.mxu0 0.0
    %3171 = vmatpush1.msra.mxu0 0.0
    %3172 = vmatprep.subr.mxu0 0.0
    %3173 = vmatpush1.msra.mxu0 0.0
    %3174 = vmatprep.subr.mxu0 0.0
    %3175 = vmatpush1.msra.mxu0 0.0
    %3176 = vmatprep.subr.mxu0 0.0
    %3177 = vmatpush1.msra.mxu0 0.0
    %3178 = vmatprep.subr.mxu0 0.0
    %3179 = vmatpush1.msra.mxu0 0.0
    %3180 = vmatprep.subr.mxu0 0.0
    %3181 = vmatpush1.msra.mxu0 0.0
    %3182 = vmatprep.subr.mxu0 0.0
    %3183 = vmatpush1.msra.mxu0 0.0
    %3184 = vmatprep.subr.mxu0 0.0
    %3185 = vmatpush1.msra.mxu0 0.0
    %3186 = vmatprep.subr.mxu0 0.0
    %3187 = vmatpush1.msra.mxu0 0.0
    %3188 = vmatprep.subr.mxu0 0.0
    %3189 = vmatpush1.msra.mxu0 0.0
    %3190 = vmatprep.subr.mxu0 0.0
    %3191 = vmatpush1.msra.mxu0 0.0
    %3192 = vmatprep.subr.mxu0 0.0
    %3193 = vmatpush1.msra.mxu0 0.0
    %3194 = vmatprep.subr.mxu0 0.0
    %3195 = vmatpush1.msra.mxu0 0.0
    %3196 = vmatprep.subr.mxu0 0.0
    %3197 = vmatpush1.msra.mxu0 0.0
    %3198 = vmatprep.subr.mxu0 0.0
    %3199 = vmatpush1.msra.mxu0 0.0
    %3200 = vmatprep.subr.mxu0 0.0
    %3201 = vmatpush1.msra.mxu0 0.0
    %3202 = vmatprep.subr.mxu0 0.0
    %3203 = vmatpush1.msra.mxu0 0.0
    %3204 = vmatprep.subr.mxu0 0.0
    %3205 = vmatpush1.msra.mxu0 0.0
    %3206 = vmatprep.subr.mxu0 0.0
    %3207 = vmatpush1.msra.mxu0 0.0
    %3208 = vmatprep.mubr.f32.mxu0 0.0
    %v3209 = vand.u32 %v2888, 4294901760
    %v3210 = vsub.f32 %v2888, %v3209
    %v3211 = vand.u32 %v3210, 4294901760
    %3212 = vmatmul.mubr.f32.gmra.mrb[0].mxu0 %v3211
    %v3213 = vpop.f32.mrb[0].mxu0
    %v3214 = vadd.f32 %v3137, %v3213
    %v3215 = vpop.f32.mrb[0].mxu0
    %3216 = vdwg.mxu0
    %3217 = vmatprep.subr.mxu0 0.0
    %v3218 = vand.u32 %v27, 4294901760
    %v3219 = vsub.f32 %v27, %v3218
    %v3220 = vand.u32 %v3219, 4294901760
    %3221 = vmatpush1.msra.mxu0 %v3220
    %3222 = vmatprep.subr.mxu0 0.0
    %v3223 = vand.u32 %v28, 4294901760
    %v3224 = vsub.f32 %v28, %v3223
    %v3225 = vand.u32 %v3224, 4294901760
    %3226 = vmatpush1.msra.mxu0 %v3225
    %3227 = vmatprep.subr.mxu0 0.0
    %v3228 = vand.u32 %v29, 4294901760
    %v3229 = vsub.f32 %v29, %v3228
    %v3230 = vand.u32 %v3229, 4294901760
    %3231 = vmatpush1.msra.mxu0 %v3230
    %3232 = vmatprep.subr.mxu0 0.0
    %v3233 = vand.u32 %v30, 4294901760
    %v3234 = vsub.f32 %v30, %v3233
    %v3235 = vand.u32 %v3234, 4294901760
    %3236 = vmatpush1.msra.mxu0 %v3235
    %3237 = vmatprep.subr.mxu0 0.0
    %3238 = vmatpush1.msra.mxu0 0.0
    %3239 = vmatprep.subr.mxu0 0.0
    %3240 = vmatpush1.msra.mxu0 0.0
    %3241 = vmatprep.subr.mxu0 0.0
    %3242 = vmatpush1.msra.mxu0 0.0
    %3243 = vmatprep.subr.mxu0 0.0
    %3244 = vmatpush1.msra.mxu0 0.0
    %3245 = vmatprep.subr.mxu0 0.0
    %3246 = vmatpush1.msra.mxu0 0.0
    %3247 = vmatprep.subr.mxu0 0.0
    %3248 = vmatpush1.msra.mxu0 0.0
    %3249 = vmatprep.subr.mxu0 0.0
    %3250 = vmatpush1.msra.mxu0 0.0
    %3251 = vmatprep.subr.mxu0 0.0
    %3252 = vmatpush1.msra.mxu0 0.0
    %3253 = vmatprep.subr.mxu0 0.0
    %3254 = vmatpush1.msra.mxu0 0.0
    %3255 = vmatprep.subr.mxu0 0.0
    %3256 = vmatpush1.msra.mxu0 0.0
    %3257 = vmatprep.subr.mxu0 0.0
    %3258 = vmatpush1.msra.mxu0 0.0
    %3259 = vmatprep.subr.mxu0 0.0
    %3260 = vmatpush1.msra.mxu0 0.0
    %3261 = vmatprep.subr.mxu0 0.0
    %3262 = vmatpush1.msra.mxu0 0.0
    %3263 = vmatprep.subr.mxu0 0.0
    %3264 = vmatpush1.msra.mxu0 0.0
    %3265 = vmatprep.subr.mxu0 0.0
    %3266 = vmatpush1.msra.mxu0 0.0
    %3267 = vmatprep.subr.mxu0 0.0
    %3268 = vmatpush1.msra.mxu0 0.0
    %3269 = vmatprep.subr.mxu0 0.0
    %3270 = vmatpush1.msra.mxu0 0.0
    %3271 = vmatprep.subr.mxu0 0.0
    %3272 = vmatpush1.msra.mxu0 0.0
    %3273 = vmatprep.subr.mxu0 0.0
    %3274 = vmatpush1.msra.mxu0 0.0
    %3275 = vmatprep.subr.mxu0 0.0
    %3276 = vmatpush1.msra.mxu0 0.0
    %3277 = vmatprep.subr.mxu0 0.0
    %3278 = vmatpush1.msra.mxu0 0.0
    %3279 = vmatprep.subr.mxu0 0.0
    %3280 = vmatpush1.msra.mxu0 0.0
    %3281 = vmatprep.subr.mxu0 0.0
    %3282 = vmatpush1.msra.mxu0 0.0
    %3283 = vmatprep.subr.mxu0 0.0
    %3284 = vmatpush1.msra.mxu0 0.0
    %3285 = vmatprep.subr.mxu0 0.0
    %3286 = vmatpush1.msra.mxu0 0.0
    %3287 = vmatprep.subr.mxu0 0.0
    %3288 = vmatpush1.msra.mxu0 0.0
    %3289 = vmatprep.subr.mxu0 0.0
    %3290 = vmatpush1.msra.mxu0 0.0
    %3291 = vmatprep.subr.mxu0 0.0
    %3292 = vmatpush1.msra.mxu0 0.0
    %3293 = vmatprep.mubr.f32.mxu0 0.0
    %v3294 = vand.u32 %v2888, 4294901760
    %3295 = vmatmul.mubr.f32.gmra.mrb[0].mxu0 %v3294
    %v3296 = vpop.f32.mrb[0].mxu0
    %v3297 = vadd.f32 %v3214, %v3296
    %v3298 = vpop.f32.mrb[0].mxu0
    %3299 = vdwg.mxu0
    %3300 = vmatprep.subr.mxu0 0.0
    %v3301 = vand.u32 %v27, 4294901760
    %3302 = vmatpush1.msra.mxu0 %v3301
    %3303 = vmatprep.subr.mxu0 0.0
    %v3304 = vand.u32 %v28, 4294901760
    %3305 = vmatpush1.msra.mxu0 %v3304
    %3306 = vmatprep.subr.mxu0 0.0
    %v3307 = vand.u32 %v29, 4294901760
    %3308 = vmatpush1.msra.mxu0 %v3307
    %3309 = vmatprep.subr.mxu0 0.0
    %v3310 = vand.u32 %v30, 4294901760
    %3311 = vmatpush1.msra.mxu0 %v3310
    %3312 = vmatprep.subr.mxu0 0.0
    %3313 = vmatpush1.msra.mxu0 0.0
    %3314 = vmatprep.subr.mxu0 0.0
    %3315 = vmatpush1.msra.mxu0 0.0
    %3316 = vmatprep.subr.mxu0 0.0
    %3317 = vmatpush1.msra.mxu0 0.0
    %3318 = vmatprep.subr.mxu0 0.0
    %3319 = vmatpush1.msra.mxu0 0.0
    %3320 = vmatprep.subr.mxu0 0.0
    %3321 = vmatpush1.msra.mxu0 0.0
    %3322 = vmatprep.subr.mxu0 0.0
    %3323 = vmatpush1.msra.mxu0 0.0
    %3324 = vmatprep.subr.mxu0 0.0
    %3325 = vmatpush1.msra.mxu0 0.0
    %3326 = vmatprep.subr.mxu0 0.0
    %3327 = vmatpush1.msra.mxu0 0.0
    %3328 = vmatprep.subr.mxu0 0.0
    %3329 = vmatpush1.msra.mxu0 0.0
    %3330 = vmatprep.subr.mxu0 0.0
    %3331 = vmatpush1.msra.mxu0 0.0
    %3332 = vmatprep.subr.mxu0 0.0
    %3333 = vmatpush1.msra.mxu0 0.0
    %3334 = vmatprep.subr.mxu0 0.0
    %3335 = vmatpush1.msra.mxu0 0.0
    %3336 = vmatprep.subr.mxu0 0.0
    %3337 = vmatpush1.msra.mxu0 0.0
    %3338 = vmatprep.subr.mxu0 0.0
    %3339 = vmatpush1.msra.mxu0 0.0
    %3340 = vmatprep.subr.mxu0 0.0
    %3341 = vmatpush1.msra.mxu0 0.0
    %3342 = vmatprep.subr.mxu0 0.0
    %3343 = vmatpush1.msra.mxu0 0.0
    %3344 = vmatprep.subr.mxu0 0.0
    %3345 = vmatpush1.msra.mxu0 0.0
    %3346 = vmatprep.subr.mxu0 0.0
    %3347 = vmatpush1.msra.mxu0 0.0
    %3348 = vmatprep.subr.mxu0 0.0
    %3349 = vmatpush1.msra.mxu0 0.0
    %3350 = vmatprep.subr.mxu0 0.0
    %3351 = vmatpush1.msra.mxu0 0.0
    %3352 = vmatprep.subr.mxu0 0.0
    %3353 = vmatpush1.msra.mxu0 0.0
    %3354 = vmatprep.subr.mxu0 0.0
    %3355 = vmatpush1.msra.mxu0 0.0
    %3356 = vmatprep.subr.mxu0 0.0
    %3357 = vmatpush1.msra.mxu0 0.0
    %3358 = vmatprep.subr.mxu0 0.0
    %3359 = vmatpush1.msra.mxu0 0.0
    %3360 = vmatprep.subr.mxu0 0.0
    %3361 = vmatpush1.msra.mxu0 0.0
    %3362 = vmatprep.subr.mxu0 0.0
    %3363 = vmatpush1.msra.mxu0 0.0
    %3364 = vmatprep.subr.mxu0 0.0
    %3365 = vmatpush1.msra.mxu0 0.0
    %3366 = vmatprep.subr.mxu0 0.0
    %3367 = vmatpush1.msra.mxu0 0.0
    %3368 = vmatprep.mubr.f32.mxu0 0.0
    %v3369 = vand.u32 %v2888, 4294901760
    %3370 = vmatmul.mubr.f32.gmra.mrb[0].mxu0 %v3369
    %v3371 = vpop.f32.mrb[0].mxu0
    %v3372 = vadd.f32 %v3297, %v3371
    %v3373 = vpop.f32.mrb[0].mxu0
    %3374 = vdwg.mxu0
    %v3375 = vadd.f32 %v827, %v3372
    %v3376 = vmul.f32 %v3375, %v836
    %v3377 = vtanh.pop %v3376
    %v3378 = vmul.f32 %v836, %v3377
    %v3379 = vadd.f32 %v3378, %v837
    %v3380 = vmul.f32 %v3379, %v2878
    %3382 = vrot.lane.b32.xlu0 %v3379, 64
    %v3383 = vpop.permute.xlu0 %3382
    %v3385 = vmul.f32 %v3379, %v3383
    %3387 = vrot.lane.b32.xlu0 %v3385, 32
    %v3388 = vpop.permute.xlu0 %3387
    %v3390 = vadd.f32 %v3380, %v3388
    %v3391 = vtanh.pop %v3390
    %3393 = vrot.lane.b32.xlu0 %v3391, 64
    %v3394 = vpop.permute.xlu0 %3393
    %v3396 = vmul.f32 %v3379, %v3394
    %3398 = vrot.lane.b32.xlu0 %v3396, 32
    %v3399 = vpop.permute.xlu0 %3398
    %v3400 = vsel %vm838, %v3399, 0
    %3402 = vmatprep.subr.mxu0 0.0
    %v3403 = vand.u32 %v27, 4294901760
    %3404 = vmatpush1.msra.mxu0 %v3403
    %3405 = vmatprep.subr.mxu0 0.0
    %v3406 = vand.u32 %v28, 4294901760
    %3407 = vmatpush1.msra.mxu0 %v3406
    %3408 = vmatprep.subr.mxu0 0.0
    %v3409 = vand.u32 %v29, 4294901760
    %3410 = vmatpush1.msra.mxu0 %v3409
    %3411 = vmatprep.subr.mxu0 0.0
    %v3412 = vand.u32 %v30, 4294901760
    %3413 = vmatpush1.msra.mxu0 %v3412
    %3414 = vmatprep.subr.mxu0 0.0
    %3415 = vmatpush1.msra.mxu0 0.0
    %3416 = vmatprep.subr.mxu0 0.0
    %3417 = vmatpush1.msra.mxu0 0.0
    %3418 = vmatprep.subr.mxu0 0.0
    %3419 = vmatpush1.msra.mxu0 0.0
    %3420 = vmatprep.subr.mxu0 0.0
    %3421 = vmatpush1.msra.mxu0 0.0
    %3422 = vmatprep.subr.mxu0 0.0
    %3423 = vmatpush1.msra.mxu0 0.0
    %3424 = vmatprep.subr.mxu0 0.0
    %3425 = vmatpush1.msra.mxu0 0.0
    %3426 = vmatprep.subr.mxu0 0.0
    %3427 = vmatpush1.msra.mxu0 0.0
    %3428 = vmatprep.subr.mxu0 0.0
    %3429 = vmatpush1.msra.mxu0 0.0
    %3430 = vmatprep.subr.mxu0 0.0
    %3431 = vmatpush1.msra.mxu0 0.0
    %3432 = vmatprep.subr.mxu0 0.0
    %3433 = vmatpush1.msra.mxu0 0.0
    %3434 = vmatprep.subr.mxu0 0.0
    %3435 = vmatpush1.msra.mxu0 0.0
    %3436 = vmatprep.subr.mxu0 0.0
    %3437 = vmatpush1.msra.mxu0 0.0
    %3438 = vmatprep.subr.mxu0 0.0
    %3439 = vmatpush1.msra.mxu0 0.0
    %3440 = vmatprep.subr.mxu0 0.0
    %3441 = vmatpush1.msra.mxu0 0.0
    %3442 = vmatprep.subr.mxu0 0.0
    %3443 = vmatpush1.msra.mxu0 0.0
    %3444 = vmatprep.subr.mxu0 0.0
    %3445 = vmatpush1.msra.mxu0 0.0
    %3446 = vmatprep.subr.mxu0 0.0
    %3447 = vmatpush1.msra.mxu0 0.0
    %3448 = vmatprep.subr.mxu0 0.0
    %3449 = vmatpush1.msra.mxu0 0.0
    %3450 = vmatprep.subr.mxu0 0.0
    %3451 = vmatpush1.msra.mxu0 0.0
    %3452 = vmatprep.subr.mxu0 0.0
    %3453 = vmatpush1.msra.mxu0 0.0
    %3454 = vmatprep.subr.mxu0 0.0
    %3455 = vmatpush1.msra.mxu0 0.0
    %3456 = vmatprep.subr.mxu0 0.0
    %3457 = vmatpush1.msra.mxu0 0.0
    %3458 = vmatprep.subr.mxu0 0.0
    %3459 = vmatpush1.msra.mxu0 0.0
    %3460 = vmatprep.subr.mxu0 0.0
    %3461 = vmatpush1.msra.mxu0 0.0
    %3462 = vmatprep.subr.mxu0 0.0
    %3463 = vmatpush1.msra.mxu0 0.0
    %3464 = vmatprep.subr.mxu0 0.0
    %3465 = vmatpush1.msra.mxu0 0.0
    %3466 = vmatprep.subr.mxu0 0.0
    %3467 = vmatpush1.msra.mxu0 0.0
    %3468 = vmatprep.subr.mxu0 0.0
    %3469 = vmatpush1.msra.mxu0 0.0
    %3470 = vmatprep.mubr.f32.mxu0 0.0
    %v3471 = vand.u32 %v3400, 4294901760
    %v3472 = vsub.f32 %v3400, %v3471
    %v3473 = vand.u32 %v3472, 4294901760
    %v3474 = vsub.f32 %v3472, %v3473
    %v3475 = vand.u32 %v3474, 4294901760
    %3476 = vmatmul.mubr.f32.gmra.mrb[0].mxu0 %v3475
    %v3477 = vpop.f32.mrb[0].mxu0
    %v3478 = vadd.f32 0.0, %v3477
    %v3479 = vpop.f32.mrb[0].mxu0
    %3480 = vdwg.mxu0
    %3481 = vmatprep.subr.mxu0 0.0
    %v3482 = vand.u32 %v27, 4294901760
    %v3483 = vsub.f32 %v27, %v3482
    %v3484 = vand.u32 %v3483, 4294901760
    %v3485 = vsub.f32 %v3483, %v3484
    %v3486 = vand.u32 %v3485, 4294901760
    %3487 = vmatpush1.msra.mxu0 %v3486
    %3488 = vmatprep.subr.mxu0 0.0
    %v3489 = vand.u32 %v28, 4294901760
    %v3490 = vsub.f32 %v28, %v3489
    %v3491 = vand.u32 %v3490, 4294901760
    %v3492 = vsub.f32 %v3490, %v3491
    %v3493 = vand.u32 %v3492, 4294901760
    %3494 = vmatpush1.msra.mxu0 %v3493
    %3495 = vmatprep.subr.mxu0 0.0
    %v3496 = vand.u32 %v29, 4294901760
    %v3497 = vsub.f32 %v29, %v3496
    %v3498 = vand.u32 %v3497, 4294901760
    %v3499 = vsub.f32 %v3497, %v3498
    %v3500 = vand.u32 %v3499, 4294901760
    %3501 = vmatpush1.msra.mxu0 %v3500
    %3502 = vmatprep.subr.mxu0 0.0
    %v3503 = vand.u32 %v30, 4294901760
    %v3504 = vsub.f32 %v30, %v3503
    %v3505 = vand.u32 %v3504, 4294901760
    %v3506 = vsub.f32 %v3504, %v3505
    %v3507 = vand.u32 %v3506, 4294901760
    %3508 = vmatpush1.msra.mxu0 %v3507
    %3509 = vmatprep.subr.mxu0 0.0
    %3510 = vmatpush1.msra.mxu0 0.0
    %3511 = vmatprep.subr.mxu0 0.0
    %3512 = vmatpush1.msra.mxu0 0.0
    %3513 = vmatprep.subr.mxu0 0.0
    %3514 = vmatpush1.msra.mxu0 0.0
    %3515 = vmatprep.subr.mxu0 0.0
    %3516 = vmatpush1.msra.mxu0 0.0
    %3517 = vmatprep.subr.mxu0 0.0
    %3518 = vmatpush1.msra.mxu0 0.0
    %3519 = vmatprep.subr.mxu0 0.0
    %3520 = vmatpush1.msra.mxu0 0.0
    %3521 = vmatprep.subr.mxu0 0.0
    %3522 = vmatpush1.msra.mxu0 0.0
    %3523 = vmatprep.subr.mxu0 0.0
    %3524 = vmatpush1.msra.mxu0 0.0
    %3525 = vmatprep.subr.mxu0 0.0
    %3526 = vmatpush1.msra.mxu0 0.0
    %3527 = vmatprep.subr.mxu0 0.0
    %3528 = vmatpush1.msra.mxu0 0.0
    %3529 = vmatprep.subr.mxu0 0.0
    %3530 = vmatpush1.msra.mxu0 0.0
    %3531 = vmatprep.subr.mxu0 0.0
    %3532 = vmatpush1.msra.mxu0 0.0
    %3533 = vmatprep.subr.mxu0 0.0
    %3534 = vmatpush1.msra.mxu0 0.0
    %3535 = vmatprep.subr.mxu0 0.0
    %3536 = vmatpush1.msra.mxu0 0.0
    %3537 = vmatprep.subr.mxu0 0.0
    %3538 = vmatpush1.msra.mxu0 0.0
    %3539 = vmatprep.subr.mxu0 0.0
    %3540 = vmatpush1.msra.mxu0 0.0
    %3541 = vmatprep.subr.mxu0 0.0
    %3542 = vmatpush1.msra.mxu0 0.0
    %3543 = vmatprep.subr.mxu0 0.0
    %3544 = vmatpush1.msra.mxu0 0.0
    %3545 = vmatprep.subr.mxu0 0.0
    %3546 = vmatpush1.msra.mxu0 0.0
    %3547 = vmatprep.subr.mxu0 0.0
    %3548 = vmatpush1.msra.mxu0 0.0
    %3549 = vmatprep.subr.mxu0 0.0
    %3550 = vmatpush1.msra.mxu0 0.0
    %3551 = vmatprep.subr.mxu0 0.0
    %3552 = vmatpush1.msra.mxu0 0.0
    %3553 = vmatprep.subr.mxu0 0.0
    %3554 = vmatpush1.msra.mxu0 0.0
    %3555 = vmatprep.subr.mxu0 0.0
    %3556 = vmatpush1.msra.mxu0 0.0
    %3557 = vmatprep.subr.mxu0 0.0
    %3558 = vmatpush1.msra.mxu0 0.0
    %3559 = vmatprep.subr.mxu0 0.0
    %3560 = vmatpush1.msra.mxu0 0.0
    %3561 = vmatprep.subr.mxu0 0.0
    %3562 = vmatpush1.msra.mxu0 0.0
    %3563 = vmatprep.subr.mxu0 0.0
    %3564 = vmatpush1.msra.mxu0 0.0
    %3565 = vmatprep.mubr.f32.mxu0 0.0
    %v3566 = vand.u32 %v3400, 4294901760
    %3567 = vmatmul.mubr.f32.gmra.mrb[0].mxu0 %v3566
    %v3568 = vpop.f32.mrb[0].mxu0
    %v3569 = vadd.f32 %v3478, %v3568
    %v3570 = vpop.f32.mrb[0].mxu0
    %3571 = vdwg.mxu0
    %3572 = vmatprep.subr.mxu0 0.0
    %v3573 = vand.u32 %v27, 4294901760
    %v3574 = vsub.f32 %v27, %v3573
    %3575 = vmatpush1.msra.mxu0 %v3574
    %3576 = vmatprep.subr.mxu0 0.0
    %v3577 = vand.u32 %v28, 4294901760
    %v3578 = vsub.f32 %v28, %v3577
    %3579 = vmatpush1.msra.mxu0 %v3578
    %3580 = vmatprep.subr.mxu0 0.0
    %v3581 = vand.u32 %v29, 4294901760
    %v3582 = vsub.f32 %v29, %v3581
    %3583 = vmatpush1.msra.mxu0 %v3582
    %3584 = vmatprep.subr.mxu0 0.0
    %v3585 = vand.u32 %v30, 4294901760
    %v3586 = vsub.f32 %v30, %v3585
    %3587 = vmatpush1.msra.mxu0 %v3586
    %3588 = vmatprep.subr.mxu0 0.0
    %3589 = vmatpush1.msra.mxu0 0.0
    %3590 = vmatprep.subr.mxu0 0.0
    %3591 = vmatpush1.msra.mxu0 0.0
    %3592 = vmatprep.subr.mxu0 0.0
    %3593 = vmatpush1.msra.mxu0 0.0
    %3594 = vmatprep.subr.mxu0 0.0
    %3595 = vmatpush1.msra.mxu0 0.0
    %3596 = vmatprep.subr.mxu0 0.0
    %3597 = vmatpush1.msra.mxu0 0.0
    %3598 = vmatprep.subr.mxu0 0.0
    %3599 = vmatpush1.msra.mxu0 0.0
    %3600 = vmatprep.subr.mxu0 0.0
    %3601 = vmatpush1.msra.mxu0 0.0
    %3602 = vmatprep.subr.mxu0 0.0
    %3603 = vmatpush1.msra.mxu0 0.0
    %3604 = vmatprep.subr.mxu0 0.0
    %3605 = vmatpush1.msra.mxu0 0.0
    %3606 = vmatprep.subr.mxu0 0.0
    %3607 = vmatpush1.msra.mxu0 0.0
    %3608 = vmatprep.subr.mxu0 0.0
    %3609 = vmatpush1.msra.mxu0 0.0
    %3610 = vmatprep.subr.mxu0 0.0
    %3611 = vmatpush1.msra.mxu0 0.0
    %3612 = vmatprep.subr.mxu0 0.0
    %3613 = vmatpush1.msra.mxu0 0.0
    %3614 = vmatprep.subr.mxu0 0.0
    %3615 = vmatpush1.msra.mxu0 0.0
    %3616 = vmatprep.subr.mxu0 0.0
    %3617 = vmatpush1.msra.mxu0 0.0
    %3618 = vmatprep.subr.mxu0 0.0
    %3619 = vmatpush1.msra.mxu0 0.0
    %3620 = vmatprep.subr.mxu0 0.0
    %3621 = vmatpush1.msra.mxu0 0.0
    %3622 = vmatprep.subr.mxu0 0.0
    %3623 = vmatpush1.msra.mxu0 0.0
    %3624 = vmatprep.subr.mxu0 0.0
    %3625 = vmatpush1.msra.mxu0 0.0
    %3626 = vmatprep.subr.mxu0 0.0
    %3627 = vmatpush1.msra.mxu0 0.0
    %3628 = vmatprep.subr.mxu0 0.0
    %3629 = vmatpush1.msra.mxu0 0.0
    %3630 = vmatprep.subr.mxu0 0.0
    %3631 = vmatpush1.msra.mxu0 0.0
    %3632 = vmatprep.subr.mxu0 0.0
    %3633 = vmatpush1.msra.mxu0 0.0
    %3634 = vmatprep.subr.mxu0 0.0
    %3635 = vmatpush1.msra.mxu0 0.0
    %3636 = vmatprep.subr.mxu0 0.0
    %3637 = vmatpush1.msra.mxu0 0.0
    %3638 = vmatprep.subr.mxu0 0.0
    %3639 = vmatpush1.msra.mxu0 0.0
    %3640 = vmatprep.subr.mxu0 0.0
    %3641 = vmatpush1.msra.mxu0 0.0
    %3642 = vmatprep.subr.mxu0 0.0
    %3643 = vmatpush1.msra.mxu0 0.0
    %3644 = vmatprep.mubr.f32.mxu0 0.0
    %v3645 = vand.u32 %v3400, 4294901760
    %v3646 = vsub.f32 %v3400, %v3645
    %3647 = vmatmul.mubr.f32.gmra.mrb[0].mxu0 %v3646
    %v3648 = vpop.f32.mrb[0].mxu0
    %v3649 = vadd.f32 %v3569, %v3648
    %v3650 = vpop.f32.mrb[0].mxu0
    %3651 = vdwg.mxu0
    %3652 = vmatprep.subr.mxu0 0.0
    %v3653 = vand.u32 %v27, 4294901760
    %3654 = vmatpush1.msra.mxu0 %v3653
    %3655 = vmatprep.subr.mxu0 0.0
    %v3656 = vand.u32 %v28, 4294901760
    %3657 = vmatpush1.msra.mxu0 %v3656
    %3658 = vmatprep.subr.mxu0 0.0
    %v3659 = vand.u32 %v29, 4294901760
    %3660 = vmatpush1.msra.mxu0 %v3659
    %3661 = vmatprep.subr.mxu0 0.0
    %v3662 = vand.u32 %v30, 4294901760
    %3663 = vmatpush1.msra.mxu0 %v3662
    %3664 = vmatprep.subr.mxu0 0.0
    %3665 = vmatpush1.msra.mxu0 0.0
    %3666 = vmatprep.subr.mxu0 0.0
    %3667 = vmatpush1.msra.mxu0 0.0
    %3668 = vmatprep.subr.mxu0 0.0
    %3669 = vmatpush1.msra.mxu0 0.0
    %3670 = vmatprep.subr.mxu0 0.0
    %3671 = vmatpush1.msra.mxu0 0.0
    %3672 = vmatprep.subr.mxu0 0.0
    %3673 = vmatpush1.msra.mxu0 0.0
    %3674 = vmatprep.subr.mxu0 0.0
    %3675 = vmatpush1.msra.mxu0 0.0
    %3676 = vmatprep.subr.mxu0 0.0
    %3677 = vmatpush1.msra.mxu0 0.0
    %3678 = vmatprep.subr.mxu0 0.0
    %3679 = vmatpush1.msra.mxu0 0.0
    %3680 = vmatprep.subr.mxu0 0.0
    %3681 = vmatpush1.msra.mxu0 0.0
    %3682 = vmatprep.subr.mxu0 0.0
    %3683 = vmatpush1.msra.mxu0 0.0
    %3684 = vmatprep.subr.mxu0 0.0
    %3685 = vmatpush1.msra.mxu0 0.0
    %3686 = vmatprep.subr.mxu0 0.0
    %3687 = vmatpush1.msra.mxu0 0.0
    %3688 = vmatprep.subr.mxu0 0.0
    %3689 = vmatpush1.msra.mxu0 0.0
    %3690 = vmatprep.subr.mxu0 0.0
    %3691 = vmatpush1.msra.mxu0 0.0
    %3692 = vmatprep.subr.mxu0 0.0
    %3693 = vmatpush1.msra.mxu0 0.0
    %3694 = vmatprep.subr.mxu0 0.0
    %3695 = vmatpush1.msra.mxu0 0.0
    %3696 = vmatprep.subr.mxu0 0.0
    %3697 = vmatpush1.msra.mxu0 0.0
    %3698 = vmatprep.subr.mxu0 0.0
    %3699 = vmatpush1.msra.mxu0 0.0
    %3700 = vmatprep.subr.mxu0 0.0
    %3701 = vmatpush1.msra.mxu0 0.0
    %3702 = vmatprep.subr.mxu0 0.0
    %3703 = vmatpush1.msra.mxu0 0.0
    %3704 = vmatprep.subr.mxu0 0.0
    %3705 = vmatpush1.msra.mxu0 0.0
    %3706 = vmatprep.subr.mxu0 0.0
    %3707 = vmatpush1.msra.mxu0 0.0
    %3708 = vmatprep.subr.mxu0 0.0
    %3709 = vmatpush1.msra.mxu0 0.0
    %3710 = vmatprep.subr.mxu0 0.0
    %3711 = vmatpush1.msra.mxu0 0.0
    %3712 = vmatprep.subr.mxu0 0.0
    %3713 = vmatpush1.msra.mxu0 0.0
    %3714 = vmatprep.subr.mxu0 0.0
    %3715 = vmatpush1.msra.mxu0 0.0
    %3716 = vmatprep.subr.mxu0 0.0
    %3717 = vmatpush1.msra.mxu0 0.0
    %3718 = vmatprep.subr.mxu0 0.0
    %3719 = vmatpush1.msra.mxu0 0.0
    %3720 = vmatprep.mubr.f32.mxu0 0.0
    %v3721 = vand.u32 %v3400, 4294901760
    %v3722 = vsub.f32 %v3400, %v3721
    %v3723 = vand.u32 %v3722, 4294901760
    %3724 = vmatmul.mubr.f32.gmra.mrb[0].mxu0 %v3723
    %v3725 = vpop.f32.mrb[0].mxu0
    %v3726 = vadd.f32 %v3649, %v3725
    %v3727 = vpop.f32.mrb[0].mxu0
    %3728 = vdwg.mxu0
    %3729 = vmatprep.subr.mxu0 0.0
    %v3730 = vand.u32 %v27, 4294901760
    %v3731 = vsub.f32 %v27, %v3730
    %v3732 = vand.u32 %v3731, 4294901760
    %3733 = vmatpush1.msra.mxu0 %v3732
    %3734 = vmatprep.subr.mxu0 0.0
    %v3735 = vand.u32 %v28, 4294901760
    %v3736 = vsub.f32 %v28, %v3735
    %v3737 = vand.u32 %v3736, 4294901760
    %3738 = vmatpush1.msra.mxu0 %v3737
    %3739 = vmatprep.subr.mxu0 0.0
    %v3740 = vand.u32 %v29, 4294901760
    %v3741 = vsub.f32 %v29, %v3740
    %v3742 = vand.u32 %v3741, 4294901760
    %3743 = vmatpush1.msra.mxu0 %v3742
    %3744 = vmatprep.subr.mxu0 0.0
    %v3745 = vand.u32 %v30, 4294901760
    %v3746 = vsub.f32 %v30, %v3745
    %v3747 = vand.u32 %v3746, 4294901760
    %3748 = vmatpush1.msra.mxu0 %v3747
    %3749 = vmatprep.subr.mxu0 0.0
    %3750 = vmatpush1.msra.mxu0 0.0
    %3751 = vmatprep.subr.mxu0 0.0
    %3752 = vmatpush1.msra.mxu0 0.0
    %3753 = vmatprep.subr.mxu0 0.0
    %3754 = vmatpush1.msra.mxu0 0.0
    %3755 = vmatprep.subr.mxu0 0.0
    %3756 = vmatpush1.msra.mxu0 0.0
    %3757 = vmatprep.subr.mxu0 0.0
    %3758 = vmatpush1.msra.mxu0 0.0
    %3759 = vmatprep.subr.mxu0 0.0
    %3760 = vmatpush1.msra.mxu0 0.0
    %3761 = vmatprep.subr.mxu0 0.0
    %3762 = vmatpush1.msra.mxu0 0.0
    %3763 = vmatprep.subr.mxu0 0.0
    %3764 = vmatpush1.msra.mxu0 0.0
    %3765 = vmatprep.subr.mxu0 0.0
    %3766 = vmatpush1.msra.mxu0 0.0
    %3767 = vmatprep.subr.mxu0 0.0
    %3768 = vmatpush1.msra.mxu0 0.0
    %3769 = vmatprep.subr.mxu0 0.0
    %3770 = vmatpush1.msra.mxu0 0.0
    %3771 = vmatprep.subr.mxu0 0.0
    %3772 = vmatpush1.msra.mxu0 0.0
    %3773 = vmatprep.subr.mxu0 0.0
    %3774 = vmatpush1.msra.mxu0 0.0
    %3775 = vmatprep.subr.mxu0 0.0
    %3776 = vmatpush1.msra.mxu0 0.0
    %3777 = vmatprep.subr.mxu0 0.0
    %3778 = vmatpush1.msra.mxu0 0.0
    %3779 = vmatprep.subr.mxu0 0.0
    %3780 = vmatpush1.msra.mxu0 0.0
    %3781 = vmatprep.subr.mxu0 0.0
    %3782 = vmatpush1.msra.mxu0 0.0
    %3783 = vmatprep.subr.mxu0 0.0
    %3784 = vmatpush1.msra.mxu0 0.0
    %3785 = vmatprep.subr.mxu0 0.0
    %3786 = vmatpush1.msra.mxu0 0.0
    %3787 = vmatprep.subr.mxu0 0.0
    %3788 = vmatpush1.msra.mxu0 0.0
    %3789 = vmatprep.subr.mxu0 0.0
    %3790 = vmatpush1.msra.mxu0 0.0
    %3791 = vmatprep.subr.mxu0 0.0
    %3792 = vmatpush1.msra.mxu0 0.0
    %3793 = vmatprep.subr.mxu0 0.0
    %3794 = vmatpush1.msra.mxu0 0.0
    %3795 = vmatprep.subr.mxu0 0.0
    %3796 = vmatpush1.msra.mxu0 0.0
    %3797 = vmatprep.subr.mxu0 0.0
    %3798 = vmatpush1.msra.mxu0 0.0
    %3799 = vmatprep.subr.mxu0 0.0
    %3800 = vmatpush1.msra.mxu0 0.0
    %3801 = vmatprep.subr.mxu0 0.0
    %3802 = vmatpush1.msra.mxu0 0.0
    %3803 = vmatprep.subr.mxu0 0.0
    %3804 = vmatpush1.msra.mxu0 0.0
    %3805 = vmatprep.mubr.f32.mxu0 0.0
    %v3806 = vand.u32 %v3400, 4294901760
    %3807 = vmatmul.mubr.f32.gmra.mrb[0].mxu0 %v3806
    %v3808 = vpop.f32.mrb[0].mxu0
    %v3809 = vadd.f32 %v3726, %v3808
    %v3810 = vpop.f32.mrb[0].mxu0
    %3811 = vdwg.mxu0
    %3812 = vmatprep.subr.mxu0 0.0
    %v3813 = vand.u32 %v27, 4294901760
    %3814 = vmatpush1.msra.mxu0 %v3813
    %3815 = vmatprep.subr.mxu0 0.0
    %v3816 = vand.u32 %v28, 4294901760
    %3817 = vmatpush1.msra.mxu0 %v3816
    %3818 = vmatprep.subr.mxu0 0.0
    %v3819 = vand.u32 %v29, 4294901760
    %3820 = vmatpush1.msra.mxu0 %v3819
    %3821 = vmatprep.subr.mxu0 0.0
    %v3822 = vand.u32 %v30, 4294901760
    %3823 = vmatpush1.msra.mxu0 %v3822
    %3824 = vmatprep.subr.mxu0 0.0
    %3825 = vmatpush1.msra.mxu0 0.0
    %3826 = vmatprep.subr.mxu0 0.0
    %3827 = vmatpush1.msra.mxu0 0.0
    %3828 = vmatprep.subr.mxu0 0.0
    %3829 = vmatpush1.msra.mxu0 0.0
    %3830 = vmatprep.subr.mxu0 0.0
    %3831 = vmatpush1.msra.mxu0 0.0
    %3832 = vmatprep.subr.mxu0 0.0
    %3833 = vmatpush1.msra.mxu0 0.0
    %3834 = vmatprep.subr.mxu0 0.0
    %3835 = vmatpush1.msra.mxu0 0.0
    %3836 = vmatprep.subr.mxu0 0.0
    %3837 = vmatpush1.msra.mxu0 0.0
    %3838 = vmatprep.subr.mxu0 0.0
    %3839 = vmatpush1.msra.mxu0 0.0
    %3840 = vmatprep.subr.mxu0 0.0
    %3841 = vmatpush1.msra.mxu0 0.0
    %3842 = vmatprep.subr.mxu0 0.0
    %3843 = vmatpush1.msra.mxu0 0.0
    %3844 = vmatprep.subr.mxu0 0.0
    %3845 = vmatpush1.msra.mxu0 0.0
    %3846 = vmatprep.subr.mxu0 0.0
    %3847 = vmatpush1.msra.mxu0 0.0
    %3848 = vmatprep.subr.mxu0 0.0
    %3849 = vmatpush1.msra.mxu0 0.0
    %3850 = vmatprep.subr.mxu0 0.0
    %3851 = vmatpush1.msra.mxu0 0.0
    %3852 = vmatprep.subr.mxu0 0.0
    %3853 = vmatpush1.msra.mxu0 0.0
    %3854 = vmatprep.subr.mxu0 0.0
    %3855 = vmatpush1.msra.mxu0 0.0
    %3856 = vmatprep.subr.mxu0 0.0
    %3857 = vmatpush1.msra.mxu0 0.0
    %3858 = vmatprep.subr.mxu0 0.0
    %3859 = vmatpush1.msra.mxu0 0.0
    %3860 = vmatprep.subr.mxu0 0.0
    %3861 = vmatpush1.msra.mxu0 0.0
    %3862 = vmatprep.subr.mxu0 0.0
    %3863 = vmatpush1.msra.mxu0 0.0
    %3864 = vmatprep.subr.mxu0 0.0
    %3865 = vmatpush1.msra.mxu0 0.0
    %3866 = vmatprep.subr.mxu0 0.0
    %3867 = vmatpush1.msra.mxu0 0.0
    %3868 = vmatprep.subr.mxu0 0.0
    %3869 = vmatpush1.msra.mxu0 0.0
    %3870 = vmatprep.subr.mxu0 0.0
    %3871 = vmatpush1.msra.mxu0 0.0
    %3872 = vmatprep.subr.mxu0 0.0
    %3873 = vmatpush1.msra.mxu0 0.0
    %3874 = vmatprep.subr.mxu0 0.0
    %3875 = vmatpush1.msra.mxu0 0.0
    %3876 = vmatprep.subr.mxu0 0.0
    %3877 = vmatpush1.msra.mxu0 0.0
    %3878 = vmatprep.subr.mxu0 0.0
    %3879 = vmatpush1.msra.mxu0 0.0
    %3880 = vmatprep.mubr.f32.mxu0 0.0
    %v3881 = vand.u32 %v3400, 4294901760
    %3882 = vmatmul.mubr.f32.gmra.mrb[0].mxu0 %v3881
    %v3883 = vpop.f32.mrb[0].mxu0
    %v3884 = vadd.f32 %v3809, %v3883
    %v3885 = vpop.f32.mrb[0].mxu0
    %3886 = vdwg.mxu0
    %v3887 = vadd.f32 %v828, %v3884
    %v3888 = vmul.f32 %v3887, %v836
    %v3889 = vtanh.pop %v3888
    %v3890 = vmul.f32 %v836, %v3889
    %v3891 = vadd.f32 %v3890, %v837
    %v3892 = vmul.f32 %v3891, %v3390
    %3894 = vrot.lane.b32.xlu0 %v3891, 64
    %v3895 = vpop.permute.xlu0 %3894
    %v3897 = vmul.f32 %v3891, %v3895
    %3899 = vrot.lane.b32.xlu0 %v3897, 32
    %v3900 = vpop.permute.xlu0 %3899
    %v3902 = vadd.f32 %v3892, %v3900
    %v3903 = vtanh.pop %v3902
    %3905 = vrot.lane.b32.xlu0 %v3903, 64
    %v3906 = vpop.permute.xlu0 %3905
    %v3908 = vmul.f32 %v3891, %v3906
    %3910 = vrot.lane.b32.xlu0 %v3908, 32
    %v3911 = vpop.permute.xlu0 %3910
    %v3912 = vsel %vm838, %v3911, 0
    %3914 = vmatprep.subr.mxu0 0.0
    %v3915 = vand.u32 %v27, 4294901760
    %3916 = vmatpush1.msra.mxu0 %v3915
    %3917 = vmatprep.subr.mxu0 0.0
    %v3918 = vand.u32 %v28, 4294901760
    %3919 = vmatpush1.msra.mxu0 %v3918
    %3920 = vmatprep.subr.mxu0 0.0
    %v3921 = vand.u32 %v29, 4294901760
    %3922 = vmatpush1.msra.mxu0 %v3921
    %3923 = vmatprep.subr.mxu0 0.0
    %v3924 = vand.u32 %v30, 4294901760
    %3925 = vmatpush1.msra.mxu0 %v3924
    %3926 = vmatprep.subr.mxu0 0.0
    %3927 = vmatpush1.msra.mxu0 0.0
    %3928 = vmatprep.subr.mxu0 0.0
    %3929 = vmatpush1.msra.mxu0 0.0
    %3930 = vmatprep.subr.mxu0 0.0
    %3931 = vmatpush1.msra.mxu0 0.0
    %3932 = vmatprep.subr.mxu0 0.0
    %3933 = vmatpush1.msra.mxu0 0.0
    %3934 = vmatprep.subr.mxu0 0.0
    %3935 = vmatpush1.msra.mxu0 0.0
    %3936 = vmatprep.subr.mxu0 0.0
    %3937 = vmatpush1.msra.mxu0 0.0
    %3938 = vmatprep.subr.mxu0 0.0
    %3939 = vmatpush1.msra.mxu0 0.0
    %3940 = vmatprep.subr.mxu0 0.0
    %3941 = vmatpush1.msra.mxu0 0.0
    %3942 = vmatprep.subr.mxu0 0.0
    %3943 = vmatpush1.msra.mxu0 0.0
    %3944 = vmatprep.subr.mxu0 0.0
    %3945 = vmatpush1.msra.mxu0 0.0
    %3946 = vmatprep.subr.mxu0 0.0
    %3947 = vmatpush1.msra.mxu0 0.0
    %3948 = vmatprep.subr.mxu0 0.0
    %3949 = vmatpush1.msra.mxu0 0.0
    %3950 = vmatprep.subr.mxu0 0.0
    %3951 = vmatpush1.msra.mxu0 0.0
    %3952 = vmatprep.subr.mxu0 0.0
    %3953 = vmatpush1.msra.mxu0 0.0
    %3954 = vmatprep.subr.mxu0 0.0
    %3955 = vmatpush1.msra.mxu0 0.0
    %3956 = vmatprep.subr.mxu0 0.0
    %3957 = vmatpush1.msra.mxu0 0.0
    %3958 = vmatprep.subr.mxu0 0.0
    %3959 = vmatpush1.msra.mxu0 0.0
    %3960 = vmatprep.subr.mxu0 0.0
    %3961 = vmatpush1.msra.mxu0 0.0
    %3962 = vmatprep.subr.mxu0 0.0
    %3963 = vmatpush1.msra.mxu0 0.0
    %3964 = vmatprep.subr.mxu0 0.0
    %3965 = vmatpush1.msra.mxu0 0.0
    %3966 = vmatprep.subr.mxu0 0.0
    %3967 = vmatpush1.msra.mxu0 0.0
    %3968 = vmatprep.subr.mxu0 0.0
    %3969 = vmatpush1.msra.mxu0 0.0
    %3970 = vmatprep.subr.mxu0 0.0
    %3971 = vmatpush1.msra.mxu0 0.0
    %3972 = vmatprep.subr.mxu0 0.0
    %3973 = vmatpush1.msra.mxu0 0.0
    %3974 = vmatprep.subr.mxu0 0.0
    %3975 = vmatpush1.msra.mxu0 0.0
    %3976 = vmatprep.subr.mxu0 0.0
    %3977 = vmatpush1.msra.mxu0 0.0
    %3978 = vmatprep.subr.mxu0 0.0
    %3979 = vmatpush1.msra.mxu0 0.0
    %3980 = vmatprep.subr.mxu0 0.0
    %3981 = vmatpush1.msra.mxu0 0.0
    %3982 = vmatprep.mubr.f32.mxu0 0.0
    %v3983 = vand.u32 %v3912, 4294901760
    %v3984 = vsub.f32 %v3912, %v3983
    %v3985 = vand.u32 %v3984, 4294901760
    %v3986 = vsub.f32 %v3984, %v3985
    %v3987 = vand.u32 %v3986, 4294901760
    %3988 = vmatmul.mubr.f32.gmra.mrb[0].mxu0 %v3987
    %v3989 = vpop.f32.mrb[0].mxu0
    %v3990 = vadd.f32 0.0, %v3989
    %v3991 = vpop.f32.mrb[0].mxu0
    %3992 = vdwg.mxu0
    %3993 = vmatprep.subr.mxu0 0.0
    %v3994 = vand.u32 %v27, 4294901760
    %v3995 = vsub.f32 %v27, %v3994
    %v3996 = vand.u32 %v3995, 4294901760
    %v3997 = vsub.f32 %v3995, %v3996
    %v3998 = vand.u32 %v3997, 4294901760
    %3999 = vmatpush1.msra.mxu0 %v3998
    %4000 = vmatprep.subr.mxu0 0.0
    %v4001 = vand.u32 %v28, 4294901760
    %v4002 = vsub.f32 %v28, %v4001
    %v4003 = vand.u32 %v4002, 4294901760
    %v4004 = vsub.f32 %v4002, %v4003
    %v4005 = vand.u32 %v4004, 4294901760
    %4006 = vmatpush1.msra.mxu0 %v4005
    %4007 = vmatprep.subr.mxu0 0.0
    %v4008 = vand.u32 %v29, 4294901760
    %v4009 = vsub.f32 %v29, %v4008
    %v4010 = vand.u32 %v4009, 4294901760
    %v4011 = vsub.f32 %v4009, %v4010
    %v4012 = vand.u32 %v4011, 4294901760
    %4013 = vmatpush1.msra.mxu0 %v4012
    %4014 = vmatprep.subr.mxu0 0.0
    %v4015 = vand.u32 %v30, 4294901760
    %v4016 = vsub.f32 %v30, %v4015
    %v4017 = vand.u32 %v4016, 4294901760
    %v4018 = vsub.f32 %v4016, %v4017
    %v4019 = vand.u32 %v4018, 4294901760
    %4020 = vmatpush1.msra.mxu0 %v4019
    %4021 = vmatprep.subr.mxu0 0.0
    %4022 = vmatpush1.msra.mxu0 0.0
    %4023 = vmatprep.subr.mxu0 0.0
    %4024 = vmatpush1.msra.mxu0 0.0
    %4025 = vmatprep.subr.mxu0 0.0
    %4026 = vmatpush1.msra.mxu0 0.0
    %4027 = vmatprep.subr.mxu0 0.0
    %4028 = vmatpush1.msra.mxu0 0.0
    %4029 = vmatprep.subr.mxu0 0.0
    %4030 = vmatpush1.msra.mxu0 0.0
    %4031 = vmatprep.subr.mxu0 0.0
    %4032 = vmatpush1.msra.mxu0 0.0
    %4033 = vmatprep.subr.mxu0 0.0
    %4034 = vmatpush1.msra.mxu0 0.0
    %4035 = vmatprep.subr.mxu0 0.0
    %4036 = vmatpush1.msra.mxu0 0.0
    %4037 = vmatprep.subr.mxu0 0.0
    %4038 = vmatpush1.msra.mxu0 0.0
    %4039 = vmatprep.subr.mxu0 0.0
    %4040 = vmatpush1.msra.mxu0 0.0
    %4041 = vmatprep.subr.mxu0 0.0
    %4042 = vmatpush1.msra.mxu0 0.0
    %4043 = vmatprep.subr.mxu0 0.0
    %4044 = vmatpush1.msra.mxu0 0.0
    %4045 = vmatprep.subr.mxu0 0.0
    %4046 = vmatpush1.msra.mxu0 0.0
    %4047 = vmatprep.subr.mxu0 0.0
    %4048 = vmatpush1.msra.mxu0 0.0
    %4049 = vmatprep.subr.mxu0 0.0
    %4050 = vmatpush1.msra.mxu0 0.0
    %4051 = vmatprep.subr.mxu0 0.0
    %4052 = vmatpush1.msra.mxu0 0.0
    %4053 = vmatprep.subr.mxu0 0.0
    %4054 = vmatpush1.msra.mxu0 0.0
    %4055 = vmatprep.subr.mxu0 0.0
    %4056 = vmatpush1.msra.mxu0 0.0
    %4057 = vmatprep.subr.mxu0 0.0
    %4058 = vmatpush1.msra.mxu0 0.0
    %4059 = vmatprep.subr.mxu0 0.0
    %4060 = vmatpush1.msra.mxu0 0.0
    %4061 = vmatprep.subr.mxu0 0.0
    %4062 = vmatpush1.msra.mxu0 0.0
    %4063 = vmatprep.subr.mxu0 0.0
    %4064 = vmatpush1.msra.mxu0 0.0
    %4065 = vmatprep.subr.mxu0 0.0
    %4066 = vmatpush1.msra.mxu0 0.0
    %4067 = vmatprep.subr.mxu0 0.0
    %4068 = vmatpush1.msra.mxu0 0.0
    %4069 = vmatprep.subr.mxu0 0.0
    %4070 = vmatpush1.msra.mxu0 0.0
    %4071 = vmatprep.subr.mxu0 0.0
    %4072 = vmatpush1.msra.mxu0 0.0
    %4073 = vmatprep.subr.mxu0 0.0
    %4074 = vmatpush1.msra.mxu0 0.0
    %4075 = vmatprep.subr.mxu0 0.0
    %4076 = vmatpush1.msra.mxu0 0.0
    %4077 = vmatprep.mubr.f32.mxu0 0.0
    %v4078 = vand.u32 %v3912, 4294901760
    %4079 = vmatmul.mubr.f32.gmra.mrb[0].mxu0 %v4078
    %v4080 = vpop.f32.mrb[0].mxu0
    %v4081 = vadd.f32 %v3990, %v4080
    %v4082 = vpop.f32.mrb[0].mxu0
    %4083 = vdwg.mxu0
    %4084 = vmatprep.subr.mxu0 0.0
    %v4085 = vand.u32 %v27, 4294901760
    %v4086 = vsub.f32 %v27, %v4085
    %4087 = vmatpush1.msra.mxu0 %v4086
    %4088 = vmatprep.subr.mxu0 0.0
    %v4089 = vand.u32 %v28, 4294901760
    %v4090 = vsub.f32 %v28, %v4089
    %4091 = vmatpush1.msra.mxu0 %v4090
    %4092 = vmatprep.subr.mxu0 0.0
    %v4093 = vand.u32 %v29, 4294901760
    %v4094 = vsub.f32 %v29, %v4093
    %4095 = vmatpush1.msra.mxu0 %v4094
    %4096 = vmatprep.subr.mxu0 0.0
    %v4097 = vand.u32 %v30, 4294901760
    %v4098 = vsub.f32 %v30, %v4097
    %4099 = vmatpush1.msra.mxu0 %v4098
    %4100 = vmatprep.subr.mxu0 0.0
    %4101 = vmatpush1.msra.mxu0 0.0
    %4102 = vmatprep.subr.mxu0 0.0
    %4103 = vmatpush1.msra.mxu0 0.0
    %4104 = vmatprep.subr.mxu0 0.0
    %4105 = vmatpush1.msra.mxu0 0.0
    %4106 = vmatprep.subr.mxu0 0.0
    %4107 = vmatpush1.msra.mxu0 0.0
    %4108 = vmatprep.subr.mxu0 0.0
    %4109 = vmatpush1.msra.mxu0 0.0
    %4110 = vmatprep.subr.mxu0 0.0
    %4111 = vmatpush1.msra.mxu0 0.0
    %4112 = vmatprep.subr.mxu0 0.0
    %4113 = vmatpush1.msra.mxu0 0.0
    %4114 = vmatprep.subr.mxu0 0.0
    %4115 = vmatpush1.msra.mxu0 0.0
    %4116 = vmatprep.subr.mxu0 0.0
    %4117 = vmatpush1.msra.mxu0 0.0
    %4118 = vmatprep.subr.mxu0 0.0
    %4119 = vmatpush1.msra.mxu0 0.0
    %4120 = vmatprep.subr.mxu0 0.0
    %4121 = vmatpush1.msra.mxu0 0.0
    %4122 = vmatprep.subr.mxu0 0.0
    %4123 = vmatpush1.msra.mxu0 0.0
    %4124 = vmatprep.subr.mxu0 0.0
    %4125 = vmatpush1.msra.mxu0 0.0
    %4126 = vmatprep.subr.mxu0 0.0
    %4127 = vmatpush1.msra.mxu0 0.0
    %4128 = vmatprep.subr.mxu0 0.0
    %4129 = vmatpush1.msra.mxu0 0.0
    %4130 = vmatprep.subr.mxu0 0.0
    %4131 = vmatpush1.msra.mxu0 0.0
    %4132 = vmatprep.subr.mxu0 0.0
    %4133 = vmatpush1.msra.mxu0 0.0
    %4134 = vmatprep.subr.mxu0 0.0
    %4135 = vmatpush1.msra.mxu0 0.0
    %4136 = vmatprep.subr.mxu0 0.0
    %4137 = vmatpush1.msra.mxu0 0.0
    %4138 = vmatprep.subr.mxu0 0.0
    %4139 = vmatpush1.msra.mxu0 0.0
    %4140 = vmatprep.subr.mxu0 0.0
    %4141 = vmatpush1.msra.mxu0 0.0
    %4142 = vmatprep.subr.mxu0 0.0
    %4143 = vmatpush1.msra.mxu0 0.0
    %4144 = vmatprep.subr.mxu0 0.0
    %4145 = vmatpush1.msra.mxu0 0.0
    %4146 = vmatprep.subr.mxu0 0.0
    %4147 = vmatpush1.msra.mxu0 0.0
    %4148 = vmatprep.subr.mxu0 0.0
    %4149 = vmatpush1.msra.mxu0 0.0
    %4150 = vmatprep.subr.mxu0 0.0
    %4151 = vmatpush1.msra.mxu0 0.0
    %4152 = vmatprep.subr.mxu0 0.0
    %4153 = vmatpush1.msra.mxu0 0.0
    %4154 = vmatprep.subr.mxu0 0.0
    %4155 = vmatpush1.msra.mxu0 0.0
    %4156 = vmatprep.mubr.f32.mxu0 0.0
    %v4157 = vand.u32 %v3912, 4294901760
    %v4158 = vsub.f32 %v3912, %v4157
    %4159 = vmatmul.mubr.f32.gmra.mrb[0].mxu0 %v4158
    %v4160 = vpop.f32.mrb[0].mxu0
    %v4161 = vadd.f32 %v4081, %v4160
    %v4162 = vpop.f32.mrb[0].mxu0
    %4163 = vdwg.mxu0
    %4164 = vmatprep.subr.mxu0 0.0
    %v4165 = vand.u32 %v27, 4294901760
    %4166 = vmatpush1.msra.mxu0 %v4165
    %4167 = vmatprep.subr.mxu0 0.0
    %v4168 = vand.u32 %v28, 4294901760
    %4169 = vmatpush1.msra.mxu0 %v4168
    %4170 = vmatprep.subr.mxu0 0.0
    %v4171 = vand.u32 %v29, 4294901760
    %4172 = vmatpush1.msra.mxu0 %v4171
    %4173 = vmatprep.subr.mxu0 0.0
    %v4174 = vand.u32 %v30, 4294901760
    %4175 = vmatpush1.msra.mxu0 %v4174
    %4176 = vmatprep.subr.mxu0 0.0
    %4177 = vmatpush1.msra.mxu0 0.0
    %4178 = vmatprep.subr.mxu0 0.0
    %4179 = vmatpush1.msra.mxu0 0.0
    %4180 = vmatprep.subr.mxu0 0.0
    %4181 = vmatpush1.msra.mxu0 0.0
    %4182 = vmatprep.subr.mxu0 0.0
    %4183 = vmatpush1.msra.mxu0 0.0
    %4184 = vmatprep.subr.mxu0 0.0
    %4185 = vmatpush1.msra.mxu0 0.0
    %4186 = vmatprep.subr.mxu0 0.0
    %4187 = vmatpush1.msra.mxu0 0.0
    %4188 = vmatprep.subr.mxu0 0.0
    %4189 = vmatpush1.msra.mxu0 0.0
    %4190 = vmatprep.subr.mxu0 0.0
    %4191 = vmatpush1.msra.mxu0 0.0
    %4192 = vmatprep.subr.mxu0 0.0
    %4193 = vmatpush1.msra.mxu0 0.0
    %4194 = vmatprep.subr.mxu0 0.0
    %4195 = vmatpush1.msra.mxu0 0.0
    %4196 = vmatprep.subr.mxu0 0.0
    %4197 = vmatpush1.msra.mxu0 0.0
    %4198 = vmatprep.subr.mxu0 0.0
    %4199 = vmatpush1.msra.mxu0 0.0
    %4200 = vmatprep.subr.mxu0 0.0
    %4201 = vmatpush1.msra.mxu0 0.0
    %4202 = vmatprep.subr.mxu0 0.0
    %4203 = vmatpush1.msra.mxu0 0.0
    %4204 = vmatprep.subr.mxu0 0.0
    %4205 = vmatpush1.msra.mxu0 0.0
    %4206 = vmatprep.subr.mxu0 0.0
    %4207 = vmatpush1.msra.mxu0 0.0
    %4208 = vmatprep.subr.mxu0 0.0
    %4209 = vmatpush1.msra.mxu0 0.0
    %4210 = vmatprep.subr.mxu0 0.0
    %4211 = vmatpush1.msra.mxu0 0.0
    %4212 = vmatprep.subr.mxu0 0.0
    %4213 = vmatpush1.msra.mxu0 0.0
    %4214 = vmatprep.subr.mxu0 0.0
    %4215 = vmatpush1.msra.mxu0 0.0
    %4216 = vmatprep.subr.mxu0 0.0
    %4217 = vmatpush1.msra.mxu0 0.0
    %4218 = vmatprep.subr.mxu0 0.0
    %4219 = vmatpush1.msra.mxu0 0.0
    %4220 = vmatprep.subr.mxu0 0.0
    %4221 = vmatpush1.msra.mxu0 0.0
    %4222 = vmatprep.subr.mxu0 0.0
    %4223 = vmatpush1.msra.mxu0 0.0
    %4224 = vmatprep.subr.mxu0 0.0
    %4225 = vmatpush1.msra.mxu0 0.0
    %4226 = vmatprep.subr.mxu0 0.0
    %4227 = vmatpush1.msra.mxu0 0.0
    %4228 = vmatprep.subr.mxu0 0.0
    %4229 = vmatpush1.msra.mxu0 0.0
    %4230 = vmatprep.subr.mxu0 0.0
    %4231 = vmatpush1.msra.mxu0 0.0
    %4232 = vmatprep.mubr.f32.mxu0 0.0
    %v4233 = vand.u32 %v3912, 4294901760
    %v4234 = vsub.f32 %v3912, %v4233
    %v4235 = vand.u32 %v4234, 4294901760
    %4236 = vmatmul.mubr.f32.gmra.mrb[0].mxu0 %v4235
    %v4237 = vpop.f32.mrb[0].mxu0
    %v4238 = vadd.f32 %v4161, %v4237
    %v4239 = vpop.f32.mrb[0].mxu0
    %4240 = vdwg.mxu0
    %4241 = vmatprep.subr.mxu0 0.0
    %v4242 = vand.u32 %v27, 4294901760
    %v4243 = vsub.f32 %v27, %v4242
    %v4244 = vand.u32 %v4243, 4294901760
    %4245 = vmatpush1.msra.mxu0 %v4244
    %4246 = vmatprep.subr.mxu0 0.0
    %v4247 = vand.u32 %v28, 4294901760
    %v4248 = vsub.f32 %v28, %v4247
    %v4249 = vand.u32 %v4248, 4294901760
    %4250 = vmatpush1.msra.mxu0 %v4249
    %4251 = vmatprep.subr.mxu0 0.0
    %v4252 = vand.u32 %v29, 4294901760
    %v4253 = vsub.f32 %v29, %v4252
    %v4254 = vand.u32 %v4253, 4294901760
    %4255 = vmatpush1.msra.mxu0 %v4254
    %4256 = vmatprep.subr.mxu0 0.0
    %v4257 = vand.u32 %v30, 4294901760
    %v4258 = vsub.f32 %v30, %v4257
    %v4259 = vand.u32 %v4258, 4294901760
    %4260 = vmatpush1.msra.mxu0 %v4259
    %4261 = vmatprep.subr.mxu0 0.0
    %4262 = vmatpush1.msra.mxu0 0.0
    %4263 = vmatprep.subr.mxu0 0.0
    %4264 = vmatpush1.msra.mxu0 0.0
    %4265 = vmatprep.subr.mxu0 0.0
    %4266 = vmatpush1.msra.mxu0 0.0
    %4267 = vmatprep.subr.mxu0 0.0
    %4268 = vmatpush1.msra.mxu0 0.0
    %4269 = vmatprep.subr.mxu0 0.0
    %4270 = vmatpush1.msra.mxu0 0.0
    %4271 = vmatprep.subr.mxu0 0.0
    %4272 = vmatpush1.msra.mxu0 0.0
    %4273 = vmatprep.subr.mxu0 0.0
    %4274 = vmatpush1.msra.mxu0 0.0
    %4275 = vmatprep.subr.mxu0 0.0
    %4276 = vmatpush1.msra.mxu0 0.0
    %4277 = vmatprep.subr.mxu0 0.0
    %4278 = vmatpush1.msra.mxu0 0.0
    %4279 = vmatprep.subr.mxu0 0.0
    %4280 = vmatpush1.msra.mxu0 0.0
    %4281 = vmatprep.subr.mxu0 0.0
    %4282 = vmatpush1.msra.mxu0 0.0
    %4283 = vmatprep.subr.mxu0 0.0
    %4284 = vmatpush1.msra.mxu0 0.0
    %4285 = vmatprep.subr.mxu0 0.0
    %4286 = vmatpush1.msra.mxu0 0.0
    %4287 = vmatprep.subr.mxu0 0.0
    %4288 = vmatpush1.msra.mxu0 0.0
    %4289 = vmatprep.subr.mxu0 0.0
    %4290 = vmatpush1.msra.mxu0 0.0
    %4291 = vmatprep.subr.mxu0 0.0
    %4292 = vmatpush1.msra.mxu0 0.0
    %4293 = vmatprep.subr.mxu0 0.0
    %4294 = vmatpush1.msra.mxu0 0.0
    %4295 = vmatprep.subr.mxu0 0.0
    %4296 = vmatpush1.msra.mxu0 0.0
    %4297 = vmatprep.subr.mxu0 0.0
    %4298 = vmatpush1.msra.mxu0 0.0
    %4299 = vmatprep.subr.mxu0 0.0
    %4300 = vmatpush1.msra.mxu0 0.0
    %4301 = vmatprep.subr.mxu0 0.0
    %4302 = vmatpush1.msra.mxu0 0.0
    %4303 = vmatprep.subr.mxu0 0.0
    %4304 = vmatpush1.msra.mxu0 0.0
    %4305 = vmatprep.subr.mxu0 0.0
    %4306 = vmatpush1.msra.mxu0 0.0
    %4307 = vmatprep.subr.mxu0 0.0
    %4308 = vmatpush1.msra.mxu0 0.0
    %4309 = vmatprep.subr.mxu0 0.0
    %4310 = vmatpush1.msra.mxu0 0.0
    %4311 = vmatprep.subr.mxu0 0.0
    %4312 = vmatpush1.msra.mxu0 0.0
    %4313 = vmatprep.subr.mxu0 0.0
    %4314 = vmatpush1.msra.mxu0 0.0
    %4315 = vmatprep.subr.mxu0 0.0
    %4316 = vmatpush1.msra.mxu0 0.0
    %4317 = vmatprep.mubr.f32.mxu0 0.0
    %v4318 = vand.u32 %v3912, 4294901760
    %4319 = vmatmul.mubr.f32.gmra.mrb[0].mxu0 %v4318
    %v4320 = vpop.f32.mrb[0].mxu0
    %v4321 = vadd.f32 %v4238, %v4320
    %v4322 = vpop.f32.mrb[0].mxu0
    %4323 = vdwg.mxu0
    %4324 = vmatprep.subr.mxu0 0.0
    %v4325 = vand.u32 %v27, 4294901760
    %4326 = vmatpush1.msra.mxu0 %v4325
    %4327 = vmatprep.subr.mxu0 0.0
    %v4328 = vand.u32 %v28, 4294901760
    %4329 = vmatpush1.msra.mxu0 %v4328
    %4330 = vmatprep.subr.mxu0 0.0
    %v4331 = vand.u32 %v29, 4294901760
    %4332 = vmatpush1.msra.mxu0 %v4331
    %4333 = vmatprep.subr.mxu0 0.0
    %v4334 = vand.u32 %v30, 4294901760
    %4335 = vmatpush1.msra.mxu0 %v4334
    %4336 = vmatprep.subr.mxu0 0.0
    %4337 = vmatpush1.msra.mxu0 0.0
    %4338 = vmatprep.subr.mxu0 0.0
    %4339 = vmatpush1.msra.mxu0 0.0
    %4340 = vmatprep.subr.mxu0 0.0
    %4341 = vmatpush1.msra.mxu0 0.0
    %4342 = vmatprep.subr.mxu0 0.0
    %4343 = vmatpush1.msra.mxu0 0.0
    %4344 = vmatprep.subr.mxu0 0.0
    %4345 = vmatpush1.msra.mxu0 0.0
    %4346 = vmatprep.subr.mxu0 0.0
    %4347 = vmatpush1.msra.mxu0 0.0
    %4348 = vmatprep.subr.mxu0 0.0
    %4349 = vmatpush1.msra.mxu0 0.0
    %4350 = vmatprep.subr.mxu0 0.0
    %4351 = vmatpush1.msra.mxu0 0.0
    %4352 = vmatprep.subr.mxu0 0.0
    %4353 = vmatpush1.msra.mxu0 0.0
    %4354 = vmatprep.subr.mxu0 0.0
    %4355 = vmatpush1.msra.mxu0 0.0
    %4356 = vmatprep.subr.mxu0 0.0
    %4357 = vmatpush1.msra.mxu0 0.0
    %4358 = vmatprep.subr.mxu0 0.0
    %4359 = vmatpush1.msra.mxu0 0.0
    %4360 = vmatprep.subr.mxu0 0.0
    %4361 = vmatpush1.msra.mxu0 0.0
    %4362 = vmatprep.subr.mxu0 0.0
    %4363 = vmatpush1.msra.mxu0 0.0
    %4364 = vmatprep.subr.mxu0 0.0
    %4365 = vmatpush1.msra.mxu0 0.0
    %4366 = vmatprep.subr.mxu0 0.0
    %4367 = vmatpush1.msra.mxu0 0.0
    %4368 = vmatprep.subr.mxu0 0.0
    %4369 = vmatpush1.msra.mxu0 0.0
    %4370 = vmatprep.subr.mxu0 0.0
    %4371 = vmatpush1.msra.mxu0 0.0
    %4372 = vmatprep.subr.mxu0 0.0
    %4373 = vmatpush1.msra.mxu0 0.0
    %4374 = vmatprep.subr.mxu0 0.0
    %4375 = vmatpush1.msra.mxu0 0.0
    %4376 = vmatprep.subr.mxu0 0.0
    %4377 = vmatpush1.msra.mxu0 0.0
    %4378 = vmatprep.subr.mxu0 0.0
    %4379 = vmatpush1.msra.mxu0 0.0
    %4380 = vmatprep.subr.mxu0 0.0
    %4381 = vmatpush1.msra.mxu0 0.0
    %4382 = vmatprep.subr.mxu0 0.0
    %4383 = vmatpush1.msra.mxu0 0.0
    %4384 = vmatprep.subr.mxu0 0.0
    %4385 = vmatpush1.msra.mxu0 0.0
    %4386 = vmatprep.subr.mxu0 0.0
    %4387 = vmatpush1.msra.mxu0 0.0
    %4388 = vmatprep.subr.mxu0 0.0
    %4389 = vmatpush1.msra.mxu0 0.0
    %4390 = vmatprep.subr.mxu0 0.0
    %4391 = vmatpush1.msra.mxu0 0.0
    %4392 = vmatprep.mubr.f32.mxu0 0.0
    %v4393 = vand.u32 %v3912, 4294901760
    %4394 = vmatmul.mubr.f32.gmra.mrb[0].mxu0 %v4393
    %v4395 = vpop.f32.mrb[0].mxu0
    %v4396 = vadd.f32 %v4321, %v4395
    %v4397 = vpop.f32.mrb[0].mxu0
    %4398 = vdwg.mxu0
    %v4399 = vadd.f32 %v829, %v4396
    %v4400 = vmul.f32 %v4399, %v836
    %v4401 = vtanh.pop %v4400
    %v4402 = vmul.f32 %v836, %v4401
    %v4403 = vadd.f32 %v4402, %v837
    %v4404 = vmul.f32 %v4403, %v3902
    %4406 = vrot.lane.b32.xlu0 %v4403, 64
    %v4407 = vpop.permute.xlu0 %4406
    %v4409 = vmul.f32 %v4403, %v4407
    %4411 = vrot.lane.b32.xlu0 %v4409, 32
    %v4412 = vpop.permute.xlu0 %4411
    %v4414 = vadd.f32 %v4404, %v4412
    %v4415 = vtanh.pop %v4414
    %4417 = vrot.lane.b32.xlu0 %v4415, 64
    %v4418 = vpop.permute.xlu0 %4417
    %v4420 = vmul.f32 %v4403, %v4418
    %4422 = vrot.lane.b32.xlu0 %v4420, 32
    %v4423 = vpop.permute.xlu0 %4422
    %v4424 = vsel %vm838, %v4423, 0
    %4426 = vmatprep.subr.mxu0 0.0
    %v4427 = vand.u32 %v27, 4294901760
    %4428 = vmatpush1.msra.mxu0 %v4427
    %4429 = vmatprep.subr.mxu0 0.0
    %v4430 = vand.u32 %v28, 4294901760
    %4431 = vmatpush1.msra.mxu0 %v4430
    %4432 = vmatprep.subr.mxu0 0.0
    %v4433 = vand.u32 %v29, 4294901760
    %4434 = vmatpush1.msra.mxu0 %v4433
    %4435 = vmatprep.subr.mxu0 0.0
    %v4436 = vand.u32 %v30, 4294901760
    %4437 = vmatpush1.msra.mxu0 %v4436
    %4438 = vmatprep.subr.mxu0 0.0
    %4439 = vmatpush1.msra.mxu0 0.0
    %4440 = vmatprep.subr.mxu0 0.0
    %4441 = vmatpush1.msra.mxu0 0.0
    %4442 = vmatprep.subr.mxu0 0.0
    %4443 = vmatpush1.msra.mxu0 0.0
    %4444 = vmatprep.subr.mxu0 0.0
    %4445 = vmatpush1.msra.mxu0 0.0
    %4446 = vmatprep.subr.mxu0 0.0
    %4447 = vmatpush1.msra.mxu0 0.0
    %4448 = vmatprep.subr.mxu0 0.0
    %4449 = vmatpush1.msra.mxu0 0.0
    %4450 = vmatprep.subr.mxu0 0.0
    %4451 = vmatpush1.msra.mxu0 0.0
    %4452 = vmatprep.subr.mxu0 0.0
    %4453 = vmatpush1.msra.mxu0 0.0
    %4454 = vmatprep.subr.mxu0 0.0
    %4455 = vmatpush1.msra.mxu0 0.0
    %4456 = vmatprep.subr.mxu0 0.0
    %4457 = vmatpush1.msra.mxu0 0.0
    %4458 = vmatprep.subr.mxu0 0.0
    %4459 = vmatpush1.msra.mxu0 0.0
    %4460 = vmatprep.subr.mxu0 0.0
    %4461 = vmatpush1.msra.mxu0 0.0
    %4462 = vmatprep.subr.mxu0 0.0
    %4463 = vmatpush1.msra.mxu0 0.0
    %4464 = vmatprep.subr.mxu0 0.0
    %4465 = vmatpush1.msra.mxu0 0.0
    %4466 = vmatprep.subr.mxu0 0.0
    %4467 = vmatpush1.msra.mxu0 0.0
    %4468 = vmatprep.subr.mxu0 0.0
    %4469 = vmatpush1.msra.mxu0 0.0
    %4470 = vmatprep.subr.mxu0 0.0
    %4471 = vmatpush1.msra.mxu0 0.0
    %4472 = vmatprep.subr.mxu0 0.0
    %4473 = vmatpush1.msra.mxu0 0.0
    %4474 = vmatprep.subr.mxu0 0.0
    %4475 = vmatpush1.msra.mxu0 0.0
    %4476 = vmatprep.subr.mxu0 0.0
    %4477 = vmatpush1.msra.mxu0 0.0
    %4478 = vmatprep.subr.mxu0 0.0
    %4479 = vmatpush1.msra.mxu0 0.0
    %4480 = vmatprep.subr.mxu0 0.0
    %4481 = vmatpush1.msra.mxu0 0.0
    %4482 = vmatprep.subr.mxu0 0.0
    %4483 = vmatpush1.msra.mxu0 0.0
    %4484 = vmatprep.subr.mxu0 0.0
    %4485 = vmatpush1.msra.mxu0 0.0
    %4486 = vmatprep.subr.mxu0 0.0
    %4487 = vmatpush1.msra.mxu0 0.0
    %4488 = vmatprep.subr.mxu0 0.0
    %4489 = vmatpush1.msra.mxu0 0.0
    %4490 = vmatprep.subr.mxu0 0.0
    %4491 = vmatpush1.msra.mxu0 0.0
    %4492 = vmatprep.subr.mxu0 0.0
    %4493 = vmatpush1.msra.mxu0 0.0
    %4494 = vmatprep.mubr.f32.mxu0 0.0
    %v4495 = vand.u32 %v4424, 4294901760
    %v4496 = vsub.f32 %v4424, %v4495
    %v4497 = vand.u32 %v4496, 4294901760
    %v4498 = vsub.f32 %v4496, %v4497
    %v4499 = vand.u32 %v4498, 4294901760
    %4500 = vmatmul.mubr.f32.gmra.mrb[0].mxu0 %v4499
    %v4501 = vpop.f32.mrb[0].mxu0
    %v4502 = vadd.f32 0.0, %v4501
    %v4503 = vpop.f32.mrb[0].mxu0
    %4504 = vdwg.mxu0
    %4505 = vmatprep.subr.mxu0 0.0
    %v4506 = vand.u32 %v27, 4294901760
    %v4507 = vsub.f32 %v27, %v4506
    %v4508 = vand.u32 %v4507, 4294901760
    %v4509 = vsub.f32 %v4507, %v4508
    %v4510 = vand.u32 %v4509, 4294901760
    %4511 = vmatpush1.msra.mxu0 %v4510
    %4512 = vmatprep.subr.mxu0 0.0
    %v4513 = vand.u32 %v28, 4294901760
    %v4514 = vsub.f32 %v28, %v4513
    %v4515 = vand.u32 %v4514, 4294901760
    %v4516 = vsub.f32 %v4514, %v4515
    %v4517 = vand.u32 %v4516, 4294901760
    %4518 = vmatpush1.msra.mxu0 %v4517
    %4519 = vmatprep.subr.mxu0 0.0
    %v4520 = vand.u32 %v29, 4294901760
    %v4521 = vsub.f32 %v29, %v4520
    %v4522 = vand.u32 %v4521, 4294901760
    %v4523 = vsub.f32 %v4521, %v4522
    %v4524 = vand.u32 %v4523, 4294901760
    %4525 = vmatpush1.msra.mxu0 %v4524
    %4526 = vmatprep.subr.mxu0 0.0
    %v4527 = vand.u32 %v30, 4294901760
    %v4528 = vsub.f32 %v30, %v4527
    %v4529 = vand.u32 %v4528, 4294901760
    %v4530 = vsub.f32 %v4528, %v4529
    %v4531 = vand.u32 %v4530, 4294901760
    %4532 = vmatpush1.msra.mxu0 %v4531
    %4533 = vmatprep.subr.mxu0 0.0
    %4534 = vmatpush1.msra.mxu0 0.0
    %4535 = vmatprep.subr.mxu0 0.0
    %4536 = vmatpush1.msra.mxu0 0.0
    %4537 = vmatprep.subr.mxu0 0.0
    %4538 = vmatpush1.msra.mxu0 0.0
    %4539 = vmatprep.subr.mxu0 0.0
    %4540 = vmatpush1.msra.mxu0 0.0
    %4541 = vmatprep.subr.mxu0 0.0
    %4542 = vmatpush1.msra.mxu0 0.0
    %4543 = vmatprep.subr.mxu0 0.0
    %4544 = vmatpush1.msra.mxu0 0.0
    %4545 = vmatprep.subr.mxu0 0.0
    %4546 = vmatpush1.msra.mxu0 0.0
    %4547 = vmatprep.subr.mxu0 0.0
    %4548 = vmatpush1.msra.mxu0 0.0
    %4549 = vmatprep.subr.mxu0 0.0
    %4550 = vmatpush1.msra.mxu0 0.0
    %4551 = vmatprep.subr.mxu0 0.0
    %4552 = vmatpush1.msra.mxu0 0.0
    %4553 = vmatprep.subr.mxu0 0.0
    %4554 = vmatpush1.msra.mxu0 0.0
    %4555 = vmatprep.subr.mxu0 0.0
    %4556 = vmatpush1.msra.mxu0 0.0
    %4557 = vmatprep.subr.mxu0 0.0
    %4558 = vmatpush1.msra.mxu0 0.0
    %4559 = vmatprep.subr.mxu0 0.0
    %4560 = vmatpush1.msra.mxu0 0.0
    %4561 = vmatprep.subr.mxu0 0.0
    %4562 = vmatpush1.msra.mxu0 0.0
    %4563 = vmatprep.subr.mxu0 0.0
    %4564 = vmatpush1.msra.mxu0 0.0
    %4565 = vmatprep.subr.mxu0 0.0
    %4566 = vmatpush1.msra.mxu0 0.0
    %4567 = vmatprep.subr.mxu0 0.0
    %4568 = vmatpush1.msra.mxu0 0.0
    %4569 = vmatprep.subr.mxu0 0.0
    %4570 = vmatpush1.msra.mxu0 0.0
    %4571 = vmatprep.subr.mxu0 0.0
    %4572 = vmatpush1.msra.mxu0 0.0
    %4573 = vmatprep.subr.mxu0 0.0
    %4574 = vmatpush1.msra.mxu0 0.0
    %4575 = vmatprep.subr.mxu0 0.0
    %4576 = vmatpush1.msra.mxu0 0.0
    %4577 = vmatprep.subr.mxu0 0.0
    %4578 = vmatpush1.msra.mxu0 0.0
    %4579 = vmatprep.subr.mxu0 0.0
    %4580 = vmatpush1.msra.mxu0 0.0
    %4581 = vmatprep.subr.mxu0 0.0
    %4582 = vmatpush1.msra.mxu0 0.0
    %4583 = vmatprep.subr.mxu0 0.0
    %4584 = vmatpush1.msra.mxu0 0.0
    %4585 = vmatprep.subr.mxu0 0.0
    %4586 = vmatpush1.msra.mxu0 0.0
    %4587 = vmatprep.subr.mxu0 0.0
    %4588 = vmatpush1.msra.mxu0 0.0
    %4589 = vmatprep.mubr.f32.mxu0 0.0
    %v4590 = vand.u32 %v4424, 4294901760
    %4591 = vmatmul.mubr.f32.gmra.mrb[0].mxu0 %v4590
    %v4592 = vpop.f32.mrb[0].mxu0
    %v4593 = vadd.f32 %v4502, %v4592
    %v4594 = vpop.f32.mrb[0].mxu0
    %4595 = vdwg.mxu0
    %4596 = vmatprep.subr.mxu0 0.0
    %v4597 = vand.u32 %v27, 4294901760
    %v4598 = vsub.f32 %v27, %v4597
    %4599 = vmatpush1.msra.mxu0 %v4598
    %4600 = vmatprep.subr.mxu0 0.0
    %v4601 = vand.u32 %v28, 4294901760
    %v4602 = vsub.f32 %v28, %v4601
    %4603 = vmatpush1.msra.mxu0 %v4602
    %4604 = vmatprep.subr.mxu0 0.0
    %v4605 = vand.u32 %v29, 4294901760
    %v4606 = vsub.f32 %v29, %v4605
    %4607 = vmatpush1.msra.mxu0 %v4606
    %4608 = vmatprep.subr.mxu0 0.0
    %v4609 = vand.u32 %v30, 4294901760
    %v4610 = vsub.f32 %v30, %v4609
    %4611 = vmatpush1.msra.mxu0 %v4610
    %4612 = vmatprep.subr.mxu0 0.0
    %4613 = vmatpush1.msra.mxu0 0.0
    %4614 = vmatprep.subr.mxu0 0.0
    %4615 = vmatpush1.msra.mxu0 0.0
    %4616 = vmatprep.subr.mxu0 0.0
    %4617 = vmatpush1.msra.mxu0 0.0
    %4618 = vmatprep.subr.mxu0 0.0
    %4619 = vmatpush1.msra.mxu0 0.0
    %4620 = vmatprep.subr.mxu0 0.0
    %4621 = vmatpush1.msra.mxu0 0.0
    %4622 = vmatprep.subr.mxu0 0.0
    %4623 = vmatpush1.msra.mxu0 0.0
    %4624 = vmatprep.subr.mxu0 0.0
    %4625 = vmatpush1.msra.mxu0 0.0
    %4626 = vmatprep.subr.mxu0 0.0
    %4627 = vmatpush1.msra.mxu0 0.0
    %4628 = vmatprep.subr.mxu0 0.0
    %4629 = vmatpush1.msra.mxu0 0.0
    %4630 = vmatprep.subr.mxu0 0.0
    %4631 = vmatpush1.msra.mxu0 0.0
    %4632 = vmatprep.subr.mxu0 0.0
    %4633 = vmatpush1.msra.mxu0 0.0
    %4634 = vmatprep.subr.mxu0 0.0
    %4635 = vmatpush1.msra.mxu0 0.0
    %4636 = vmatprep.subr.mxu0 0.0
    %4637 = vmatpush1.msra.mxu0 0.0
    %4638 = vmatprep.subr.mxu0 0.0
    %4639 = vmatpush1.msra.mxu0 0.0
    %4640 = vmatprep.subr.mxu0 0.0
    %4641 = vmatpush1.msra.mxu0 0.0
    %4642 = vmatprep.subr.mxu0 0.0
    %4643 = vmatpush1.msra.mxu0 0.0
    %4644 = vmatprep.subr.mxu0 0.0
    %4645 = vmatpush1.msra.mxu0 0.0
    %4646 = vmatprep.subr.mxu0 0.0
    %4647 = vmatpush1.msra.mxu0 0.0
    %4648 = vmatprep.subr.mxu0 0.0
    %4649 = vmatpush1.msra.mxu0 0.0
    %4650 = vmatprep.subr.mxu0 0.0
    %4651 = vmatpush1.msra.mxu0 0.0
    %4652 = vmatprep.subr.mxu0 0.0
    %4653 = vmatpush1.msra.mxu0 0.0
    %4654 = vmatprep.subr.mxu0 0.0
    %4655 = vmatpush1.msra.mxu0 0.0
    %4656 = vmatprep.subr.mxu0 0.0
    %4657 = vmatpush1.msra.mxu0 0.0
    %4658 = vmatprep.subr.mxu0 0.0
    %4659 = vmatpush1.msra.mxu0 0.0
    %4660 = vmatprep.subr.mxu0 0.0
    %4661 = vmatpush1.msra.mxu0 0.0
    %4662 = vmatprep.subr.mxu0 0.0
    %4663 = vmatpush1.msra.mxu0 0.0
    %4664 = vmatprep.subr.mxu0 0.0
    %4665 = vmatpush1.msra.mxu0 0.0
    %4666 = vmatprep.subr.mxu0 0.0
    %4667 = vmatpush1.msra.mxu0 0.0
    %4668 = vmatprep.mubr.f32.mxu0 0.0
    %v4669 = vand.u32 %v4424, 4294901760
    %v4670 = vsub.f32 %v4424, %v4669
    %4671 = vmatmul.mubr.f32.gmra.mrb[0].mxu0 %v4670
    %v4672 = vpop.f32.mrb[0].mxu0
    %v4673 = vadd.f32 %v4593, %v4672
    %v4674 = vpop.f32.mrb[0].mxu0
    %4675 = vdwg.mxu0
    %4676 = vmatprep.subr.mxu0 0.0
    %v4677 = vand.u32 %v27, 4294901760
    %4678 = vmatpush1.msra.mxu0 %v4677
    %4679 = vmatprep.subr.mxu0 0.0
    %v4680 = vand.u32 %v28, 4294901760
    %4681 = vmatpush1.msra.mxu0 %v4680
    %4682 = vmatprep.subr.mxu0 0.0
    %v4683 = vand.u32 %v29, 4294901760
    %4684 = vmatpush1.msra.mxu0 %v4683
    %4685 = vmatprep.subr.mxu0 0.0
    %v4686 = vand.u32 %v30, 4294901760
    %4687 = vmatpush1.msra.mxu0 %v4686
    %4688 = vmatprep.subr.mxu0 0.0
    %4689 = vmatpush1.msra.mxu0 0.0
    %4690 = vmatprep.subr.mxu0 0.0
    %4691 = vmatpush1.msra.mxu0 0.0
    %4692 = vmatprep.subr.mxu0 0.0
    %4693 = vmatpush1.msra.mxu0 0.0
    %4694 = vmatprep.subr.mxu0 0.0
    %4695 = vmatpush1.msra.mxu0 0.0
    %4696 = vmatprep.subr.mxu0 0.0
    %4697 = vmatpush1.msra.mxu0 0.0
    %4698 = vmatprep.subr.mxu0 0.0
    %4699 = vmatpush1.msra.mxu0 0.0
    %4700 = vmatprep.subr.mxu0 0.0
    %4701 = vmatpush1.msra.mxu0 0.0
    %4702 = vmatprep.subr.mxu0 0.0
    %4703 = vmatpush1.msra.mxu0 0.0
    %4704 = vmatprep.subr.mxu0 0.0
    %4705 = vmatpush1.msra.mxu0 0.0
    %4706 = vmatprep.subr.mxu0 0.0
    %4707 = vmatpush1.msra.mxu0 0.0
    %4708 = vmatprep.subr.mxu0 0.0
    %4709 = vmatpush1.msra.mxu0 0.0
    %4710 = vmatprep.subr.mxu0 0.0
    %4711 = vmatpush1.msra.mxu0 0.0
    %4712 = vmatprep.subr.mxu0 0.0
    %4713 = vmatpush1.msra.mxu0 0.0
    %4714 = vmatprep.subr.mxu0 0.0
    %4715 = vmatpush1.msra.mxu0 0.0
    %4716 = vmatprep.subr.mxu0 0.0
    %4717 = vmatpush1.msra.mxu0 0.0
    %4718 = vmatprep.subr.mxu0 0.0
    %4719 = vmatpush1.msra.mxu0 0.0
    %4720 = vmatprep.subr.mxu0 0.0
    %4721 = vmatpush1.msra.mxu0 0.0
    %4722 = vmatprep.subr.mxu0 0.0
    %4723 = vmatpush1.msra.mxu0 0.0
    %4724 = vmatprep.subr.mxu0 0.0
    %4725 = vmatpush1.msra.mxu0 0.0
    %4726 = vmatprep.subr.mxu0 0.0
    %4727 = vmatpush1.msra.mxu0 0.0
    %4728 = vmatprep.subr.mxu0 0.0
    %4729 = vmatpush1.msra.mxu0 0.0
    %4730 = vmatprep.subr.mxu0 0.0
    %4731 = vmatpush1.msra.mxu0 0.0
    %4732 = vmatprep.subr.mxu0 0.0
    %4733 = vmatpush1.msra.mxu0 0.0
    %4734 = vmatprep.subr.mxu0 0.0
    %4735 = vmatpush1.msra.mxu0 0.0
    %4736 = vmatprep.subr.mxu0 0.0
    %4737 = vmatpush1.msra.mxu0 0.0
    %4738 = vmatprep.subr.mxu0 0.0
    %4739 = vmatpush1.msra.mxu0 0.0
    %4740 = vmatprep.subr.mxu0 0.0
    %4741 = vmatpush1.msra.mxu0 0.0
    %4742 = vmatprep.subr.mxu0 0.0
    %4743 = vmatpush1.msra.mxu0 0.0
    %4744 = vmatprep.mubr.f32.mxu0 0.0
    %v4745 = vand.u32 %v4424, 4294901760
    %v4746 = vsub.f32 %v4424, %v4745
    %v4747 = vand.u32 %v4746, 4294901760
    %4748 = vmatmul.mubr.f32.gmra.mrb[0].mxu0 %v4747
    %v4749 = vpop.f32.mrb[0].mxu0
    %v4750 = vadd.f32 %v4673, %v4749
    %v4751 = vpop.f32.mrb[0].mxu0
    %4752 = vdwg.mxu0
    %4753 = vmatprep.subr.mxu0 0.0
    %v4754 = vand.u32 %v27, 4294901760
    %v4755 = vsub.f32 %v27, %v4754
    %v4756 = vand.u32 %v4755, 4294901760
    %4757 = vmatpush1.msra.mxu0 %v4756
    %4758 = vmatprep.subr.mxu0 0.0
    %v4759 = vand.u32 %v28, 4294901760
    %v4760 = vsub.f32 %v28, %v4759
    %v4761 = vand.u32 %v4760, 4294901760
    %4762 = vmatpush1.msra.mxu0 %v4761
    %4763 = vmatprep.subr.mxu0 0.0
    %v4764 = vand.u32 %v29, 4294901760
    %v4765 = vsub.f32 %v29, %v4764
    %v4766 = vand.u32 %v4765, 4294901760
    %4767 = vmatpush1.msra.mxu0 %v4766
    %4768 = vmatprep.subr.mxu0 0.0
    %v4769 = vand.u32 %v30, 4294901760
    %v4770 = vsub.f32 %v30, %v4769
    %v4771 = vand.u32 %v4770, 4294901760
    %4772 = vmatpush1.msra.mxu0 %v4771
    %4773 = vmatprep.subr.mxu0 0.0
    %4774 = vmatpush1.msra.mxu0 0.0
    %4775 = vmatprep.subr.mxu0 0.0
    %4776 = vmatpush1.msra.mxu0 0.0
    %4777 = vmatprep.subr.mxu0 0.0
    %4778 = vmatpush1.msra.mxu0 0.0
    %4779 = vmatprep.subr.mxu0 0.0
    %4780 = vmatpush1.msra.mxu0 0.0
    %4781 = vmatprep.subr.mxu0 0.0
    %4782 = vmatpush1.msra.mxu0 0.0
    %4783 = vmatprep.subr.mxu0 0.0
    %4784 = vmatpush1.msra.mxu0 0.0
    %4785 = vmatprep.subr.mxu0 0.0
    %4786 = vmatpush1.msra.mxu0 0.0
    %4787 = vmatprep.subr.mxu0 0.0
    %4788 = vmatpush1.msra.mxu0 0.0
    %4789 = vmatprep.subr.mxu0 0.0
    %4790 = vmatpush1.msra.mxu0 0.0
    %4791 = vmatprep.subr.mxu0 0.0
    %4792 = vmatpush1.msra.mxu0 0.0
    %4793 = vmatprep.subr.mxu0 0.0
    %4794 = vmatpush1.msra.mxu0 0.0
    %4795 = vmatprep.subr.mxu0 0.0
    %4796 = vmatpush1.msra.mxu0 0.0
    %4797 = vmatprep.subr.mxu0 0.0
    %4798 = vmatpush1.msra.mxu0 0.0
    %4799 = vmatprep.subr.mxu0 0.0
    %4800 = vmatpush1.msra.mxu0 0.0
    %4801 = vmatprep.subr.mxu0 0.0
    %4802 = vmatpush1.msra.mxu0 0.0
    %4803 = vmatprep.subr.mxu0 0.0
    %4804 = vmatpush1.msra.mxu0 0.0
    %4805 = vmatprep.subr.mxu0 0.0
    %4806 = vmatpush1.msra.mxu0 0.0
    %4807 = vmatprep.subr.mxu0 0.0
    %4808 = vmatpush1.msra.mxu0 0.0
    %4809 = vmatprep.subr.mxu0 0.0
    %4810 = vmatpush1.msra.mxu0 0.0
    %4811 = vmatprep.subr.mxu0 0.0
    %4812 = vmatpush1.msra.mxu0 0.0
    %4813 = vmatprep.subr.mxu0 0.0
    %4814 = vmatpush1.msra.mxu0 0.0
    %4815 = vmatprep.subr.mxu0 0.0
    %4816 = vmatpush1.msra.mxu0 0.0
    %4817 = vmatprep.subr.mxu0 0.0
    %4818 = vmatpush1.msra.mxu0 0.0
    %4819 = vmatprep.subr.mxu0 0.0
    %4820 = vmatpush1.msra.mxu0 0.0
    %4821 = vmatprep.subr.mxu0 0.0
    %4822 = vmatpush1.msra.mxu0 0.0
    %4823 = vmatprep.subr.mxu0 0.0
    %4824 = vmatpush1.msra.mxu0 0.0
    %4825 = vmatprep.subr.mxu0 0.0
    %4826 = vmatpush1.msra.mxu0 0.0
    %4827 = vmatprep.subr.mxu0 0.0
    %4828 = vmatpush1.msra.mxu0 0.0
    %4829 = vmatprep.mubr.f32.mxu0 0.0
    %v4830 = vand.u32 %v4424, 4294901760
    %4831 = vmatmul.mubr.f32.gmra.mrb[0].mxu0 %v4830
    %v4832 = vpop.f32.mrb[0].mxu0
    %v4833 = vadd.f32 %v4750, %v4832
    %v4834 = vpop.f32.mrb[0].mxu0
    %4835 = vdwg.mxu0
    %4836 = vmatprep.subr.mxu0 0.0
    %v4837 = vand.u32 %v27, 4294901760
    %4838 = vmatpush1.msra.mxu0 %v4837
    %4839 = vmatprep.subr.mxu0 0.0
    %v4840 = vand.u32 %v28, 4294901760
    %4841 = vmatpush1.msra.mxu0 %v4840
    %4842 = vmatprep.subr.mxu0 0.0
    %v4843 = vand.u32 %v29, 4294901760
    %4844 = vmatpush1.msra.mxu0 %v4843
    %4845 = vmatprep.subr.mxu0 0.0
    %v4846 = vand.u32 %v30, 4294901760
    %4847 = vmatpush1.msra.mxu0 %v4846
    %4848 = vmatprep.subr.mxu0 0.0
    %4849 = vmatpush1.msra.mxu0 0.0
    %4850 = vmatprep.subr.mxu0 0.0
    %4851 = vmatpush1.msra.mxu0 0.0
    %4852 = vmatprep.subr.mxu0 0.0
    %4853 = vmatpush1.msra.mxu0 0.0
    %4854 = vmatprep.subr.mxu0 0.0
    %4855 = vmatpush1.msra.mxu0 0.0
    %4856 = vmatprep.subr.mxu0 0.0
    %4857 = vmatpush1.msra.mxu0 0.0
    %4858 = vmatprep.subr.mxu0 0.0
    %4859 = vmatpush1.msra.mxu0 0.0
    %4860 = vmatprep.subr.mxu0 0.0
    %4861 = vmatpush1.msra.mxu0 0.0
    %4862 = vmatprep.subr.mxu0 0.0
    %4863 = vmatpush1.msra.mxu0 0.0
    %4864 = vmatprep.subr.mxu0 0.0
    %4865 = vmatpush1.msra.mxu0 0.0
    %4866 = vmatprep.subr.mxu0 0.0
    %4867 = vmatpush1.msra.mxu0 0.0
    %4868 = vmatprep.subr.mxu0 0.0
    %4869 = vmatpush1.msra.mxu0 0.0
    %4870 = vmatprep.subr.mxu0 0.0
    %4871 = vmatpush1.msra.mxu0 0.0
    %4872 = vmatprep.subr.mxu0 0.0
    %4873 = vmatpush1.msra.mxu0 0.0
    %4874 = vmatprep.subr.mxu0 0.0
    %4875 = vmatpush1.msra.mxu0 0.0
    %4876 = vmatprep.subr.mxu0 0.0
    %4877 = vmatpush1.msra.mxu0 0.0
    %4878 = vmatprep.subr.mxu0 0.0
    %4879 = vmatpush1.msra.mxu0 0.0
    %4880 = vmatprep.subr.mxu0 0.0
    %4881 = vmatpush1.msra.mxu0 0.0
    %4882 = vmatprep.subr.mxu0 0.0
    %4883 = vmatpush1.msra.mxu0 0.0
    %4884 = vmatprep.subr.mxu0 0.0
    %4885 = vmatpush1.msra.mxu0 0.0
    %4886 = vmatprep.subr.mxu0 0.0
    %4887 = vmatpush1.msra.mxu0 0.0
    %4888 = vmatprep.subr.mxu0 0.0
    %4889 = vmatpush1.msra.mxu0 0.0
    %4890 = vmatprep.subr.mxu0 0.0
    %4891 = vmatpush1.msra.mxu0 0.0
    %4892 = vmatprep.subr.mxu0 0.0
    %4893 = vmatpush1.msra.mxu0 0.0
    %4894 = vmatprep.subr.mxu0 0.0
    %4895 = vmatpush1.msra.mxu0 0.0
    %4896 = vmatprep.subr.mxu0 0.0
    %4897 = vmatpush1.msra.mxu0 0.0
    %4898 = vmatprep.subr.mxu0 0.0
    %4899 = vmatpush1.msra.mxu0 0.0
    %4900 = vmatprep.subr.mxu0 0.0
    %4901 = vmatpush1.msra.mxu0 0.0
    %4902 = vmatprep.subr.mxu0 0.0
    %4903 = vmatpush1.msra.mxu0 0.0
    %4904 = vmatprep.mubr.f32.mxu0 0.0
    %v4905 = vand.u32 %v4424, 4294901760
    %4906 = vmatmul.mubr.f32.gmra.mrb[0].mxu0 %v4905
    %v4907 = vpop.f32.mrb[0].mxu0
    %v4908 = vadd.f32 %v4833, %v4907
    %v4909 = vpop.f32.mrb[0].mxu0
    %4910 = vdwg.mxu0
    %v4911 = vadd.f32 %v830, %v4908
    %v4912 = vmul.f32 %v4911, %v836
    %v4913 = vtanh.pop %v4912
    %v4914 = vmul.f32 %v836, %v4913
    %v4915 = vadd.f32 %v4914, %v837
    %v4916 = vmul.f32 %v4915, %v4414
    %4918 = vrot.lane.b32.xlu0 %v4915, 64
    %v4919 = vpop.permute.xlu0 %4918
    %v4921 = vmul.f32 %v4915, %v4919
    %4923 = vrot.lane.b32.xlu0 %v4921, 32
    %v4924 = vpop.permute.xlu0 %4923
    %v4926 = vadd.f32 %v4916, %v4924
    %v4927 = vtanh.pop %v4926
    %4929 = vrot.lane.b32.xlu0 %v4927, 64
    %v4930 = vpop.permute.xlu0 %4929
    %v4932 = vmul.f32 %v4915, %v4930
    %v4934 = vlaneseq
    %v4935 = vshrl.u32 %v4934, 7
    %v4936 = vsub.s32 0, %v4935
    %v4937 = vrot.slane %v32, %v4936
    %4938 = vrot.lane.b32.xlu0 %v4937, 96
    %v4939 = vpop.permute.xlu0 %4938
    %v4941 = vmul.f32 %v1348, %v4939
    %v4942 = vmul.f32 %v1860, %v4939
    %v4943 = vmul.f32 %v2372, %v4939
    %v4944 = vmul.f32 %v2884, %v4939
    %v4945 = vmul.f32 %v3396, %v4939
    %v4946 = vmul.f32 %v3908, %v4939
    %v4947 = vmul.f32 %v4420, %v4939
    %v4948 = vmul.f32 %v4932, %v4939
    %4957 = vrot.lane.b32.xlu0 %v4941, 32
    %v4958 = vpop.permute.xlu0 %4957
    %4959 = vrot.lane.b32.xlu0 %v4942, 32
    %v4960 = vpop.permute.xlu0 %4959
    %4961 = vrot.lane.b32.xlu0 %v4943, 32
    %v4962 = vpop.permute.xlu0 %4961
    %4963 = vrot.lane.b32.xlu0 %v4944, 32
    %v4964 = vpop.permute.xlu0 %4963
    %4965 = vrot.lane.b32.xlu0 %v4945, 32
    %v4966 = vpop.permute.xlu0 %4965
    %4967 = vrot.lane.b32.xlu0 %v4946, 32
    %v4968 = vpop.permute.xlu0 %4967
    %4969 = vrot.lane.b32.xlu0 %v4947, 32
    %v4970 = vpop.permute.xlu0 %4969
    %4971 = vrot.lane.b32.xlu0 %v4948, 32
    %v4972 = vpop.permute.xlu0 %4971
    %v4981 = vsel %vm838, %v4958, 0.0
    %4982 = vadd.xlane.f32.xlu0 %v4981
    %v4983 = vpop.xlane.xlu0 %4982
    %v4984 = vsel %vm838, %v4960, 0.0
    %4985 = vadd.xlane.f32.xlu0 %v4984
    %v4986 = vpop.xlane.xlu0 %4985
    %v4987 = vsel %vm838, %v4962, 0.0
    %4988 = vadd.xlane.f32.xlu0 %v4987
    %v4989 = vpop.xlane.xlu0 %4988
    %v4990 = vsel %vm838, %v4964, 0.0
    %4991 = vadd.xlane.f32.xlu0 %v4990
    %v4992 = vpop.xlane.xlu0 %4991
    %v4993 = vsel %vm838, %v4966, 0.0
    %4994 = vadd.xlane.f32.xlu0 %v4993
    %v4995 = vpop.xlane.xlu0 %4994
    %v4996 = vsel %vm838, %v4968, 0.0
    %4997 = vadd.xlane.f32.xlu0 %v4996
    %v4998 = vpop.xlane.xlu0 %4997
    %v4999 = vsel %vm838, %v4970, 0.0
    %5000 = vadd.xlane.f32.xlu0 %v4999
    %v5001 = vpop.xlane.xlu0 %5000
    %v5002 = vsel %vm838, %v4972, 0.0
    %5003 = vadd.xlane.f32.xlu0 %v5002
    %v5004 = vpop.xlane.xlu0 %5003
    %v5005 = vld [vmem:[#allocation2] sm:$0x1]
    %v5007 = vlaneseq
    %v5008 = vshrl.u32 %v5007, 7
    %v5009 = vsub.s32 0, %v5008
    %v5010 = vrot.slane %v5005, %v5009
    %5011 = vset.pattern.permute.xlu0 0
    %5012 = vperm.xlu0 %5011, %v5010
    %v5013 = vpop.permute.xlu0 %5012
    %v5015 = vadd.f32 %v4983, %v5013
    %v5016 = vadd.f32 %v4986, %v5013
    %v5017 = vadd.f32 %v4989, %v5013
    %v5018 = vadd.f32 %v4992, %v5013
    %v5019 = vadd.f32 %v4995, %v5013
    %v5020 = vadd.f32 %v4998, %v5013
    %v5021 = vadd.f32 %v5001, %v5013
    %v5022 = vadd.f32 %v5004, %v5013
    %v5031 = vlaneseq
    %v5032 = vshrl.u32 %v5031, 7
    %v5033 = vsub.s32 %v832, %v5032
    %v5034 = vrot.slane %v5015, %v5033
    %v5035 = vlaneseq
    %v5036 = vshrl.u32 %v5035, 7
    %v5037 = vsub.s32 %v832, %v5036
    %v5038 = vrot.slane %v5016, %v5037
    %v5039 = vlaneseq
    %v5040 = vshrl.u32 %v5039, 7
    %v5041 = vsub.s32 %v832, %v5040
    %v5042 = vrot.slane %v5017, %v5041
    %v5043 = vlaneseq
    %v5044 = vshrl.u32 %v5043, 7
    %v5045 = vsub.s32 %v832, %v5044
    %v5046 = vrot.slane %v5018, %v5045
    %v5047 = vlaneseq
    %v5048 = vshrl.u32 %v5047, 7
    %v5049 = vsub.s32 %v832, %v5048
    %v5050 = vrot.slane %v5019, %v5049
    %v5051 = vlaneseq
    %v5052 = vshrl.u32 %v5051, 7
    %v5053 = vsub.s32 %v832, %v5052
    %v5054 = vrot.slane %v5020, %v5053
    %v5055 = vlaneseq
    %v5056 = vshrl.u32 %v5055, 7
    %v5057 = vsub.s32 %v832, %v5056
    %v5058 = vrot.slane %v5021, %v5057
    %v5059 = vlaneseq
    %v5060 = vshrl.u32 %v5059, 7
    %v5061 = vsub.s32 %v832, %v5060
    %v5062 = vrot.slane %v5022, %v5061
    %vm5063 = vcmask 1041409
    %v5064 = vsel %vm5063, %v5038, %v5034
    %vm5065 = vcmask 1042434
    %v5066 = vsel %vm5065, %v5042, %v5064
    %vm5067 = vcmask 1043459
    %v5068 = vsel %vm5067, %v5046, %v5066
    %vm5069 = vcmask 1044484
    %v5070 = vsel %vm5069, %v5050, %v5068
    %vm5071 = vcmask 1045509
    %v5072 = vsel %vm5071, %v5054, %v5070
    %vm5073 = vcmask 1046534
    %v5074 = vsel %vm5073, %v5058, %v5072
    %vm5075 = vcmask 1047559
    %v5076 = vsel %vm5075, %v5062, %v5074
    %vm5078 = vcmask 64512
    %5079 = vst.msk [vmem:[#allocation3] sm:$0xff] %vm5078, %v5076
    // Predicated region
    $region26: #{tpu_custom_call.1} parent=1 // pred_check
      _
    $region27: #{tpu_custom_call.1} parent=1 // pred_check_branch
      %5081 = sbr.rel (0) target = $region29
    $region28: #{tpu_custom_call.1} parent=1 // pred_region
      %s5083 = ssub.s32 128, 128
      %5084 = vsyncadd [#allocation4], %s5083
      %s5086 = sshll.u32 [#allocation3], 4
      %s5087 = int_to_ptr.vmem [resolvable:$true] %s5086
      %5089 = dma.vmem_to_hbm [thread:$0]  %s5087, 128, %s6, [#allocation4]
    $region29: #{tpu_custom_call.1} parent=1 // pred_fallthru
      _
    // Predicated region
    $region30: #{tpu_custom_call.1} parent=1 // pred_check
      _
    $region31: #{tpu_custom_call.1} parent=1 // pred_check_branch
      %5091 = sbr.rel (0) target = $region33
    $region32: #{tpu_custom_call.1} parent=1 // pred_region
      %5092 = dma.done [#allocation4], 128
    $region33: #{tpu_custom_call.1} parent=1 // pred_fallthru
      _
    %5093 = vsyncpa [#allocation4], 1

</llo_original>
